<compile_context>
chip_gen: v7x
topology: tpu7x:2x2x1
jax: 0.10.0
libtpu: 0.0.40
codegen_flags: <defaults>
</compile_context>

<pallas_src>
import functools

import jax
import jax.numpy as jnp
from jax.experimental import pallas as pl
from jax.experimental.pallas import tpu as pltpu


# ------------------------------ small helpers -------------------------------

def _round_up(x, m):
    return (x + m - 1) // m * m


def _row_tile(m, max_tile=512):
    """Pick a row tile (multiple of 8, <= max_tile) and the padded row count."""
    tm = min(max_tile, _round_up(m, 8))
    return tm, _round_up(m, tm)


_MOSAIC_PARAMS = pltpu.CompilerParams(
    dimension_semantics=("parallel",),          # row tiles are independent
    vmem_limit_bytes=32 * 1024 * 1024,
)


# ----------------------------- Pallas kernels -------------------------------

def _conv_relu_pool_kernel(p_ref, w_ref, b_ref, o_ref):
    """Fused conv (as im2col matmul) + bias + ReLU + 2x2 max-pool epilogue.

    p_ref: (4, TM, K) bf16   -- 4 = the four positions of each 2x2 pool window
    w_ref: (K, C)     bf16   -- im2col-packed conv weights
    b_ref: (1, C)     f32
    o_ref: (TM, C)    bf16   -- pooled activation rows (n, hp, wp) x channels
    """
    w = w_ref[...]
    b = b_ref[...]
    acc = None
    for t in range(4):                                   # static unroll, 4 MXU calls
        z = jnp.dot(p_ref[t], w, preferred_element_type=jnp.float32) + b
        z = jnp.maximum(z, 0.0)                          # ReLU (commutes with max-pool)
        acc = z if acc is None else jnp.maximum(acc, z)  # 2x2 max-pool in-register
    o_ref[...] = acc.astype(o_ref.dtype)


def _fc_tail_kernel(f_ref, w1_ref, b1_ref, w2_ref, b2_ref, wc_ref, bc_ref, o_ref):
    """Fused backbone-fc1 + relu + fc2 + relu + classifier (+ folded scaling)."""
    h = jnp.dot(f_ref[...], w1_ref[...], preferred_element_type=jnp.float32)
    h = jnp.maximum(h + b1_ref[...], 0.0)
    h = jnp.dot(h.astype(jnp.bfloat16), w2_ref[...], preferred_element_type=jnp.float32)
    h = jnp.maximum(h + b2_ref[...], 0.0)
    z = jnp.dot(h.astype(jnp.bfloat16), wc_ref[...], preferred_element_type=jnp.float32)
    o_ref[...] = (z + bc_ref[...]).astype(o_ref.dtype)


# ------------------------------ kernel wrappers ------------------------------

def conv_relu_pool(patches, w_pack, b):
    """patches: (4, M, K) bf16; w_pack: (K, C) bf16; b: (1, C) f32 -> (M, C) bf16."""
    _, m, k = patches.shape
    c = w_pack.shape[1]
    tm, m_pad = _row_tile(m)
    if m_pad != m:
        patches = jnp.pad(patches, ((0, 0), (0, m_pad - m), (0, 0)))
    out = pl.pallas_call(
        _conv_relu_pool_kernel,
        out_shape=jax.ShapeDtypeStruct((m_pad, c), jnp.bfloat16),
        grid=(m_pad // tm,),
        in_specs=[
            pl.BlockSpec((4, tm, k), lambda i: (0, i, 0)),
            pl.BlockSpec((k, c), lambda i: (0, 0)),
            pl.BlockSpec((1, c), lambda i: (0, 0)),
        ],
        out_specs=pl.BlockSpec((tm, c), lambda i: (i, 0)),
        compiler_params=_MOSAIC_PARAMS,
    )(patches, w_pack, b)
    return out[:m] if m_pad != m else out


def fc_head(feat, wf1, bf1, wf2, bf2, wc, bc):
    """feat: (N, 400) bf16 -> logits (N, num_classes) f32, one fused pallas_call."""
    n, f = feat.shape
    c = wc.shape[1]
    tb, n_pad = _row_tile(n)
    if n_pad != n:
        feat = jnp.pad(feat, ((0, n_pad - n), (0, 0)))
    out = pl.pallas_call(
        _fc_tail_kernel,
        out_shape=jax.ShapeDtypeStruct((n_pad, c), jnp.float32),
        grid=(n_pad // tb,),
        in_specs=[
            pl.BlockSpec((tb, f), lambda i: (i, 0)),
            pl.BlockSpec(wf1.shape, lambda i: (0, 0)),
            pl.BlockSpec(bf1.shape, lambda i: (0, 0)),
            pl.BlockSpec(wf2.shape, lambda i: (0, 0)),
            pl.BlockSpec(bf2.shape, lambda i: (0, 0)),
            pl.BlockSpec(wc.shape, lambda i: (0, 0)),
            pl.BlockSpec(bc.shape, lambda i: (0, 0)),
        ],
        out_specs=pl.BlockSpec((tb, c), lambda i: (i, 0)),
        compiler_params=_MOSAIC_PARAMS,
    )(feat, wf1, bf1, wf2, bf2, wc, bc)
    return out[:n] if n_pad != n else out


# ----------------------------- thin XLA glue ---------------------------------

def _im2col_pool_groups(x, k):
    """x: (N, H, W, C) -> (4, N*Hp*Wp, k*k*C) patches for a valid stride-1 conv
    followed by 2x2/2 max-pool. Axis 0 indexes the window position dh*2+dw;
    patch columns are ordered (ki, kj, c) to match the packed weights."""
    n, h, w, c = x.shape
    ho, wo = h - k + 1, w - k + 1
    assert ho % 2 == 0 and wo % 2 == 0
    hp, wp = ho // 2, wo // 2
    cols = [x[:, ki:ki + ho, kj:kj + wo, :] for ki in range(k) for kj in range(k)]
    pat = jnp.concatenate(cols, axis=-1)                      # (N, Ho, Wo, k*k*C)
    pat = pat.reshape(n, hp, 2, wp, 2, k * k * c)
    pat = jnp.transpose(pat, (2, 4, 0, 1, 3, 5))              # (2, 2, N, Hp, Wp, K)
    return pat.reshape(4, n * hp * wp, k * k * c)


# ------------------------------- parameters ----------------------------------

def init_params(key, num_classes=10):
    """PyTorch-layout parameters (same init as nn.Conv2d / nn.Linear defaults)."""
    ks = jax.random.split(key, 10)

    def u(k, shape, fan_in):
        bound = 1.0 / jnp.sqrt(jnp.float32(fan_in))
        return jax.random.uniform(k, shape, jnp.float32, -bound, bound)

    return {
        # LeNet5 backbone
        "conv1_w": u(ks[0], (6, 1, 5, 5), 1 * 25), "conv1_b": u(ks[1], (6,), 1 * 25),
        "conv2_w": u(ks[2], (16, 6, 5, 5), 6 * 25), "conv2_b": u(ks[3], (16,), 6 * 25),
        "fc1_w": u(ks[4], (400, 120), 400), "fc1_b": u(ks[5], (120,), 400),
        "fc2_w": u(ks[6], (120, 84), 120), "fc2_b": u(ks[7], (84,), 120),
        # classifier FC(84 -> num_classes, bias=True)
        "cls_w": u(ks[8], (84, num_classes), 84), "cls_b": u(ks[9], (num_classes,), 84),
        # scaling: per-class learnable scale, init ones
        "scale": jnp.ones((num_classes,), jnp.float32),
    }


def pack_params(p):
    """Pack into kernel-ready layouts:
      * conv weights -> im2col-packed (kh*kw*Cin, Cout) bf16, column order (ki, kj, ci)
      * FC/classifier weights -> (in, out) bf16, biases -> (1, out) f32
      * per-class scale folded into the classifier weight/bias at pack time
    NOTE: fc1 consumes the channels-last (hp, wp, c) flatten of the pooled conv2
    output; to load real PyTorch LeNet5 weights, permute fc1's input axis from
    (c, h, w) to (h, w, c) ordering first (params here are self-generated)."""
    def conv_pack(w):                       # (Cout, Cin, kh, kw) -> (kh*kw*Cin, Cout)
        cout, cin, kh, kw = w.shape
        return jnp.transpose(w, (2, 3, 1, 0)).reshape(kh * kw * cin, cout).astype(jnp.bfloat16)

    wc = p["cls_w"] * p["scale"][None, :]   # fold scaling (exact: scale init is f32)
    bc = p["cls_b"] * p["scale"]
    return {
        "w1": conv_pack(p["conv1_w"]), "b1": p["conv1_b"].reshape(1, -1),
        "w2": conv_pack(p["conv2_w"]), "b2": p["conv2_b"].reshape(1, -1),
        "wf1": p["fc1_w"].astype(jnp.bfloat16), "bf1": p["fc1_b"].reshape(1, -1),
        "wf2": p["fc2_w"].astype(jnp.bfloat16), "bf2": p["fc2_b"].reshape(1, -1),
        "wc": wc.astype(jnp.bfloat16), "bc": bc.reshape(1, -1),
    }


# ----------------------------- Network.forward -------------------------------

def network_forward(params, x):
    """x: (N, 1, 32, 32) f32 NCHW -> logits (N, num_classes) f32."""
    n = x.shape[0]
    # Cin == 1, so NCHW -> NHWC is a free reshape; cast to bf16 for the MXU path.
    xh = x.reshape(n, 32, 32, 1).astype(jnp.bfloat16)

    # conv1 (1->6, 5x5) + ReLU + 2x2 max-pool, fused in one kernel
    p1 = _im2col_pool_groups(xh, 5)                        # (4, N*14*14, 25)
    h1 = conv_relu_pool(p1, params["w1"], params["b1"])    # (N*14*14, 6) bf16
    h1 = h1.reshape(n, 14, 14, 6)                          # free, channels-last

    # conv2 (6->16, 5x5) + ReLU + 2x2 max-pool, fused in one kernel
    p2 = _im2col_pool_groups(h1, 5)                        # (4, N*5*5, 150)
    h2 = conv_relu_pool(p2, params["w2"], params["b2"])    # (N*5*5, 16) bf16

    # backbone fc1/fc2 + pooling(Identity) + reshape(Flatten) + classifier + scaling,
    # all fused into a single pallas_call (scale already folded into wc/bc).
    feat = h2.reshape(n, 400)                              # free, (hp, wp, c) order
    return fc_head(feat, params["wf1"], params["bf1"],
                   params["wf2"], params["bf2"],
                   params["wc"], params["bc"])             # (N, num_classes) f32


if __name__ == "__main__":
    key = jax.random.PRNGKey(0)
    pkey, xkey = jax.random.split(key)
    params = pack_params(init_params(pkey, num_classes=10))
    # MNIST-like input for LeNet5: batch=2, 1 channel, 32x32, NCHW (PyTorch convention)
    x = jax.random.normal(xkey, (2, 1, 32, 32), jnp.float32)

    fwd = jax.jit(functools.partial(network_forward, params))
    out = fwd(x)
    jax.block_until_ready(out)
    assert out.shape == (2, 10) and out.dtype == jnp.float32
    print("KERNEL_OK")
</pallas_src>

<mosaic_0001>
module attributes {stable_mosaic.version = 11 : i64} {
  func.func @_conv_relu_pool_kernel(%arg0: i32, %arg1: memref<4x392x25xbf16, #tpu.memory_space<vmem>>, %arg2: memref<25x6xbf16, #tpu.memory_space<vmem>>, %arg3: memref<1x6xf32, #tpu.memory_space<vmem>>, %arg4: memref<392x6xbf16, #tpu.memory_space<vmem>>) attributes {dimension_semantics = [#tpu.dimension_semantics<parallel>], iteration_bounds = array<i64: 1>, scalar_prefetch = 0 : i64, scratch_operands = 0 : i64, tpu.core_type = #tpu.core_type<tc>, window_params = [{transform_indices = @transform_0, window_bounds = array<i64: 4, 392, 25>}, {pipeline_mode = #tpu.pipeline_mode<synchronous>, transform_indices = @transform_1, window_bounds = array<i64: 25, 6>}, {pipeline_mode = #tpu.pipeline_mode<synchronous>, transform_indices = @transform_2, window_bounds = array<i64: 1, 6>}, {transform_indices = @transform_3, window_bounds = array<i64: 392, 6>}]} {
    %c0 = arith.constant 0 : index
    %c0_0 = arith.constant 0 : index
    %0 = vector.load %arg2[%c0, %c0_0] : memref<25x6xbf16, #tpu.memory_space<vmem>>, vector<25x6xbf16>
    %c0_1 = arith.constant 0 : index
    %c0_2 = arith.constant 0 : index
    %1 = vector.load %arg3[%c0_1, %c0_2] : memref<1x6xf32, #tpu.memory_space<vmem>>, vector<1x6xf32>
    %c0_3 = arith.constant 0 : index
    %c0_4 = arith.constant 0 : index
    %c0_5 = arith.constant 0 : index
    %2 = vector.load %arg1[%c0_3, %c0_4, %c0_5] : memref<4x392x25xbf16, #tpu.memory_space<vmem>>, vector<1x392x25xbf16>
    %3 = vector.shape_cast %2 : vector<1x392x25xbf16> to vector<392x25xbf16>
    %cst = arith.constant dense<0.000000e+00> : vector<392x6xf32>
    %4 = tpu.matmul %3, %0, %cst {dimension_numbers = #tpu.dot_dimension_numbers<[1], [0], [0], [1], [0, 0, 1, 1], [], []>} : vector<392x25xbf16>, vector<25x6xbf16>, vector<392x6xf32> -> vector<392x6xf32>
    %5 = vector.broadcast %1 : vector<1x6xf32> to vector<392x6xf32>
    %6 = arith.addf %4, %5 : vector<392x6xf32>
    %cst_6 = arith.constant 0.000000e+00 : f32
    %7 = vector.broadcast %cst_6 : f32 to vector<392x6xf32>
    %8 = arith.maximumf %6, %7 : vector<392x6xf32>
    %c1 = arith.constant 1 : index
    %c0_7 = arith.constant 0 : index
    %c0_8 = arith.constant 0 : index
    %9 = vector.load %arg1[%c1, %c0_7, %c0_8] : memref<4x392x25xbf16, #tpu.memory_space<vmem>>, vector<1x392x25xbf16>
    %10 = vector.shape_cast %9 : vector<1x392x25xbf16> to vector<392x25xbf16>
    %cst_9 = arith.constant dense<0.000000e+00> : vector<392x6xf32>
    %11 = tpu.matmul %10, %0, %cst_9 {dimension_numbers = #tpu.dot_dimension_numbers<[1], [0], [0], [1], [0, 0, 1, 1], [], []>} : vector<392x25xbf16>, vector<25x6xbf16>, vector<392x6xf32> -> vector<392x6xf32>
    %12 = vector.broadcast %1 : vector<1x6xf32> to vector<392x6xf32>
    %13 = arith.addf %11, %12 : vector<392x6xf32>
    %cst_10 = arith.constant 0.000000e+00 : f32
    %14 = vector.broadcast %cst_10 : f32 to vector<392x6xf32>
    %15 = arith.maximumf %13, %14 : vector<392x6xf32>
    %16 = arith.maximumf %8, %15 : vector<392x6xf32>
    %c2 = arith.constant 2 : index
    %c0_11 = arith.constant 0 : index
    %c0_12 = arith.constant 0 : index
    %17 = vector.load %arg1[%c2, %c0_11, %c0_12] : memref<4x392x25xbf16, #tpu.memory_space<vmem>>, vector<1x392x25xbf16>
    %18 = vector.shape_cast %17 : vector<1x392x25xbf16> to vector<392x25xbf16>
    %cst_13 = arith.constant dense<0.000000e+00> : vector<392x6xf32>
    %19 = tpu.matmul %18, %0, %cst_13 {dimension_numbers = #tpu.dot_dimension_numbers<[1], [0], [0], [1], [0, 0, 1, 1], [], []>} : vector<392x25xbf16>, vector<25x6xbf16>, vector<392x6xf32> -> vector<392x6xf32>
    %20 = vector.broadcast %1 : vector<1x6xf32> to vector<392x6xf32>
    %21 = arith.addf %19, %20 : vector<392x6xf32>
    %cst_14 = arith.constant 0.000000e+00 : f32
    %22 = vector.broadcast %cst_14 : f32 to vector<392x6xf32>
    %23 = arith.maximumf %21, %22 : vector<392x6xf32>
    %24 = arith.maximumf %16, %23 : vector<392x6xf32>
    %c3 = arith.constant 3 : index
    %c0_15 = arith.constant 0 : index
    %c0_16 = arith.constant 0 : index
    %25 = vector.load %arg1[%c3, %c0_15, %c0_16] : memref<4x392x25xbf16, #tpu.memory_space<vmem>>, vector<1x392x25xbf16>
    %26 = vector.shape_cast %25 : vector<1x392x25xbf16> to vector<392x25xbf16>
    %cst_17 = arith.constant dense<0.000000e+00> : vector<392x6xf32>
    %27 = tpu.matmul %26, %0, %cst_17 {dimension_numbers = #tpu.dot_dimension_numbers<[1], [0], [0], [1], [0, 0, 1, 1], [], []>} : vector<392x25xbf16>, vector<25x6xbf16>, vector<392x6xf32> -> vector<392x6xf32>
    %28 = vector.broadcast %1 : vector<1x6xf32> to vector<392x6xf32>
    %29 = arith.addf %27, %28 : vector<392x6xf32>
    %cst_18 = arith.constant 0.000000e+00 : f32
    %30 = vector.broadcast %cst_18 : f32 to vector<392x6xf32>
    %31 = arith.maximumf %29, %30 : vector<392x6xf32>
    %32 = arith.maximumf %24, %31 : vector<392x6xf32>
    %33 = arith.truncf %32 : vector<392x6xf32> to vector<392x6xbf16>
    %c0_19 = arith.constant 0 : index
    %c0_20 = arith.constant 0 : index
    %34 = vector.load %arg4[%c0_19, %c0_20] : memref<392x6xbf16, #tpu.memory_space<vmem>>, vector<392x6xbf16>
    tpu.vector_store %arg4[%c0_19, %c0_20], %33 {strides = array<i32>} : memref<392x6xbf16, #tpu.memory_space<vmem>>, vector<392x6xbf16>,
    return
  }
  func.func @transform_0(%arg0: i32) -> (i32, i32, i32) {
    %c0_i32 = arith.constant 0 : i32
    %c0_i32_0 = arith.constant 0 : i32
    %c0_i32_1 = arith.constant 0 : i32
    return %c0_i32, %arg0, %c0_i32_0 : i32, i32, i32
  }
  func.func @transform_1(%arg0: i32) -> (i32, i32) {
    %c0_i32 = arith.constant 0 : i32
    %c0_i32_0 = arith.constant 0 : i32
    %c0_i32_1 = arith.constant 0 : i32
    return %c0_i32, %c0_i32_0 : i32, i32
  }
  func.func @transform_2(%arg0: i32) -> (i32, i32) {
    %c0_i32 = arith.constant 0 : i32
    %c0_i32_0 = arith.constant 0 : i32
    %c0_i32_1 = arith.constant 0 : i32
    return %c0_i32, %c0_i32_0 : i32, i32
  }
  func.func @transform_3(%arg0: i32) -> (i32, i32) {
    %c0_i32 = arith.constant 0 : i32
    %c0_i32_0 = arith.constant 0 : i32
    return %arg0, %c0_i32 : i32, i32
  }
}

module attributes {stable_mosaic.version = 11 : i64} {
  func.func @_conv_relu_pool_kernel(%arg0: i32, %arg1: memref<4x56x150xbf16, #tpu.memory_space<vmem>>, %arg2: memref<150x16xbf16, #tpu.memory_space<vmem>>, %arg3: memref<1x16xf32, #tpu.memory_space<vmem>>, %arg4: memref<56x16xbf16, #tpu.memory_space<vmem>>) attributes {dimension_semantics = [#tpu.dimension_semantics<parallel>], iteration_bounds = array<i64: 1>, scalar_prefetch = 0 : i64, scratch_operands = 0 : i64, tpu.core_type = #tpu.core_type<tc>, window_params = [{transform_indices = @transform_0, window_bounds = array<i64: 4, 56, 150>}, {pipeline_mode = #tpu.pipeline_mode<synchronous>, transform_indices = @transform_1, window_bounds = array<i64: 150, 16>}, {pipeline_mode = #tpu.pipeline_mode<synchronous>, transform_indices = @transform_2, window_bounds = array<i64: 1, 16>}, {transform_indices = @transform_3, window_bounds = array<i64: 56, 16>}]} {
    %c0 = arith.constant 0 : index
    %c0_0 = arith.constant 0 : index
    %0 = vector.load %arg2[%c0, %c0_0] : memref<150x16xbf16, #tpu.memory_space<vmem>>, vector<150x16xbf16>
    %c0_1 = arith.constant 0 : index
    %c0_2 = arith.constant 0 : index
    %1 = vector.load %arg3[%c0_1, %c0_2] : memref<1x16xf32, #tpu.memory_space<vmem>>, vector<1x16xf32>
    %c0_3 = arith.constant 0 : index
    %c0_4 = arith.constant 0 : index
    %c0_5 = arith.constant 0 : index
    %2 = vector.load %arg1[%c0_3, %c0_4, %c0_5] : memref<4x56x150xbf16, #tpu.memory_space<vmem>>, vector<1x56x150xbf16>
    %3 = vector.shape_cast %2 : vector<1x56x150xbf16> to vector<56x150xbf16>
    %cst = arith.constant dense<0.000000e+00> : vector<56x16xf32>
    %4 = tpu.matmul %3, %0, %cst {dimension_numbers = #tpu.dot_dimension_numbers<[1], [0], [0], [1], [0, 0, 1, 1], [], []>} : vector<56x150xbf16>, vector<150x16xbf16>, vector<56x16xf32> -> vector<56x16xf32>
    %5 = vector.broadcast %1 : vector<1x16xf32> to vector<56x16xf32>
    %6 = arith.addf %4, %5 : vector<56x16xf32>
    %cst_6 = arith.constant 0.000000e+00 : f32
    %7 = vector.broadcast %cst_6 : f32 to vector<56x16xf32>
    %8 = arith.maximumf %6, %7 : vector<56x16xf32>
    %c1 = arith.constant 1 : index
    %c0_7 = arith.constant 0 : index
    %c0_8 = arith.constant 0 : index
    %9 = vector.load %arg1[%c1, %c0_7, %c0_8] : memref<4x56x150xbf16, #tpu.memory_space<vmem>>, vector<1x56x150xbf16>
    %10 = vector.shape_cast %9 : vector<1x56x150xbf16> to vector<56x150xbf16>
    %cst_9 = arith.constant dense<0.000000e+00> : vector<56x16xf32>
    %11 = tpu.matmul %10, %0, %cst_9 {dimension_numbers = #tpu.dot_dimension_numbers<[1], [0], [0], [1], [0, 0, 1, 1], [], []>} : vector<56x150xbf16>, vector<150x16xbf16>, vector<56x16xf32> -> vector<56x16xf32>
    %12 = vector.broadcast %1 : vector<1x16xf32> to vector<56x16xf32>
    %13 = arith.addf %11, %12 : vector<56x16xf32>
    %cst_10 = arith.constant 0.000000e+00 : f32
    %14 = vector.broadcast %cst_10 : f32 to vector<56x16xf32>
    %15 = arith.maximumf %13, %14 : vector<56x16xf32>
    %16 = arith.maximumf %8, %15 : vector<56x16xf32>
    %c2 = arith.constant 2 : index
    %c0_11 = arith.constant 0 : index
    %c0_12 = arith.constant 0 : index
    %17 = vector.load %arg1[%c2, %c0_11, %c0_12] : memref<4x56x150xbf16, #tpu.memory_space<vmem>>, vector<1x56x150xbf16>
    %18 = vector.shape_cast %17 : vector<1x56x150xbf16> to vector<56x150xbf16>
    %cst_13 = arith.constant dense<0.000000e+00> : vector<56x16xf32>
    %19 = tpu.matmul %18, %0, %cst_13 {dimension_numbers = #tpu.dot_dimension_numbers<[1], [0], [0], [1], [0, 0, 1, 1], [], []>} : vector<56x150xbf16>, vector<150x16xbf16>, vector<56x16xf32> -> vector<56x16xf32>
    %20 = vector.broadcast %1 : vector<1x16xf32> to vector<56x16xf32>
    %21 = arith.addf %19, %20 : vector<56x16xf32>
    %cst_14 = arith.constant 0.000000e+00 : f32
    %22 = vector.broadcast %cst_14 : f32 to vector<56x16xf32>
    %23 = arith.maximumf %21, %22 : vector<56x16xf32>
    %24 = arith.maximumf %16, %23 : vector<56x16xf32>
    %c3 = arith.constant 3 : index
    %c0_15 = arith.constant 0 : index
    %c0_16 = arith.constant 0 : index
    %25 = vector.load %arg1[%c3, %c0_15, %c0_16] : memref<4x56x150xbf16, #tpu.memory_space<vmem>>, vector<1x56x150xbf16>
    %26 = vector.shape_cast %25 : vector<1x56x150xbf16> to vector<56x150xbf16>
    %cst_17 = arith.constant dense<0.000000e+00> : vector<56x16xf32>
    %27 = tpu.matmul %26, %0, %cst_17 {dimension_numbers = #tpu.dot_dimension_numbers<[1], [0], [0], [1], [0, 0, 1, 1], [], []>} : vector<56x150xbf16>, vector<150x16xbf16>, vector<56x16xf32> -> vector<56x16xf32>
    %28 = vector.broadcast %1 : vector<1x16xf32> to vector<56x16xf32>
    %29 = arith.addf %27, %28 : vector<56x16xf32>
    %cst_18 = arith.constant 0.000000e+00 : f32
    %30 = vector.broadcast %cst_18 : f32 to vector<56x16xf32>
    %31 = arith.maximumf %29, %30 : vector<56x16xf32>
    %32 = arith.maximumf %24, %31 : vector<56x16xf32>
    %33 = arith.truncf %32 : vector<56x16xf32> to vector<56x16xbf16>
    %c0_19 = arith.constant 0 : index
    %c0_20 = arith.constant 0 : index
    %34 = vector.load %arg4[%c0_19, %c0_20] : memref<56x16xbf16, #tpu.memory_space<vmem>>, vector<56x16xbf16>
    tpu.vector_store %arg4[%c0_19, %c0_20], %33 {strides = array<i32>} : memref<56x16xbf16, #tpu.memory_space<vmem>>, vector<56x16xbf16>,
    return
  }
  func.func @transform_0(%arg0: i32) -> (i32, i32, i32) {
    %c0_i32 = arith.constant 0 : i32
    %c0_i32_0 = arith.constant 0 : i32
    %c0_i32_1 = arith.constant 0 : i32
    return %c0_i32, %arg0, %c0_i32_0 : i32, i32, i32
  }
  func.func @transform_1(%arg0: i32) -> (i32, i32) {
    %c0_i32 = arith.constant 0 : i32
    %c0_i32_0 = arith.constant 0 : i32
    %c0_i32_1 = arith.constant 0 : i32
    return %c0_i32, %c0_i32_0 : i32, i32
  }
  func.func @transform_2(%arg0: i32) -> (i32, i32) {
    %c0_i32 = arith.constant 0 : i32
    %c0_i32_0 = arith.constant 0 : i32
    %c0_i32_1 = arith.constant 0 : i32
    return %c0_i32, %c0_i32_0 : i32, i32
  }
  func.func @transform_3(%arg0: i32) -> (i32, i32) {
    %c0_i32 = arith.constant 0 : i32
    %c0_i32_0 = arith.constant 0 : i32
    return %arg0, %c0_i32 : i32, i32
  }
}

module attributes {stable_mosaic.version = 11 : i64} {
  func.func @_fc_tail_kernel(%arg0: i32, %arg1: memref<8x400xbf16, #tpu.memory_space<vmem>>, %arg2: memref<400x120xbf16, #tpu.memory_space<vmem>>, %arg3: memref<1x120xf32, #tpu.memory_space<vmem>>, %arg4: memref<120x84xbf16, #tpu.memory_space<vmem>>, %arg5: memref<1x84xf32, #tpu.memory_space<vmem>>, %arg6: memref<84x10xbf16, #tpu.memory_space<vmem>>, %arg7: memref<1x10xf32, #tpu.memory_space<vmem>>, %arg8: memref<8x10xf32, #tpu.memory_space<vmem>>) attributes {dimension_semantics = [#tpu.dimension_semantics<parallel>], iteration_bounds = array<i64: 1>, scalar_prefetch = 0 : i64, scratch_operands = 0 : i64, tpu.core_type = #tpu.core_type<tc>, window_params = [{transform_indices = @transform_0, window_bounds = array<i64: 8, 400>}, {pipeline_mode = #tpu.pipeline_mode<synchronous>, transform_indices = @transform_1, window_bounds = array<i64: 400, 120>}, {pipeline_mode = #tpu.pipeline_mode<synchronous>, transform_indices = @transform_2, window_bounds = array<i64: 1, 120>}, {pipeline_mode = #tpu.pipeline_mode<synchronous>, transform_indices = @transform_3, window_bounds = array<i64: 120, 84>}, {pipeline_mode = #tpu.pipeline_mode<synchronous>, transform_indices = @transform_4, window_bounds = array<i64: 1, 84>}, {pipeline_mode = #tpu.pipeline_mode<synchronous>, transform_indices = @transform_5, window_bounds = array<i64: 84, 10>}, {pipeline_mode = #tpu.pipeline_mode<synchronous>, transform_indices = @transform_6, window_bounds = array<i64: 1, 10>}, {transform_indices = @transform_7, window_bounds = array<i64: 8, 10>}]} {
    %c0 = arith.constant 0 : index
    %c0_0 = arith.constant 0 : index
    %0 = vector.load %arg1[%c0, %c0_0] : memref<8x400xbf16, #tpu.memory_space<vmem>>, vector<8x400xbf16>
    %c0_1 = arith.constant 0 : index
    %c0_2 = arith.constant 0 : index
    %1 = vector.load %arg2[%c0_1, %c0_2] : memref<400x120xbf16, #tpu.memory_space<vmem>>, vector<400x120xbf16>
    %cst = arith.constant dense<0.000000e+00> : vector<8x120xf32>
    %2 = tpu.matmul %0, %1, %cst {dimension_numbers = #tpu.dot_dimension_numbers<[1], [0], [0], [1], [0, 0, 1, 1], [], []>} : vector<8x400xbf16>, vector<400x120xbf16>, vector<8x120xf32> -> vector<8x120xf32>
    %c0_3 = arith.constant 0 : index
    %c0_4 = arith.constant 0 : index
    %3 = vector.load %arg3[%c0_3, %c0_4] : memref<1x120xf32, #tpu.memory_space<vmem>>, vector<1x120xf32>
    %4 = vector.broadcast %3 : vector<1x120xf32> to vector<8x120xf32>
    %5 = arith.addf %2, %4 : vector<8x120xf32>
    %cst_5 = arith.constant 0.000000e+00 : f32
    %6 = vector.broadcast %cst_5 : f32 to vector<8x120xf32>
    %7 = arith.maximumf %5, %6 : vector<8x120xf32>
    %8 = arith.truncf %7 : vector<8x120xf32> to vector<8x120xbf16>
    %c0_6 = arith.constant 0 : index
    %c0_7 = arith.constant 0 : index
    %9 = vector.load %arg4[%c0_6, %c0_7] : memref<120x84xbf16, #tpu.memory_space<vmem>>, vector<120x84xbf16>
    %cst_8 = arith.constant dense<0.000000e+00> : vector<8x84xf32>
    %10 = tpu.matmul %8, %9, %cst_8 {dimension_numbers = #tpu.dot_dimension_numbers<[1], [0], [0], [1], [0, 0, 1, 1], [], []>} : vector<8x120xbf16>, vector<120x84xbf16>, vector<8x84xf32> -> vector<8x84xf32>
    %c0_9 = arith.constant 0 : index
    %c0_10 = arith.constant 0 : index
    %11 = vector.load %arg5[%c0_9, %c0_10] : memref<1x84xf32, #tpu.memory_space<vmem>>, vector<1x84xf32>
    %12 = vector.broadcast %11 : vector<1x84xf32> to vector<8x84xf32>
    %13 = arith.addf %10, %12 : vector<8x84xf32>
    %cst_11 = arith.constant 0.000000e+00 : f32
    %14 = vector.broadcast %cst_11 : f32 to vector<8x84xf32>
    %15 = arith.maximumf %13, %14 : vector<8x84xf32>
    %16 = arith.truncf %15 : vector<8x84xf32> to vector<8x84xbf16>
    %c0_12 = arith.constant 0 : index
    %c0_13 = arith.constant 0 : index
    %17 = vector.load %arg6[%c0_12, %c0_13] : memref<84x10xbf16, #tpu.memory_space<vmem>>, vector<84x10xbf16>
    %cst_14 = arith.constant dense<0.000000e+00> : vector<8x10xf32>
    %18 = tpu.matmul %16, %17, %cst_14 {dimension_numbers = #tpu.dot_dimension_numbers<[1], [0], [0], [1], [0, 0, 1, 1], [], []>} : vector<8x84xbf16>, vector<84x10xbf16>, vector<8x10xf32> -> vector<8x10xf32>
    %c0_15 = arith.constant 0 : index
    %c0_16 = arith.constant 0 : index
    %19 = vector.load %arg7[%c0_15, %c0_16] : memref<1x10xf32, #tpu.memory_space<vmem>>, vector<1x10xf32>
    %20 = vector.broadcast %19 : vector<1x10xf32> to vector<8x10xf32>
    %21 = arith.addf %18, %20 : vector<8x10xf32>
    %c0_17 = arith.constant 0 : index
    %c0_18 = arith.constant 0 : index
    %22 = vector.load %arg8[%c0_17, %c0_18] : memref<8x10xf32, #tpu.memory_space<vmem>>, vector<8x10xf32>
    tpu.vector_store %arg8[%c0_17, %c0_18], %21 {strides = array<i32>} : memref<8x10xf32, #tpu.memory_space<vmem>>, vector<8x10xf32>,
    return
  }
  func.func @transform_0(%arg0: i32) -> (i32, i32) {
    %c0_i32 = arith.constant 0 : i32
    %c0_i32_0 = arith.constant 0 : i32
    return %arg0, %c0_i32 : i32, i32
  }
  func.func @transform_1(%arg0: i32) -> (i32, i32) {
    %c0_i32 = arith.constant 0 : i32
    %c0_i32_0 = arith.constant 0 : i32
    %c0_i32_1 = arith.constant 0 : i32
    return %c0_i32, %c0_i32_0 : i32, i32
  }
  func.func @transform_2(%arg0: i32) -> (i32, i32) {
    %c0_i32 = arith.constant 0 : i32
    %c0_i32_0 = arith.constant 0 : i32
    %c0_i32_1 = arith.constant 0 : i32
    return %c0_i32, %c0_i32_0 : i32, i32
  }
  func.func @transform_3(%arg0: i32) -> (i32, i32) {
    %c0_i32 = arith.constant 0 : i32
    %c0_i32_0 = arith.constant 0 : i32
    %c0_i32_1 = arith.constant 0 : i32
    return %c0_i32, %c0_i32_0 : i32, i32
  }
  func.func @transform_4(%arg0: i32) -> (i32, i32) {
    %c0_i32 = arith.constant 0 : i32
    %c0_i32_0 = arith.constant 0 : i32
    %c0_i32_1 = arith.constant 0 : i32
    return %c0_i32, %c0_i32_0 : i32, i32
  }
  func.func @transform_5(%arg0: i32) -> (i32, i32) {
    %c0_i32 = arith.constant 0 : i32
    %c0_i32_0 = arith.constant 0 : i32
    %c0_i32_1 = arith.constant 0 : i32
    return %c0_i32, %c0_i32_0 : i32, i32
  }
  func.func @transform_6(%arg0: i32) -> (i32, i32) {
    %c0_i32 = arith.constant 0 : i32
    %c0_i32_0 = arith.constant 0 : i32
    %c0_i32_1 = arith.constant 0 : i32
    return %c0_i32, %c0_i32_0 : i32, i32
  }
  func.func @transform_7(%arg0: i32) -> (i32, i32) {
    %c0_i32 = arith.constant 0 : i32
    %c0_i32_0 = arith.constant 0 : i32
    return %arg0, %c0_i32 : i32, i32
  }
}

</mosaic_0001>

<llo_original>
// kernel: network_forward.3
$region0: #{network_forward.3}
  #allocation0 [shape = 'u32[]', space=smem, size = 0x4, offset = 0x4, fixed_abs, tag = 'smem constant byte address 0x4 - core index']
  #allocation1 [shape = 'u32[144,128]{1,0:T(1,128)}', space=vmem, size = 0x12000, scoped, tag = 'internal scratch']
  %s0 = inlined_call_operand.vmem [shape: bf16[4,392,25], index: 0, kind: input, shape index: {}]
  %s1 = inlined_call_operand.vmem [shape: bf16[25,6], index: 1, kind: input, shape index: {}]
  %s2 = inlined_call_operand.vmem [shape: f32[1,6], index: 2, kind: input, shape index: {}]
  %s3 = inlined_call_operand.vmem [shape: bf16[392,6], index: 3, kind: output, shape index: {}]
  %s4 = sld [smem:[#allocation0]]
  $region22: #{network_forward.3} parent=0
    _
  %s6 = ssub.s32 1, %s4
  %s7 = scalar_select 0, %s6, %s4
  // Predicated region
  $region2: #{network_forward.3} parent=0 // pred_check
    _
  $region3: #{network_forward.3} parent=0 // pred_check_branch
    %9 = sbr.rel (0) target = $region5
  $region4: #{network_forward.3} parent=0 // pred_region
    _
  $region5: #{network_forward.3} parent=0 // pred_fallthru
    _
  // Predicated region
  $region6: #{network_forward.3} parent=0 // pred_check
    _
  $region7: #{network_forward.3} parent=0 // pred_check_branch
    %11 = sbr.rel (0) target = $region9
  $region8: #{network_forward.3} parent=0 // pred_region
    _
  $region9: #{network_forward.3} parent=0 // pred_fallthru
    _
  // Predicated region
  $region10: #{network_forward.3} parent=0 // pred_check
    _
  $region11: #{network_forward.3} parent=0 // pred_check_branch
    %13 = sbr.rel (0) target = $region13
  $region12: #{network_forward.3} parent=0 // pred_region
    _
  $region13: #{network_forward.3} parent=0 // pred_fallthru
    _
  %v15 = vld [vmem:[%s1] sm:$0xf]
  %v16 = vld [vmem:[%s1 + $0x4] sm:$0xf]
  %v17 = vld [vmem:[%s1 + $0x8] sm:$0xf]
  %v18 = vld [vmem:[%s1 + $0xc] sm:$0x1]
  %v19 = vld [vmem:[%s2] sm:$0x1]
  %v20 = vld [vmem:[%s0] sm:$0xf]
  %v21 = vld [vmem:[%s0 + $0x4] sm:$0xf]
  %v22 = vld [vmem:[%s0 + $0x8] sm:$0xf]
  %v23 = vld [vmem:[%s0 + $0xc] sm:$0xf]
  %v24 = vld [vmem:[%s0 + $0x10] sm:$0xf]
  %v25 = vld [vmem:[%s0 + $0x14] sm:$0xf]
  %v26 = vld [vmem:[%s0 + $0x18] sm:$0xf]
  %v27 = vld [vmem:[%s0 + $0x1c] sm:$0xf]
  %v28 = vld [vmem:[%s0 + $0x20] sm:$0xf]
  %v29 = vld [vmem:[%s0 + $0x24] sm:$0xf]
  %v30 = vld [vmem:[%s0 + $0x28] sm:$0xf]
  %v31 = vld [vmem:[%s0 + $0x2c] sm:$0xf]
  %v32 = vld [vmem:[%s0 + $0x30] sm:$0xf]
  %v33 = vld [vmem:[%s0 + $0x34] sm:$0xf]
  %v34 = vld [vmem:[%s0 + $0x38] sm:$0xf]
  %v35 = vld [vmem:[%s0 + $0x3c] sm:$0xf]
  %v36 = vld [vmem:[%s0 + $0x40] sm:$0xf]
  %v37 = vld [vmem:[%s0 + $0x44] sm:$0xf]
  %v38 = vld [vmem:[%s0 + $0x48] sm:$0xf]
  %v39 = vld [vmem:[%s0 + $0x4c] sm:$0xf]
  %v40 = vld [vmem:[%s0 + $0x50] sm:$0xf]
  %v41 = vld [vmem:[%s0 + $0x54] sm:$0xf]
  %v42 = vld [vmem:[%s0 + $0x58] sm:$0xf]
  %v43 = vld [vmem:[%s0 + $0x5c] sm:$0xf]
  %v44 = vld [vmem:[%s0 + $0x60] sm:$0xf]
  %v45 = vld [vmem:[%s0 + $0x64] sm:$0xf]
  %v46 = vld [vmem:[%s0 + $0x68] sm:$0xf]
  %v47 = vld [vmem:[%s0 + $0x6c] sm:$0xf]
  %v48 = vld [vmem:[%s0 + $0x70] sm:$0xf]
  %v49 = vld [vmem:[%s0 + $0x74] sm:$0xf]
  %v50 = vld [vmem:[%s0 + $0x78] sm:$0xf]
  %v51 = vld [vmem:[%s0 + $0x7c] sm:$0xf]
  %v52 = vld [vmem:[%s0 + $0x80] sm:$0xf]
  %v53 = vld [vmem:[%s0 + $0x84] sm:$0xf]
  %v54 = vld [vmem:[%s0 + $0x88] sm:$0xf]
  %v55 = vld [vmem:[%s0 + $0x8c] sm:$0xf]
  %v56 = vld [vmem:[%s0 + $0x90] sm:$0xf]
  %v57 = vld [vmem:[%s0 + $0x94] sm:$0xf]
  %v58 = vld [vmem:[%s0 + $0x98] sm:$0xf]
  %v59 = vld [vmem:[%s0 + $0x9c] sm:$0xf]
  %v60 = vld [vmem:[%s0 + $0xa0] sm:$0xf]
  %v61 = vld [vmem:[%s0 + $0xa4] sm:$0xf]
  %v62 = vld [vmem:[%s0 + $0xa8] sm:$0xf]
  %v63 = vld [vmem:[%s0 + $0xac] sm:$0xf]
  %v64 = vld [vmem:[%s0 + $0xb0] sm:$0xf]
  %v65 = vld [vmem:[%s0 + $0xb4] sm:$0xf]
  %v66 = vld [vmem:[%s0 + $0xb8] sm:$0xf]
  %v67 = vld [vmem:[%s0 + $0xbc] sm:$0xf]
  %v68 = vld [vmem:[%s0 + $0xc0] sm:$0xf]
  %v70 = vlaneseq
  %v71 = vshrl.u32 %v70, 7
  %v72 = vsub.s32 0, %v71
  %v73 = vrot.slane %v19, %v72
  %v124 = vunpack.c.l.b16 %v20
  %v125 = vunpack.c.l.b16 %v21
  %v126 = vunpack.c.l.b16 %v22
  %v127 = vunpack.c.l.b16 %v23
  %v128 = vunpack.c.l.b16 %v24
  %v129 = vunpack.c.l.b16 %v25
  %v130 = vunpack.c.l.b16 %v26
  %v131 = vunpack.c.l.b16 %v27
  %v132 = vunpack.c.l.b16 %v28
  %v133 = vunpack.c.l.b16 %v29
  %v134 = vunpack.c.l.b16 %v30
  %v135 = vunpack.c.l.b16 %v31
  %v136 = vunpack.c.l.b16 %v32
  %v137 = vunpack.c.l.b16 %v33
  %v138 = vunpack.c.l.b16 %v34
  %v139 = vunpack.c.l.b16 %v35
  %v140 = vunpack.c.l.b16 %v36
  %v141 = vunpack.c.l.b16 %v37
  %v142 = vunpack.c.l.b16 %v38
  %v143 = vunpack.c.l.b16 %v39
  %v144 = vunpack.c.l.b16 %v40
  %v145 = vunpack.c.l.b16 %v41
  %v146 = vunpack.c.l.b16 %v42
  %v147 = vunpack.c.l.b16 %v43
  %v148 = vunpack.c.l.b16 %v44
  %v149 = vunpack.c.l.b16 %v45
  %v150 = vunpack.c.l.b16 %v46
  %v151 = vunpack.c.l.b16 %v47
  %v152 = vunpack.c.l.b16 %v48
  %v153 = vunpack.c.l.b16 %v49
  %v154 = vunpack.c.l.b16 %v50
  %v155 = vunpack.c.l.b16 %v51
  %v156 = vunpack.c.l.b16 %v52
  %v157 = vunpack.c.l.b16 %v53
  %v158 = vunpack.c.l.b16 %v54
  %v159 = vunpack.c.l.b16 %v55
  %v160 = vunpack.c.l.b16 %v56
  %v161 = vunpack.c.l.b16 %v57
  %v162 = vunpack.c.l.b16 %v58
  %v163 = vunpack.c.l.b16 %v59
  %v164 = vunpack.c.l.b16 %v60
  %v165 = vunpack.c.l.b16 %v61
  %v166 = vunpack.c.l.b16 %v62
  %v167 = vunpack.c.l.b16 %v63
  %v168 = vunpack.c.l.b16 %v64
  %v169 = vunpack.c.l.b16 %v65
  %v170 = vunpack.c.l.b16 %v66
  %v171 = vunpack.c.l.b16 %v67
  %v172 = vunpack.c.l.b16 %v68
  %v173 = vpack.c.b16 %v125, %v124
  %v174 = vpack.c.b16 %v127, %v126
  %v175 = vpack.c.b16 %v129, %v128
  %v176 = vpack.c.b16 %v131, %v130
  %v177 = vpack.c.b16 %v133, %v132
  %v178 = vpack.c.b16 %v135, %v134
  %v179 = vpack.c.b16 %v137, %v136
  %v180 = vpack.c.b16 %v139, %v138
  %v181 = vpack.c.b16 %v141, %v140
  %v182 = vpack.c.b16 %v143, %v142
  %v183 = vpack.c.b16 %v145, %v144
  %v184 = vpack.c.b16 %v147, %v146
  %v185 = vpack.c.b16 %v149, %v148
  %v186 = vpack.c.b16 %v151, %v150
  %v187 = vpack.c.b16 %v153, %v152
  %v188 = vpack.c.b16 %v155, %v154
  %v189 = vpack.c.b16 %v157, %v156
  %v190 = vpack.c.b16 %v159, %v158
  %v191 = vpack.c.b16 %v161, %v160
  %v192 = vpack.c.b16 %v163, %v162
  %v193 = vpack.c.b16 %v165, %v164
  %v194 = vpack.c.b16 %v167, %v166
  %v195 = vpack.c.b16 %v169, %v168
  %v196 = vpack.c.b16 %v171, %v170
  %v197 = vpack.c.b16 %v172, %v172
  %v202 = vunpack.c.l.b16 %v15
  %v203 = vunpack.c.l.b16 %v16
  %v204 = vunpack.c.l.b16 %v17
  %v205 = vunpack.c.l.b16 %v18
  %v206 = vpack.c.b16 %v203, %v202
  %v207 = vpack.c.b16 %v205, %v204
  %vm209 = vcmask 203776
  %v211 = vsel %vm209, %v173, 0
  %v214 = vsel %vm209, %v174, 0
  %v217 = vsel %vm209, %v175, 0
  %v220 = vsel %vm209, %v176, 0
  %v223 = vsel %vm209, %v177, 0
  %v226 = vsel %vm209, %v178, 0
  %v229 = vsel %vm209, %v179, 0
  %v232 = vsel %vm209, %v180, 0
  %v235 = vsel %vm209, %v181, 0
  %v238 = vsel %vm209, %v182, 0
  %v241 = vsel %vm209, %v183, 0
  %v244 = vsel %vm209, %v184, 0
  %v247 = vsel %vm209, %v185, 0
  %v250 = vsel %vm209, %v186, 0
  %v253 = vsel %vm209, %v187, 0
  %v256 = vsel %vm209, %v188, 0
  %v259 = vsel %vm209, %v189, 0
  %v262 = vsel %vm209, %v190, 0
  %v265 = vsel %vm209, %v191, 0
  %v268 = vsel %vm209, %v192, 0
  %v271 = vsel %vm209, %v193, 0
  %v274 = vsel %vm209, %v194, 0
  %v277 = vsel %vm209, %v195, 0
  %v280 = vsel %vm209, %v196, 0
  %v283 = vsel %vm209, %v197, 0
  %vm285 = vcmask 1043456
  %vm286 = vcmask 1044480
  %v287 = vsel %vm285, 4294967295, 65535
  %v288 = vsel %vm286, %v287, 0
  %v290 = vand.u32 %v207, %v288
  %292 = vmatprep.subr.bf16.mxu0 0
  %293 = vmatpush1.bf16.msra.mxu0 %v206
  %294 = vmatprep.subr.bf16.mxu0 0
  %295 = vmatpush1.bf16.msra.mxu0 %v290
  %296 = vmatprep.subr.bf16.mxu0 0
  %297 = vmatpush1.bf16.msra.mxu0 0
  %298 = vmatprep.subr.bf16.mxu0 0
  %299 = vmatpush1.bf16.msra.mxu0 0
  %300 = vmatprep.subr.bf16.mxu0 0
  %301 = vmatpush1.bf16.msra.mxu0 0
  %302 = vmatprep.subr.bf16.mxu0 0
  %303 = vmatpush1.bf16.msra.mxu0 0
  %304 = vmatprep.subr.bf16.mxu0 0
  %305 = vmatpush1.bf16.msra.mxu0 0
  %306 = vmatprep.subr.bf16.mxu0 0
  %307 = vmatpush1.bf16.msra.mxu0 0
  %308 = vmatprep.subr.bf16.mxu0 0
  %309 = vmatpush1.bf16.msra.mxu0 0
  %310 = vmatprep.subr.bf16.mxu0 0
  %311 = vmatpush1.bf16.msra.mxu0 0
  %312 = vmatprep.subr.bf16.mxu0 0
  %313 = vmatpush1.bf16.msra.mxu0 0
  %314 = vmatprep.subr.bf16.mxu0 0
  %315 = vmatpush1.bf16.msra.mxu0 0
  %316 = vmatprep.subr.bf16.mxu0 0
  %317 = vmatpush1.bf16.msra.mxu0 0
  %318 = vmatprep.subr.bf16.mxu0 0
  %319 = vmatpush1.bf16.msra.mxu0 0
  %320 = vmatprep.subr.bf16.mxu0 0
  %321 = vmatpush1.bf16.msra.mxu0 0
  %322 = vmatprep.subr.bf16.mxu0 0
  %323 = vmatpush1.bf16.msra.mxu0 0
  %324 = vmatprep.mubr.bf16.mxu0 0
  %325 = vmatmul.mubr.bf16.gmra.mrb[0].mxu0 %v211
  %v326 = vpop.f32.mrb[0].mxu0
  %v327 = vadd.f32 %v73, %v326
  %v328 = vpop.f32.mrb[0].mxu0
  %v329 = vpop.f32.mrb[0].mxu0
  %v330 = vadd.f32 %v73, %v329
  %v331 = vpop.f32.mrb[0].mxu0
  %332 = vmatprep.mubr.bf16.mxu0 0
  %333 = vmatmul.mubr.bf16.gmra.mrb[0].mxu0 %v214
  %v334 = vpop.f32.mrb[0].mxu0
  %v335 = vadd.f32 %v73, %v334
  %v336 = vpop.f32.mrb[0].mxu0
  %v337 = vpop.f32.mrb[0].mxu0
  %v338 = vadd.f32 %v73, %v337
  %v339 = vpop.f32.mrb[0].mxu0
  %340 = vmatprep.mubr.bf16.mxu0 0
  %341 = vmatmul.mubr.bf16.gmra.mrb[0].mxu0 %v217
  %v342 = vpop.f32.mrb[0].mxu0
  %v343 = vadd.f32 %v73, %v342
  %v344 = vpop.f32.mrb[0].mxu0
  %v345 = vpop.f32.mrb[0].mxu0
  %v346 = vadd.f32 %v73, %v345
  %v347 = vpop.f32.mrb[0].mxu0
  %348 = vmatprep.mubr.bf16.mxu0 0
  %349 = vmatmul.mubr.bf16.gmra.mrb[0].mxu0 %v220
  %v350 = vpop.f32.mrb[0].mxu0
  %v351 = vadd.f32 %v73, %v350
  %v352 = vpop.f32.mrb[0].mxu0
  %v353 = vpop.f32.mrb[0].mxu0
  %v354 = vadd.f32 %v73, %v353
  %v355 = vpop.f32.mrb[0].mxu0
  %356 = vmatprep.mubr.bf16.mxu0 0
  %357 = vmatmul.mubr.bf16.gmra.mrb[0].mxu0 %v223
  %v358 = vpop.f32.mrb[0].mxu0
  %v359 = vadd.f32 %v73, %v358
  %v360 = vpop.f32.mrb[0].mxu0
  %v361 = vpop.f32.mrb[0].mxu0
  %v362 = vadd.f32 %v73, %v361
  %v363 = vpop.f32.mrb[0].mxu0
  %364 = vmatprep.mubr.bf16.mxu0 0
  %365 = vmatmul.mubr.bf16.gmra.mrb[0].mxu0 %v226
  %v366 = vpop.f32.mrb[0].mxu0
  %v367 = vadd.f32 %v73, %v366
  %v368 = vpop.f32.mrb[0].mxu0
  %v369 = vpop.f32.mrb[0].mxu0
  %v370 = vadd.f32 %v73, %v369
  %v371 = vpop.f32.mrb[0].mxu0
  %372 = vmatprep.mubr.bf16.mxu0 0
  %373 = vmatmul.mubr.bf16.gmra.mrb[0].mxu0 %v229
  %v374 = vpop.f32.mrb[0].mxu0
  %v375 = vadd.f32 %v73, %v374
  %v376 = vpop.f32.mrb[0].mxu0
  %v377 = vpop.f32.mrb[0].mxu0
  %v378 = vadd.f32 %v73, %v377
  %v379 = vpop.f32.mrb[0].mxu0
  %380 = vmatprep.mubr.bf16.mxu0 0
  %381 = vmatmul.mubr.bf16.gmra.mrb[0].mxu0 %v232
  %v382 = vpop.f32.mrb[0].mxu0
  %v383 = vadd.f32 %v73, %v382
  %v384 = vpop.f32.mrb[0].mxu0
  %v385 = vpop.f32.mrb[0].mxu0
  %v386 = vadd.f32 %v73, %v385
  %v387 = vpop.f32.mrb[0].mxu0
  %388 = vmatprep.mubr.bf16.mxu0 0
  %389 = vmatmul.mubr.bf16.gmra.mrb[0].mxu0 %v235
  %v390 = vpop.f32.mrb[0].mxu0
  %v391 = vadd.f32 %v73, %v390
  %v392 = vpop.f32.mrb[0].mxu0
  %v393 = vpop.f32.mrb[0].mxu0
  %v394 = vadd.f32 %v73, %v393
  %v395 = vpop.f32.mrb[0].mxu0
  %396 = vmatprep.mubr.bf16.mxu0 0
  %397 = vmatmul.mubr.bf16.gmra.mrb[0].mxu0 %v238
  %v398 = vpop.f32.mrb[0].mxu0
  %v399 = vadd.f32 %v73, %v398
  %v400 = vpop.f32.mrb[0].mxu0
  %v401 = vpop.f32.mrb[0].mxu0
  %v402 = vadd.f32 %v73, %v401
  %v403 = vpop.f32.mrb[0].mxu0
  %404 = vmatprep.mubr.bf16.mxu0 0
  %405 = vmatmul.mubr.bf16.gmra.mrb[0].mxu0 %v241
  %v406 = vpop.f32.mrb[0].mxu0
  %v407 = vadd.f32 %v73, %v406
  %v408 = vpop.f32.mrb[0].mxu0
  %v409 = vpop.f32.mrb[0].mxu0
  %v410 = vadd.f32 %v73, %v409
  %v411 = vpop.f32.mrb[0].mxu0
  %412 = vmatprep.mubr.bf16.mxu0 0
  %413 = vmatmul.mubr.bf16.gmra.mrb[0].mxu0 %v244
  %v414 = vpop.f32.mrb[0].mxu0
  %v415 = vadd.f32 %v73, %v414
  %v416 = vpop.f32.mrb[0].mxu0
  %v417 = vpop.f32.mrb[0].mxu0
  %v418 = vadd.f32 %v73, %v417
  %v419 = vpop.f32.mrb[0].mxu0
  %420 = vmatprep.mubr.bf16.mxu0 0
  %421 = vmatmul.mubr.bf16.gmra.mrb[0].mxu0 %v247
  %v422 = vpop.f32.mrb[0].mxu0
  %v423 = vadd.f32 %v73, %v422
  %v424 = vpop.f32.mrb[0].mxu0
  %v425 = vpop.f32.mrb[0].mxu0
  %v426 = vadd.f32 %v73, %v425
  %v427 = vpop.f32.mrb[0].mxu0
  %428 = vmatprep.mubr.bf16.mxu0 0
  %429 = vmatmul.mubr.bf16.gmra.mrb[0].mxu0 %v250
  %v430 = vpop.f32.mrb[0].mxu0
  %v431 = vadd.f32 %v73, %v430
  %v432 = vpop.f32.mrb[0].mxu0
  %v433 = vpop.f32.mrb[0].mxu0
  %v434 = vadd.f32 %v73, %v433
  %v435 = vpop.f32.mrb[0].mxu0
  %436 = vmatprep.mubr.bf16.mxu0 0
  %437 = vmatmul.mubr.bf16.gmra.mrb[0].mxu0 %v253
  %v438 = vpop.f32.mrb[0].mxu0
  %v439 = vadd.f32 %v73, %v438
  %v440 = vpop.f32.mrb[0].mxu0
  %v441 = vpop.f32.mrb[0].mxu0
  %v442 = vadd.f32 %v73, %v441
  %v443 = vpop.f32.mrb[0].mxu0
  %444 = vmatprep.mubr.bf16.mxu0 0
  %445 = vmatmul.mubr.bf16.gmra.mrb[0].mxu0 %v256
  %v446 = vpop.f32.mrb[0].mxu0
  %v447 = vadd.f32 %v73, %v446
  %v448 = vpop.f32.mrb[0].mxu0
  %v449 = vpop.f32.mrb[0].mxu0
  %v450 = vadd.f32 %v73, %v449
  %v451 = vpop.f32.mrb[0].mxu0
  %452 = vmatprep.mubr.bf16.mxu0 0
  %453 = vmatmul.mubr.bf16.gmra.mrb[0].mxu0 %v259
  %v454 = vpop.f32.mrb[0].mxu0
  %v455 = vadd.f32 %v73, %v454
  %v456 = vpop.f32.mrb[0].mxu0
  %v457 = vpop.f32.mrb[0].mxu0
  %v458 = vadd.f32 %v73, %v457
  %v459 = vpop.f32.mrb[0].mxu0
  %460 = vmatprep.mubr.bf16.mxu0 0
  %461 = vmatmul.mubr.bf16.gmra.mrb[0].mxu0 %v262
  %v462 = vpop.f32.mrb[0].mxu0
  %v463 = vadd.f32 %v73, %v462
  %v464 = vpop.f32.mrb[0].mxu0
  %v465 = vpop.f32.mrb[0].mxu0
  %v466 = vadd.f32 %v73, %v465
  %v467 = vpop.f32.mrb[0].mxu0
  %468 = vmatprep.mubr.bf16.mxu0 0
  %469 = vmatmul.mubr.bf16.gmra.mrb[0].mxu0 %v265
  %v470 = vpop.f32.mrb[0].mxu0
  %v471 = vadd.f32 %v73, %v470
  %v472 = vpop.f32.mrb[0].mxu0
  %v473 = vpop.f32.mrb[0].mxu0
  %v474 = vadd.f32 %v73, %v473
  %v475 = vpop.f32.mrb[0].mxu0
  %476 = vmatprep.mubr.bf16.mxu0 0
  %477 = vmatmul.mubr.bf16.gmra.mrb[0].mxu0 %v268
  %v478 = vpop.f32.mrb[0].mxu0
  %v479 = vadd.f32 %v73, %v478
  %v480 = vpop.f32.mrb[0].mxu0
  %v481 = vpop.f32.mrb[0].mxu0
  %v482 = vadd.f32 %v73, %v481
  %v483 = vpop.f32.mrb[0].mxu0
  %484 = vmatprep.mubr.bf16.mxu0 0
  %485 = vmatmul.mubr.bf16.gmra.mrb[0].mxu0 %v271
  %v486 = vpop.f32.mrb[0].mxu0
  %v487 = vadd.f32 %v73, %v486
  %v488 = vpop.f32.mrb[0].mxu0
  %v489 = vpop.f32.mrb[0].mxu0
  %v490 = vadd.f32 %v73, %v489
  %v491 = vpop.f32.mrb[0].mxu0
  %492 = vmatprep.mubr.bf16.mxu0 0
  %493 = vmatmul.mubr.bf16.gmra.mrb[0].mxu0 %v274
  %v494 = vpop.f32.mrb[0].mxu0
  %v495 = vadd.f32 %v73, %v494
  %v496 = vpop.f32.mrb[0].mxu0
  %v497 = vpop.f32.mrb[0].mxu0
  %v498 = vadd.f32 %v73, %v497
  %v499 = vpop.f32.mrb[0].mxu0
  %500 = vmatprep.mubr.bf16.mxu0 0
  %501 = vmatmul.mubr.bf16.gmra.mrb[0].mxu0 %v277
  %v502 = vpop.f32.mrb[0].mxu0
  %v503 = vadd.f32 %v73, %v502
  %v504 = vpop.f32.mrb[0].mxu0
  %v505 = vpop.f32.mrb[0].mxu0
  %v506 = vadd.f32 %v73, %v505
  %v507 = vpop.f32.mrb[0].mxu0
  %508 = vmatprep.mubr.bf16.mxu0 0
  %509 = vmatmul.mubr.bf16.gmra.mrb[0].mxu0 %v280
  %v510 = vpop.f32.mrb[0].mxu0
  %v511 = vadd.f32 %v73, %v510
  %v512 = vpop.f32.mrb[0].mxu0
  %v513 = vpop.f32.mrb[0].mxu0
  %v514 = vadd.f32 %v73, %v513
  %v515 = vpop.f32.mrb[0].mxu0
  %516 = vmatprep.mubr.bf16.mxu0 0
  %517 = vmatmul.mubr.bf16.gmra.mrb[0].mxu0 %v283
  %v518 = vpop.f32.mrb[0].mxu0
  %v519 = vadd.f32 %v73, %v518
  %v520 = vpop.f32.mrb[0].mxu0
  %v521 = vpop.f32.mrb[0].mxu0
  %v522 = vpop.f32.mrb[0].mxu0
  %523 = vdwg.mxu0
  %v524 = vmax.f32 %v327, 0.0
  %v525 = vmax.f32 %v330, 0.0
  %v526 = vmax.f32 %v335, 0.0
  %v527 = vmax.f32 %v338, 0.0
  %v528 = vmax.f32 %v343, 0.0
  %v529 = vmax.f32 %v346, 0.0
  %v530 = vmax.f32 %v351, 0.0
  %v531 = vmax.f32 %v354, 0.0
  %v532 = vmax.f32 %v359, 0.0
  %v533 = vmax.f32 %v362, 0.0
  %v534 = vmax.f32 %v367, 0.0
  %v535 = vmax.f32 %v370, 0.0
  %v536 = vmax.f32 %v375, 0.0
  %v537 = vmax.f32 %v378, 0.0
  %v538 = vmax.f32 %v383, 0.0
  %v539 = vmax.f32 %v386, 0.0
  %v540 = vmax.f32 %v391, 0.0
  %v541 = vmax.f32 %v394, 0.0
  %v542 = vmax.f32 %v399, 0.0
  %v543 = vmax.f32 %v402, 0.0
  %v544 = vmax.f32 %v407, 0.0
  %v545 = vmax.f32 %v410, 0.0
  %v546 = vmax.f32 %v415, 0.0
  %v547 = vmax.f32 %v418, 0.0
  %v548 = vmax.f32 %v423, 0.0
  %v549 = vmax.f32 %v426, 0.0
  %v550 = vmax.f32 %v431, 0.0
  %v551 = vmax.f32 %v434, 0.0
  %v552 = vmax.f32 %v439, 0.0
  %v553 = vmax.f32 %v442, 0.0
  %v554 = vmax.f32 %v447, 0.0
  %v555 = vmax.f32 %v450, 0.0
  %v556 = vmax.f32 %v455, 0.0
  %v557 = vmax.f32 %v458, 0.0
  %v558 = vmax.f32 %v463, 0.0
  %v559 = vmax.f32 %v466, 0.0
  %v560 = vmax.f32 %v471, 0.0
  %v561 = vmax.f32 %v474, 0.0
  %v562 = vmax.f32 %v479, 0.0
  %v563 = vmax.f32 %v482, 0.0
  %v564 = vmax.f32 %v487, 0.0
  %v565 = vmax.f32 %v490, 0.0
  %v566 = vmax.f32 %v495, 0.0
  %v567 = vmax.f32 %v498, 0.0
  %v568 = vmax.f32 %v503, 0.0
  %v569 = vmax.f32 %v506, 0.0
  %v570 = vmax.f32 %v511, 0.0
  %v571 = vmax.f32 %v514, 0.0
  %v572 = vmax.f32 %v519, 0.0
  %s573 = scalar_lea.vmem %s0, 196
  %v574 = vld [vmem:[%s573] sm:$0xf]
  %v575 = vld [vmem:[%s573 + $0x4] sm:$0xf]
  %v576 = vld [vmem:[%s573 + $0x8] sm:$0xf]
  %v577 = vld [vmem:[%s573 + $0xc] sm:$0xf]
  %v578 = vld [vmem:[%s573 + $0x10] sm:$0xf]
  %v579 = vld [vmem:[%s573 + $0x14] sm:$0xf]
  %v580 = vld [vmem:[%s573 + $0x18] sm:$0xf]
  %v581 = vld [vmem:[%s573 + $0x1c] sm:$0xf]
  %v582 = vld [vmem:[%s573 + $0x20] sm:$0xf]
  %v583 = vld [vmem:[%s573 + $0x24] sm:$0xf]
  %v584 = vld [vmem:[%s573 + $0x28] sm:$0xf]
  %v585 = vld [vmem:[%s573 + $0x2c] sm:$0xf]
  %v586 = vld [vmem:[%s573 + $0x30] sm:$0xf]
  %v587 = vld [vmem:[%s573 + $0x34] sm:$0xf]
  %v588 = vld [vmem:[%s573 + $0x38] sm:$0xf]
  %v589 = vld [vmem:[%s573 + $0x3c] sm:$0xf]
  %v590 = vld [vmem:[%s573 + $0x40] sm:$0xf]
  %v591 = vld [vmem:[%s573 + $0x44] sm:$0xf]
  %v592 = vld [vmem:[%s573 + $0x48] sm:$0xf]
  %v593 = vld [vmem:[%s573 + $0x4c] sm:$0xf]
  %v594 = vld [vmem:[%s573 + $0x50] sm:$0xf]
  %v595 = vld [vmem:[%s573 + $0x54] sm:$0xf]
  %v596 = vld [vmem:[%s573 + $0x58] sm:$0xf]
  %v597 = vld [vmem:[%s573 + $0x5c] sm:$0xf]
  %v598 = vld [vmem:[%s573 + $0x60] sm:$0xf]
  %v599 = vld [vmem:[%s573 + $0x64] sm:$0xf]
  %v600 = vld [vmem:[%s573 + $0x68] sm:$0xf]
  %v601 = vld [vmem:[%s573 + $0x6c] sm:$0xf]
  %v602 = vld [vmem:[%s573 + $0x70] sm:$0xf]
  %v603 = vld [vmem:[%s573 + $0x74] sm:$0xf]
  %v604 = vld [vmem:[%s573 + $0x78] sm:$0xf]
  %v605 = vld [vmem:[%s573 + $0x7c] sm:$0xf]
  %v606 = vld [vmem:[%s573 + $0x80] sm:$0xf]
  %v607 = vld [vmem:[%s573 + $0x84] sm:$0xf]
  %v608 = vld [vmem:[%s573 + $0x88] sm:$0xf]
  %v609 = vld [vmem:[%s573 + $0x8c] sm:$0xf]
  %v610 = vld [vmem:[%s573 + $0x90] sm:$0xf]
  %v611 = vld [vmem:[%s573 + $0x94] sm:$0xf]
  %v612 = vld [vmem:[%s573 + $0x98] sm:$0xf]
  %v613 = vld [vmem:[%s573 + $0x9c] sm:$0xf]
  %v614 = vld [vmem:[%s573 + $0xa0] sm:$0xf]
  %v615 = vld [vmem:[%s573 + $0xa4] sm:$0xf]
  %v616 = vld [vmem:[%s573 + $0xa8] sm:$0xf]
  %v617 = vld [vmem:[%s573 + $0xac] sm:$0xf]
  %v618 = vld [vmem:[%s573 + $0xb0] sm:$0xf]
  %v619 = vld [vmem:[%s573 + $0xb4] sm:$0xf]
  %v620 = vld [vmem:[%s573 + $0xb8] sm:$0xf]
  %v621 = vld [vmem:[%s573 + $0xbc] sm:$0xf]
  %v622 = vld [vmem:[%s573 + $0xc0] sm:$0xf]
  %v672 = vunpack.c.l.b16 %v574
  %v673 = vunpack.c.l.b16 %v575
  %v674 = vunpack.c.l.b16 %v576
  %v675 = vunpack.c.l.b16 %v577
  %v676 = vunpack.c.l.b16 %v578
  %v677 = vunpack.c.l.b16 %v579
  %v678 = vunpack.c.l.b16 %v580
  %v679 = vunpack.c.l.b16 %v581
  %v680 = vunpack.c.l.b16 %v582
  %v681 = vunpack.c.l.b16 %v583
  %v682 = vunpack.c.l.b16 %v584
  %v683 = vunpack.c.l.b16 %v585
  %v684 = vunpack.c.l.b16 %v586
  %v685 = vunpack.c.l.b16 %v587
  %v686 = vunpack.c.l.b16 %v588
  %v687 = vunpack.c.l.b16 %v589
  %v688 = vunpack.c.l.b16 %v590
  %v689 = vunpack.c.l.b16 %v591
  %v690 = vunpack.c.l.b16 %v592
  %v691 = vunpack.c.l.b16 %v593
  %v692 = vunpack.c.l.b16 %v594
  %v693 = vunpack.c.l.b16 %v595
  %v694 = vunpack.c.l.b16 %v596
  %v695 = vunpack.c.l.b16 %v597
  %v696 = vunpack.c.l.b16 %v598
  %v697 = vunpack.c.l.b16 %v599
  %v698 = vunpack.c.l.b16 %v600
  %v699 = vunpack.c.l.b16 %v601
  %v700 = vunpack.c.l.b16 %v602
  %v701 = vunpack.c.l.b16 %v603
  %v702 = vunpack.c.l.b16 %v604
  %v703 = vunpack.c.l.b16 %v605
  %v704 = vunpack.c.l.b16 %v606
  %v705 = vunpack.c.l.b16 %v607
  %v706 = vunpack.c.l.b16 %v608
  %v707 = vunpack.c.l.b16 %v609
  %v708 = vunpack.c.l.b16 %v610
  %v709 = vunpack.c.l.b16 %v611
  %v710 = vunpack.c.l.b16 %v612
  %v711 = vunpack.c.l.b16 %v613
  %v712 = vunpack.c.l.b16 %v614
  %v713 = vunpack.c.l.b16 %v615
  %v714 = vunpack.c.l.b16 %v616
  %v715 = vunpack.c.l.b16 %v617
  %v716 = vunpack.c.l.b16 %v618
  %v717 = vunpack.c.l.b16 %v619
  %v718 = vunpack.c.l.b16 %v620
  %v719 = vunpack.c.l.b16 %v621
  %v720 = vunpack.c.l.b16 %v622
  %v721 = vpack.c.b16 %v673, %v672
  %v722 = vpack.c.b16 %v675, %v674
  %v723 = vpack.c.b16 %v677, %v676
  %v724 = vpack.c.b16 %v679, %v678
  %v725 = vpack.c.b16 %v681, %v680
  %v726 = vpack.c.b16 %v683, %v682
  %v727 = vpack.c.b16 %v685, %v684
  %v728 = vpack.c.b16 %v687, %v686
  %v729 = vpack.c.b16 %v689, %v688
  %v730 = vpack.c.b16 %v691, %v690
  %v731 = vpack.c.b16 %v693, %v692
  %v732 = vpack.c.b16 %v695, %v694
  %v733 = vpack.c.b16 %v697, %v696
  %v734 = vpack.c.b16 %v699, %v698
  %v735 = vpack.c.b16 %v701, %v700
  %v736 = vpack.c.b16 %v703, %v702
  %v737 = vpack.c.b16 %v705, %v704
  %v738 = vpack.c.b16 %v707, %v706
  %v739 = vpack.c.b16 %v709, %v708
  %v740 = vpack.c.b16 %v711, %v710
  %v741 = vpack.c.b16 %v713, %v712
  %v742 = vpack.c.b16 %v715, %v714
  %v743 = vpack.c.b16 %v717, %v716
  %v744 = vpack.c.b16 %v719, %v718
  %v745 = vpack.c.b16 %v720, %v720
  %v747 = vsel %vm209, %v721, 0
  %v750 = vsel %vm209, %v722, 0
  %v753 = vsel %vm209, %v723, 0
  %v756 = vsel %vm209, %v724, 0
  %v759 = vsel %vm209, %v725, 0
  %v762 = vsel %vm209, %v726, 0
  %v765 = vsel %vm209, %v727, 0
  %v768 = vsel %vm209, %v728, 0
  %v771 = vsel %vm209, %v729, 0
  %v774 = vsel %vm209, %v730, 0
  %v777 = vsel %vm209, %v731, 0
  %v780 = vsel %vm209, %v732, 0
  %v783 = vsel %vm209, %v733, 0
  %v786 = vsel %vm209, %v734, 0
  %v789 = vsel %vm209, %v735, 0
  %v792 = vsel %vm209, %v736, 0
  %v795 = vsel %vm209, %v737, 0
  %v798 = vsel %vm209, %v738, 0
  %v801 = vsel %vm209, %v739, 0
  %v804 = vsel %vm209, %v740, 0
  %v807 = vsel %vm209, %v741, 0
  %v810 = vsel %vm209, %v742, 0
  %v813 = vsel %vm209, %v743, 0
  %v816 = vsel %vm209, %v744, 0
  %v819 = vsel %vm209, %v745, 0
  %821 = vmatprep.subr.bf16.mxu0 0
  %822 = vmatpush1.bf16.msra.mxu0 %v206
  %823 = vmatprep.subr.bf16.mxu0 0
  %824 = vmatpush1.bf16.msra.mxu0 %v290
  %825 = vmatprep.subr.bf16.mxu0 0
  %826 = vmatpush1.bf16.msra.mxu0 0
  %827 = vmatprep.subr.bf16.mxu0 0
  %828 = vmatpush1.bf16.msra.mxu0 0
  %829 = vmatprep.subr.bf16.mxu0 0
  %830 = vmatpush1.bf16.msra.mxu0 0
  %831 = vmatprep.subr.bf16.mxu0 0
  %832 = vmatpush1.bf16.msra.mxu0 0
  %833 = vmatprep.subr.bf16.mxu0 0
  %834 = vmatpush1.bf16.msra.mxu0 0
  %835 = vmatprep.subr.bf16.mxu0 0
  %836 = vmatpush1.bf16.msra.mxu0 0
  %837 = vmatprep.subr.bf16.mxu0 0
  %838 = vmatpush1.bf16.msra.mxu0 0
  %839 = vmatprep.subr.bf16.mxu0 0
  %840 = vmatpush1.bf16.msra.mxu0 0
  %841 = vmatprep.subr.bf16.mxu0 0
  %842 = vmatpush1.bf16.msra.mxu0 0
  %843 = vmatprep.subr.bf16.mxu0 0
  %844 = vmatpush1.bf16.msra.mxu0 0
  %845 = vmatprep.subr.bf16.mxu0 0
  %846 = vmatpush1.bf16.msra.mxu0 0
  %847 = vmatprep.subr.bf16.mxu0 0
  %848 = vmatpush1.bf16.msra.mxu0 0
  %849 = vmatprep.subr.bf16.mxu0 0
  %850 = vmatpush1.bf16.msra.mxu0 0
  %851 = vmatprep.subr.bf16.mxu0 0
  %852 = vmatpush1.bf16.msra.mxu0 0
  %853 = vmatprep.mubr.bf16.mxu0 0
  %854 = vmatmul.mubr.bf16.gmra.mrb[0].mxu0 %v747
  %v855 = vpop.f32.mrb[0].mxu0
  %v856 = vadd.f32 %v73, %v855
  %v857 = vpop.f32.mrb[0].mxu0
  %v858 = vpop.f32.mrb[0].mxu0
  %v859 = vadd.f32 %v73, %v858
  %v860 = vpop.f32.mrb[0].mxu0
  %861 = vmatprep.mubr.bf16.mxu0 0
  %862 = vmatmul.mubr.bf16.gmra.mrb[0].mxu0 %v750
  %v863 = vpop.f32.mrb[0].mxu0
  %v864 = vadd.f32 %v73, %v863
  %v865 = vpop.f32.mrb[0].mxu0
  %v866 = vpop.f32.mrb[0].mxu0
  %v867 = vadd.f32 %v73, %v866
  %v868 = vpop.f32.mrb[0].mxu0
  %869 = vmatprep.mubr.bf16.mxu0 0
  %870 = vmatmul.mubr.bf16.gmra.mrb[0].mxu0 %v753
  %v871 = vpop.f32.mrb[0].mxu0
  %v872 = vadd.f32 %v73, %v871
  %v873 = vpop.f32.mrb[0].mxu0
  %v874 = vpop.f32.mrb[0].mxu0
  %v875 = vadd.f32 %v73, %v874
  %v876 = vpop.f32.mrb[0].mxu0
  %877 = vmatprep.mubr.bf16.mxu0 0
  %878 = vmatmul.mubr.bf16.gmra.mrb[0].mxu0 %v756
  %v879 = vpop.f32.mrb[0].mxu0
  %v880 = vadd.f32 %v73, %v879
  %v881 = vpop.f32.mrb[0].mxu0
  %v882 = vpop.f32.mrb[0].mxu0
  %v883 = vadd.f32 %v73, %v882
  %v884 = vpop.f32.mrb[0].mxu0
  %885 = vmatprep.mubr.bf16.mxu0 0
  %886 = vmatmul.mubr.bf16.gmra.mrb[0].mxu0 %v759
  %v887 = vpop.f32.mrb[0].mxu0
  %v888 = vadd.f32 %v73, %v887
  %v889 = vpop.f32.mrb[0].mxu0
  %v890 = vpop.f32.mrb[0].mxu0
  %v891 = vadd.f32 %v73, %v890
  %v892 = vpop.f32.mrb[0].mxu0
  %893 = vmatprep.mubr.bf16.mxu0 0
  %894 = vmatmul.mubr.bf16.gmra.mrb[0].mxu0 %v762
  %v895 = vpop.f32.mrb[0].mxu0
  %v896 = vadd.f32 %v73, %v895
  %v897 = vpop.f32.mrb[0].mxu0
  %v898 = vpop.f32.mrb[0].mxu0
  %v899 = vadd.f32 %v73, %v898
  %v900 = vpop.f32.mrb[0].mxu0
  %901 = vmatprep.mubr.bf16.mxu0 0
  %902 = vmatmul.mubr.bf16.gmra.mrb[0].mxu0 %v765
  %v903 = vpop.f32.mrb[0].mxu0
  %v904 = vadd.f32 %v73, %v903
  %v905 = vpop.f32.mrb[0].mxu0
  %v906 = vpop.f32.mrb[0].mxu0
  %v907 = vadd.f32 %v73, %v906
  %v908 = vpop.f32.mrb[0].mxu0
  %909 = vmatprep.mubr.bf16.mxu0 0
  %910 = vmatmul.mubr.bf16.gmra.mrb[0].mxu0 %v768
  %v911 = vpop.f32.mrb[0].mxu0
  %v912 = vadd.f32 %v73, %v911
  %v913 = vpop.f32.mrb[0].mxu0
  %v914 = vpop.f32.mrb[0].mxu0
  %v915 = vadd.f32 %v73, %v914
  %v916 = vpop.f32.mrb[0].mxu0
  %917 = vmatprep.mubr.bf16.mxu0 0
  %918 = vmatmul.mubr.bf16.gmra.mrb[0].mxu0 %v771
  %v919 = vpop.f32.mrb[0].mxu0
  %v920 = vadd.f32 %v73, %v919
  %v921 = vpop.f32.mrb[0].mxu0
  %v922 = vpop.f32.mrb[0].mxu0
  %v923 = vadd.f32 %v73, %v922
  %v924 = vpop.f32.mrb[0].mxu0
  %925 = vmatprep.mubr.bf16.mxu0 0
  %926 = vmatmul.mubr.bf16.gmra.mrb[0].mxu0 %v774
  %v927 = vpop.f32.mrb[0].mxu0
  %v928 = vadd.f32 %v73, %v927
  %v929 = vpop.f32.mrb[0].mxu0
  %v930 = vpop.f32.mrb[0].mxu0
  %v931 = vadd.f32 %v73, %v930
  %v932 = vpop.f32.mrb[0].mxu0
  %933 = vmatprep.mubr.bf16.mxu0 0
  %934 = vmatmul.mubr.bf16.gmra.mrb[0].mxu0 %v777
  %v935 = vpop.f32.mrb[0].mxu0
  %v936 = vadd.f32 %v73, %v935
  %v937 = vpop.f32.mrb[0].mxu0
  %v938 = vpop.f32.mrb[0].mxu0
  %v939 = vadd.f32 %v73, %v938
  %v940 = vpop.f32.mrb[0].mxu0
  %941 = vmatprep.mubr.bf16.mxu0 0
  %942 = vmatmul.mubr.bf16.gmra.mrb[0].mxu0 %v780
  %v943 = vpop.f32.mrb[0].mxu0
  %v944 = vadd.f32 %v73, %v943
  %v945 = vpop.f32.mrb[0].mxu0
  %v946 = vpop.f32.mrb[0].mxu0
  %v947 = vadd.f32 %v73, %v946
  %v948 = vpop.f32.mrb[0].mxu0
  %949 = vmatprep.mubr.bf16.mxu0 0
  %950 = vmatmul.mubr.bf16.gmra.mrb[0].mxu0 %v783
  %v951 = vpop.f32.mrb[0].mxu0
  %v952 = vadd.f32 %v73, %v951
  %v953 = vpop.f32.mrb[0].mxu0
  %v954 = vpop.f32.mrb[0].mxu0
  %v955 = vadd.f32 %v73, %v954
  %v956 = vpop.f32.mrb[0].mxu0
  %957 = vmatprep.mubr.bf16.mxu0 0
  %958 = vmatmul.mubr.bf16.gmra.mrb[0].mxu0 %v786
  %v959 = vpop.f32.mrb[0].mxu0
  %v960 = vadd.f32 %v73, %v959
  %v961 = vpop.f32.mrb[0].mxu0
  %v962 = vpop.f32.mrb[0].mxu0
  %v963 = vadd.f32 %v73, %v962
  %v964 = vpop.f32.mrb[0].mxu0
  %965 = vmatprep.mubr.bf16.mxu0 0
  %966 = vmatmul.mubr.bf16.gmra.mrb[0].mxu0 %v789
  %v967 = vpop.f32.mrb[0].mxu0
  %v968 = vadd.f32 %v73, %v967
  %v969 = vpop.f32.mrb[0].mxu0
  %v970 = vpop.f32.mrb[0].mxu0
  %v971 = vadd.f32 %v73, %v970
  %v972 = vpop.f32.mrb[0].mxu0
  %973 = vmatprep.mubr.bf16.mxu0 0
  %974 = vmatmul.mubr.bf16.gmra.mrb[0].mxu0 %v792
  %v975 = vpop.f32.mrb[0].mxu0
  %v976 = vadd.f32 %v73, %v975
  %v977 = vpop.f32.mrb[0].mxu0
  %v978 = vpop.f32.mrb[0].mxu0
  %v979 = vadd.f32 %v73, %v978
  %v980 = vpop.f32.mrb[0].mxu0
  %981 = vmatprep.mubr.bf16.mxu0 0
  %982 = vmatmul.mubr.bf16.gmra.mrb[0].mxu0 %v795
  %v983 = vpop.f32.mrb[0].mxu0
  %v984 = vadd.f32 %v73, %v983
  %v985 = vpop.f32.mrb[0].mxu0
  %v986 = vpop.f32.mrb[0].mxu0
  %v987 = vadd.f32 %v73, %v986
  %v988 = vpop.f32.mrb[0].mxu0
  %989 = vmatprep.mubr.bf16.mxu0 0
  %990 = vmatmul.mubr.bf16.gmra.mrb[0].mxu0 %v798
  %v991 = vpop.f32.mrb[0].mxu0
  %v992 = vadd.f32 %v73, %v991
  %v993 = vpop.f32.mrb[0].mxu0
  %v994 = vpop.f32.mrb[0].mxu0
  %v995 = vadd.f32 %v73, %v994
  %v996 = vpop.f32.mrb[0].mxu0
  %997 = vmatprep.mubr.bf16.mxu0 0
  %998 = vmatmul.mubr.bf16.gmra.mrb[0].mxu0 %v801
  %v999 = vpop.f32.mrb[0].mxu0
  %v1000 = vadd.f32 %v73, %v999
  %v1001 = vpop.f32.mrb[0].mxu0
  %v1002 = vpop.f32.mrb[0].mxu0
  %v1003 = vadd.f32 %v73, %v1002
  %v1004 = vpop.f32.mrb[0].mxu0
  %1005 = vmatprep.mubr.bf16.mxu0 0
  %1006 = vmatmul.mubr.bf16.gmra.mrb[0].mxu0 %v804
  %v1007 = vpop.f32.mrb[0].mxu0
  %v1008 = vadd.f32 %v73, %v1007
  %v1009 = vpop.f32.mrb[0].mxu0
  %v1010 = vpop.f32.mrb[0].mxu0
  %v1011 = vadd.f32 %v73, %v1010
  %v1012 = vpop.f32.mrb[0].mxu0
  %1013 = vmatprep.mubr.bf16.mxu0 0
  %1014 = vmatmul.mubr.bf16.gmra.mrb[0].mxu0 %v807
  %v1015 = vpop.f32.mrb[0].mxu0
  %v1016 = vadd.f32 %v73, %v1015
  %v1017 = vpop.f32.mrb[0].mxu0
  %v1018 = vpop.f32.mrb[0].mxu0
  %v1019 = vadd.f32 %v73, %v1018
  %v1020 = vpop.f32.mrb[0].mxu0
  %1021 = vmatprep.mubr.bf16.mxu0 0
  %1022 = vmatmul.mubr.bf16.gmra.mrb[0].mxu0 %v810
  %v1023 = vpop.f32.mrb[0].mxu0
  %v1024 = vadd.f32 %v73, %v1023
  %v1025 = vpop.f32.mrb[0].mxu0
  %v1026 = vpop.f32.mrb[0].mxu0
  %v1027 = vadd.f32 %v73, %v1026
  %v1028 = vpop.f32.mrb[0].mxu0
  %1029 = vmatprep.mubr.bf16.mxu0 0
  %1030 = vmatmul.mubr.bf16.gmra.mrb[0].mxu0 %v813
  %v1031 = vpop.f32.mrb[0].mxu0
  %v1032 = vadd.f32 %v73, %v1031
  %v1033 = vpop.f32.mrb[0].mxu0
  %v1034 = vpop.f32.mrb[0].mxu0
  %v1035 = vadd.f32 %v73, %v1034
  %v1036 = vpop.f32.mrb[0].mxu0
  %1037 = vmatprep.mubr.bf16.mxu0 0
  %1038 = vmatmul.mubr.bf16.gmra.mrb[0].mxu0 %v816
  %v1039 = vpop.f32.mrb[0].mxu0
  %v1040 = vadd.f32 %v73, %v1039
  %v1041 = vpop.f32.mrb[0].mxu0
  %v1042 = vpop.f32.mrb[0].mxu0
  %v1043 = vadd.f32 %v73, %v1042
  %v1044 = vpop.f32.mrb[0].mxu0
  %1045 = vmatprep.mubr.bf16.mxu0 0
  %1046 = vmatmul.mubr.bf16.gmra.mrb[0].mxu0 %v819
  %v1047 = vpop.f32.mrb[0].mxu0
  %v1048 = vadd.f32 %v73, %v1047
  %v1049 = vpop.f32.mrb[0].mxu0
  %v1050 = vpop.f32.mrb[0].mxu0
  %v1051 = vpop.f32.mrb[0].mxu0
  %1052 = vdwg.mxu0
  %v1053 = vmax.f32 %v856, 0.0
  %v1054 = vmax.f32 %v859, 0.0
  %v1055 = vmax.f32 %v864, 0.0
  %v1056 = vmax.f32 %v867, 0.0
  %v1057 = vmax.f32 %v872, 0.0
  %v1058 = vmax.f32 %v875, 0.0
  %v1059 = vmax.f32 %v880, 0.0
  %v1060 = vmax.f32 %v883, 0.0
  %v1061 = vmax.f32 %v888, 0.0
  %v1062 = vmax.f32 %v891, 0.0
  %v1063 = vmax.f32 %v896, 0.0
  %v1064 = vmax.f32 %v899, 0.0
  %v1065 = vmax.f32 %v904, 0.0
  %v1066 = vmax.f32 %v907, 0.0
  %v1067 = vmax.f32 %v912, 0.0
  %v1068 = vmax.f32 %v915, 0.0
  %v1069 = vmax.f32 %v920, 0.0
  %v1070 = vmax.f32 %v923, 0.0
  %v1071 = vmax.f32 %v928, 0.0
  %v1072 = vmax.f32 %v931, 0.0
  %v1073 = vmax.f32 %v936, 0.0
  %v1074 = vmax.f32 %v939, 0.0
  %v1075 = vmax.f32 %v944, 0.0
  %v1076 = vmax.f32 %v947, 0.0
  %v1077 = vmax.f32 %v952, 0.0
  %v1078 = vmax.f32 %v955, 0.0
  %v1079 = vmax.f32 %v960, 0.0
  %v1080 = vmax.f32 %v963, 0.0
  %v1081 = vmax.f32 %v968, 0.0
  %v1082 = vmax.f32 %v971, 0.0
  %v1083 = vmax.f32 %v976, 0.0
  %v1084 = vmax.f32 %v979, 0.0
  %v1085 = vmax.f32 %v984, 0.0
  %v1086 = vmax.f32 %v987, 0.0
  %v1087 = vmax.f32 %v992, 0.0
  %v1088 = vmax.f32 %v995, 0.0
  %v1089 = vmax.f32 %v1000, 0.0
  %v1090 = vmax.f32 %v1003, 0.0
  %v1091 = vmax.f32 %v1008, 0.0
  %v1092 = vmax.f32 %v1011, 0.0
  %v1093 = vmax.f32 %v1016, 0.0
  %v1094 = vmax.f32 %v1019, 0.0
  %v1095 = vmax.f32 %v1024, 0.0
  %v1096 = vmax.f32 %v1027, 0.0
  %v1097 = vmax.f32 %v1032, 0.0
  %v1098 = vmax.f32 %v1035, 0.0
  %v1099 = vmax.f32 %v1040, 0.0
  %v1100 = vmax.f32 %v1043, 0.0
  %v1101 = vmax.f32 %v1048, 0.0
  %v1102 = vmax.f32 %v524, %v1053
  %v1103 = vmax.f32 %v525, %v1054
  %v1104 = vmax.f32 %v526, %v1055
  %v1105 = vmax.f32 %v527, %v1056
  %v1106 = vmax.f32 %v528, %v1057
  %v1107 = vmax.f32 %v529, %v1058
  %v1108 = vmax.f32 %v530, %v1059
  %v1109 = vmax.f32 %v531, %v1060
  %v1110 = vmax.f32 %v532, %v1061
  %v1111 = vmax.f32 %v533, %v1062
  %v1112 = vmax.f32 %v534, %v1063
  %v1113 = vmax.f32 %v535, %v1064
  %v1114 = vmax.f32 %v536, %v1065
  %v1115 = vmax.f32 %v537, %v1066
  %v1116 = vmax.f32 %v538, %v1067
  %v1117 = vmax.f32 %v539, %v1068
  %v1118 = vmax.f32 %v540, %v1069
  %v1119 = vmax.f32 %v541, %v1070
  %v1120 = vmax.f32 %v542, %v1071
  %v1121 = vmax.f32 %v543, %v1072
  %v1122 = vmax.f32 %v544, %v1073
  %v1123 = vmax.f32 %v545, %v1074
  %v1124 = vmax.f32 %v546, %v1075
  %v1125 = vmax.f32 %v547, %v1076
  %v1126 = vmax.f32 %v548, %v1077
  %v1127 = vmax.f32 %v549, %v1078
  %v1128 = vmax.f32 %v550, %v1079
  %v1129 = vmax.f32 %v551, %v1080
  %v1130 = vmax.f32 %v552, %v1081
  %v1131 = vmax.f32 %v553, %v1082
  %v1132 = vmax.f32 %v554, %v1083
  %v1133 = vmax.f32 %v555, %v1084
  %v1134 = vmax.f32 %v556, %v1085
  %v1135 = vmax.f32 %v557, %v1086
  %v1136 = vmax.f32 %v558, %v1087
  %v1137 = vmax.f32 %v559, %v1088
  %v1138 = vmax.f32 %v560, %v1089
  %v1139 = vmax.f32 %v561, %v1090
  %v1140 = vmax.f32 %v562, %v1091
  %v1141 = vmax.f32 %v563, %v1092
  %v1142 = vmax.f32 %v564, %v1093
  %v1143 = vmax.f32 %v565, %v1094
  %v1144 = vmax.f32 %v566, %v1095
  %v1145 = vmax.f32 %v567, %v1096
  %v1146 = vmax.f32 %v568, %v1097
  %v1147 = vmax.f32 %v569, %v1098
  %v1148 = vmax.f32 %v570, %v1099
  %v1149 = vmax.f32 %v571, %v1100
  %v1150 = vmax.f32 %v572, %v1101
  %s1151 = scalar_lea.vmem %s0, 392
  %v1152 = vld [vmem:[%s1151] sm:$0xf]
  %v1153 = vld [vmem:[%s1151 + $0x4] sm:$0xf]
  %v1154 = vld [vmem:[%s1151 + $0x8] sm:$0xf]
  %v1155 = vld [vmem:[%s1151 + $0xc] sm:$0xf]
  %v1156 = vld [vmem:[%s1151 + $0x10] sm:$0xf]
  %v1157 = vld [vmem:[%s1151 + $0x14] sm:$0xf]
  %v1158 = vld [vmem:[%s1151 + $0x18] sm:$0xf]
  %v1159 = vld [vmem:[%s1151 + $0x1c] sm:$0xf]
  %v1160 = vld [vmem:[%s1151 + $0x20] sm:$0xf]
  %v1161 = vld [vmem:[%s1151 + $0x24] sm:$0xf]
  %v1162 = vld [vmem:[%s1151 + $0x28] sm:$0xf]
  %v1163 = vld [vmem:[%s1151 + $0x2c] sm:$0xf]
  %v1164 = vld [vmem:[%s1151 + $0x30] sm:$0xf]
  %v1165 = vld [vmem:[%s1151 + $0x34] sm:$0xf]
  %v1166 = vld [vmem:[%s1151 + $0x38] sm:$0xf]
  %v1167 = vld [vmem:[%s1151 + $0x3c] sm:$0xf]
  %v1168 = vld [vmem:[%s1151 + $0x40] sm:$0xf]
  %v1169 = vld [vmem:[%s1151 + $0x44] sm:$0xf]
  %v1170 = vld [vmem:[%s1151 + $0x48] sm:$0xf]
  %v1171 = vld [vmem:[%s1151 + $0x4c] sm:$0xf]
  %v1172 = vld [vmem:[%s1151 + $0x50] sm:$0xf]
  %v1173 = vld [vmem:[%s1151 + $0x54] sm:$0xf]
  %v1174 = vld [vmem:[%s1151 + $0x58] sm:$0xf]
  %v1175 = vld [vmem:[%s1151 + $0x5c] sm:$0xf]
  %v1176 = vld [vmem:[%s1151 + $0x60] sm:$0xf]
  %v1177 = vld [vmem:[%s1151 + $0x64] sm:$0xf]
  %v1178 = vld [vmem:[%s1151 + $0x68] sm:$0xf]
  %v1179 = vld [vmem:[%s1151 + $0x6c] sm:$0xf]
  %v1180 = vld [vmem:[%s1151 + $0x70] sm:$0xf]
  %v1181 = vld [vmem:[%s1151 + $0x74] sm:$0xf]
  %v1182 = vld [vmem:[%s1151 + $0x78] sm:$0xf]
  %v1183 = vld [vmem:[%s1151 + $0x7c] sm:$0xf]
  %v1184 = vld [vmem:[%s1151 + $0x80] sm:$0xf]
  %v1185 = vld [vmem:[%s1151 + $0x84] sm:$0xf]
  %v1186 = vld [vmem:[%s1151 + $0x88] sm:$0xf]
  %v1187 = vld [vmem:[%s1151 + $0x8c] sm:$0xf]
  %v1188 = vld [vmem:[%s1151 + $0x90] sm:$0xf]
  %v1189 = vld [vmem:[%s1151 + $0x94] sm:$0xf]
  %v1190 = vld [vmem:[%s1151 + $0x98] sm:$0xf]
  %v1191 = vld [vmem:[%s1151 + $0x9c] sm:$0xf]
  %v1192 = vld [vmem:[%s1151 + $0xa0] sm:$0xf]
  %v1193 = vld [vmem:[%s1151 + $0xa4] sm:$0xf]
  %v1194 = vld [vmem:[%s1151 + $0xa8] sm:$0xf]
  %v1195 = vld [vmem:[%s1151 + $0xac] sm:$0xf]
  %v1196 = vld [vmem:[%s1151 + $0xb0] sm:$0xf]
  %v1197 = vld [vmem:[%s1151 + $0xb4] sm:$0xf]
  %v1198 = vld [vmem:[%s1151 + $0xb8] sm:$0xf]
  %v1199 = vld [vmem:[%s1151 + $0xbc] sm:$0xf]
  %v1200 = vld [vmem:[%s1151 + $0xc0] sm:$0xf]
  %v1250 = vunpack.c.l.b16 %v1152
  %v1251 = vunpack.c.l.b16 %v1153
  %v1252 = vunpack.c.l.b16 %v1154
  %v1253 = vunpack.c.l.b16 %v1155
  %v1254 = vunpack.c.l.b16 %v1156
  %v1255 = vunpack.c.l.b16 %v1157
  %v1256 = vunpack.c.l.b16 %v1158
  %v1257 = vunpack.c.l.b16 %v1159
  %v1258 = vunpack.c.l.b16 %v1160
  %v1259 = vunpack.c.l.b16 %v1161
  %v1260 = vunpack.c.l.b16 %v1162
  %v1261 = vunpack.c.l.b16 %v1163
  %v1262 = vunpack.c.l.b16 %v1164
  %v1263 = vunpack.c.l.b16 %v1165
  %v1264 = vunpack.c.l.b16 %v1166
  %v1265 = vunpack.c.l.b16 %v1167
  %v1266 = vunpack.c.l.b16 %v1168
  %v1267 = vunpack.c.l.b16 %v1169
  %v1268 = vunpack.c.l.b16 %v1170
  %v1269 = vunpack.c.l.b16 %v1171
  %v1270 = vunpack.c.l.b16 %v1172
  %v1271 = vunpack.c.l.b16 %v1173
  %v1272 = vunpack.c.l.b16 %v1174
  %v1273 = vunpack.c.l.b16 %v1175
  %v1274 = vunpack.c.l.b16 %v1176
  %v1275 = vunpack.c.l.b16 %v1177
  %v1276 = vunpack.c.l.b16 %v1178
  %v1277 = vunpack.c.l.b16 %v1179
  %v1278 = vunpack.c.l.b16 %v1180
  %v1279 = vunpack.c.l.b16 %v1181
  %v1280 = vunpack.c.l.b16 %v1182
  %v1281 = vunpack.c.l.b16 %v1183
  %v1282 = vunpack.c.l.b16 %v1184
  %v1283 = vunpack.c.l.b16 %v1185
  %v1284 = vunpack.c.l.b16 %v1186
  %v1285 = vunpack.c.l.b16 %v1187
  %v1286 = vunpack.c.l.b16 %v1188
  %v1287 = vunpack.c.l.b16 %v1189
  %v1288 = vunpack.c.l.b16 %v1190
  %v1289 = vunpack.c.l.b16 %v1191
  %v1290 = vunpack.c.l.b16 %v1192
  %v1291 = vunpack.c.l.b16 %v1193
  %v1292 = vunpack.c.l.b16 %v1194
  %v1293 = vunpack.c.l.b16 %v1195
  %v1294 = vunpack.c.l.b16 %v1196
  %v1295 = vunpack.c.l.b16 %v1197
  %v1296 = vunpack.c.l.b16 %v1198
  %v1297 = vunpack.c.l.b16 %v1199
  %v1298 = vunpack.c.l.b16 %v1200
  %v1299 = vpack.c.b16 %v1251, %v1250
  %v1300 = vpack.c.b16 %v1253, %v1252
  %v1301 = vpack.c.b16 %v1255, %v1254
  %v1302 = vpack.c.b16 %v1257, %v1256
  %v1303 = vpack.c.b16 %v1259, %v1258
  %v1304 = vpack.c.b16 %v1261, %v1260
  %v1305 = vpack.c.b16 %v1263, %v1262
  %v1306 = vpack.c.b16 %v1265, %v1264
  %v1307 = vpack.c.b16 %v1267, %v1266
  %v1308 = vpack.c.b16 %v1269, %v1268
  %v1309 = vpack.c.b16 %v1271, %v1270
  %v1310 = vpack.c.b16 %v1273, %v1272
  %v1311 = vpack.c.b16 %v1275, %v1274
  %v1312 = vpack.c.b16 %v1277, %v1276
  %v1313 = vpack.c.b16 %v1279, %v1278
  %v1314 = vpack.c.b16 %v1281, %v1280
  %v1315 = vpack.c.b16 %v1283, %v1282
  %v1316 = vpack.c.b16 %v1285, %v1284
  %v1317 = vpack.c.b16 %v1287, %v1286
  %v1318 = vpack.c.b16 %v1289, %v1288
  %v1319 = vpack.c.b16 %v1291, %v1290
  %v1320 = vpack.c.b16 %v1293, %v1292
  %v1321 = vpack.c.b16 %v1295, %v1294
  %v1322 = vpack.c.b16 %v1297, %v1296
  %v1323 = vpack.c.b16 %v1298, %v1298
  %v1325 = vsel %vm209, %v1299, 0
  %v1328 = vsel %vm209, %v1300, 0
  %v1331 = vsel %vm209, %v1301, 0
  %v1334 = vsel %vm209, %v1302, 0
  %v1337 = vsel %vm209, %v1303, 0
  %v1340 = vsel %vm209, %v1304, 0
  %v1343 = vsel %vm209, %v1305, 0
  %v1346 = vsel %vm209, %v1306, 0
  %v1349 = vsel %vm209, %v1307, 0
  %v1352 = vsel %vm209, %v1308, 0
  %v1355 = vsel %vm209, %v1309, 0
  %v1358 = vsel %vm209, %v1310, 0
  %v1361 = vsel %vm209, %v1311, 0
  %v1364 = vsel %vm209, %v1312, 0
  %v1367 = vsel %vm209, %v1313, 0
  %v1370 = vsel %vm209, %v1314, 0
  %v1373 = vsel %vm209, %v1315, 0
  %v1376 = vsel %vm209, %v1316, 0
  %v1379 = vsel %vm209, %v1317, 0
  %v1382 = vsel %vm209, %v1318, 0
  %v1385 = vsel %vm209, %v1319, 0
  %v1388 = vsel %vm209, %v1320, 0
  %v1391 = vsel %vm209, %v1321, 0
  %v1394 = vsel %vm209, %v1322, 0
  %v1397 = vsel %vm209, %v1323, 0
  %1399 = vmatprep.subr.bf16.mxu0 0
  %1400 = vmatpush1.bf16.msra.mxu0 %v206
  %1401 = vmatprep.subr.bf16.mxu0 0
  %1402 = vmatpush1.bf16.msra.mxu0 %v290
  %1403 = vmatprep.subr.bf16.mxu0 0
  %1404 = vmatpush1.bf16.msra.mxu0 0
  %1405 = vmatprep.subr.bf16.mxu0 0
  %1406 = vmatpush1.bf16.msra.mxu0 0
  %1407 = vmatprep.subr.bf16.mxu0 0
  %1408 = vmatpush1.bf16.msra.mxu0 0
  %1409 = vmatprep.subr.bf16.mxu0 0
  %1410 = vmatpush1.bf16.msra.mxu0 0
  %1411 = vmatprep.subr.bf16.mxu0 0
  %1412 = vmatpush1.bf16.msra.mxu0 0
  %1413 = vmatprep.subr.bf16.mxu0 0
  %1414 = vmatpush1.bf16.msra.mxu0 0
  %1415 = vmatprep.subr.bf16.mxu0 0
  %1416 = vmatpush1.bf16.msra.mxu0 0
  %1417 = vmatprep.subr.bf16.mxu0 0
  %1418 = vmatpush1.bf16.msra.mxu0 0
  %1419 = vmatprep.subr.bf16.mxu0 0
  %1420 = vmatpush1.bf16.msra.mxu0 0
  %1421 = vmatprep.subr.bf16.mxu0 0
  %1422 = vmatpush1.bf16.msra.mxu0 0
  %1423 = vmatprep.subr.bf16.mxu0 0
  %1424 = vmatpush1.bf16.msra.mxu0 0
  %1425 = vmatprep.subr.bf16.mxu0 0
  %1426 = vmatpush1.bf16.msra.mxu0 0
  %1427 = vmatprep.subr.bf16.mxu0 0
  %1428 = vmatpush1.bf16.msra.mxu0 0
  %1429 = vmatprep.subr.bf16.mxu0 0
  %1430 = vmatpush1.bf16.msra.mxu0 0
  %1431 = vmatprep.mubr.bf16.mxu0 0
  %1432 = vmatmul.mubr.bf16.gmra.mrb[0].mxu0 %v1325
  %v1433 = vpop.f32.mrb[0].mxu0
  %v1434 = vadd.f32 %v73, %v1433
  %v1435 = vpop.f32.mrb[0].mxu0
  %v1436 = vpop.f32.mrb[0].mxu0
  %v1437 = vadd.f32 %v73, %v1436
  %v1438 = vpop.f32.mrb[0].mxu0
  %1439 = vmatprep.mubr.bf16.mxu0 0
  %1440 = vmatmul.mubr.bf16.gmra.mrb[0].mxu0 %v1328
  %v1441 = vpop.f32.mrb[0].mxu0
  %v1442 = vadd.f32 %v73, %v1441
  %v1443 = vpop.f32.mrb[0].mxu0
  %v1444 = vpop.f32.mrb[0].mxu0
  %v1445 = vadd.f32 %v73, %v1444
  %v1446 = vpop.f32.mrb[0].mxu0
  %1447 = vmatprep.mubr.bf16.mxu0 0
  %1448 = vmatmul.mubr.bf16.gmra.mrb[0].mxu0 %v1331
  %v1449 = vpop.f32.mrb[0].mxu0
  %v1450 = vadd.f32 %v73, %v1449
  %v1451 = vpop.f32.mrb[0].mxu0
  %v1452 = vpop.f32.mrb[0].mxu0
  %v1453 = vadd.f32 %v73, %v1452
  %v1454 = vpop.f32.mrb[0].mxu0
  %1455 = vmatprep.mubr.bf16.mxu0 0
  %1456 = vmatmul.mubr.bf16.gmra.mrb[0].mxu0 %v1334
  %v1457 = vpop.f32.mrb[0].mxu0
  %v1458 = vadd.f32 %v73, %v1457
  %v1459 = vpop.f32.mrb[0].mxu0
  %v1460 = vpop.f32.mrb[0].mxu0
  %v1461 = vadd.f32 %v73, %v1460
  %v1462 = vpop.f32.mrb[0].mxu0
  %1463 = vmatprep.mubr.bf16.mxu0 0
  %1464 = vmatmul.mubr.bf16.gmra.mrb[0].mxu0 %v1337
  %v1465 = vpop.f32.mrb[0].mxu0
  %v1466 = vadd.f32 %v73, %v1465
  %v1467 = vpop.f32.mrb[0].mxu0
  %v1468 = vpop.f32.mrb[0].mxu0
  %v1469 = vadd.f32 %v73, %v1468
  %v1470 = vpop.f32.mrb[0].mxu0
  %1471 = vmatprep.mubr.bf16.mxu0 0
  %1472 = vmatmul.mubr.bf16.gmra.mrb[0].mxu0 %v1340
  %v1473 = vpop.f32.mrb[0].mxu0
  %v1474 = vadd.f32 %v73, %v1473
  %v1475 = vpop.f32.mrb[0].mxu0
  %v1476 = vpop.f32.mrb[0].mxu0
  %v1477 = vadd.f32 %v73, %v1476
  %v1478 = vpop.f32.mrb[0].mxu0
  %1479 = vmatprep.mubr.bf16.mxu0 0
  %1480 = vmatmul.mubr.bf16.gmra.mrb[0].mxu0 %v1343
  %v1481 = vpop.f32.mrb[0].mxu0
  %v1482 = vadd.f32 %v73, %v1481
  %v1483 = vpop.f32.mrb[0].mxu0
  %v1484 = vpop.f32.mrb[0].mxu0
  %v1485 = vadd.f32 %v73, %v1484
  %v1486 = vpop.f32.mrb[0].mxu0
  %1487 = vmatprep.mubr.bf16.mxu0 0
  %1488 = vmatmul.mubr.bf16.gmra.mrb[0].mxu0 %v1346
  %v1489 = vpop.f32.mrb[0].mxu0
  %v1490 = vadd.f32 %v73, %v1489
  %v1491 = vpop.f32.mrb[0].mxu0
  %v1492 = vpop.f32.mrb[0].mxu0
  %v1493 = vadd.f32 %v73, %v1492
  %v1494 = vpop.f32.mrb[0].mxu0
  %1495 = vmatprep.mubr.bf16.mxu0 0
  %1496 = vmatmul.mubr.bf16.gmra.mrb[0].mxu0 %v1349
  %v1497 = vpop.f32.mrb[0].mxu0
  %v1498 = vadd.f32 %v73, %v1497
  %v1499 = vpop.f32.mrb[0].mxu0
  %v1500 = vpop.f32.mrb[0].mxu0
  %v1501 = vadd.f32 %v73, %v1500
  %v1502 = vpop.f32.mrb[0].mxu0
  %1503 = vmatprep.mubr.bf16.mxu0 0
  %1504 = vmatmul.mubr.bf16.gmra.mrb[0].mxu0 %v1352
  %v1505 = vpop.f32.mrb[0].mxu0
  %v1506 = vadd.f32 %v73, %v1505
  %v1507 = vpop.f32.mrb[0].mxu0
  %v1508 = vpop.f32.mrb[0].mxu0
  %v1509 = vadd.f32 %v73, %v1508
  %v1510 = vpop.f32.mrb[0].mxu0
  %1511 = vmatprep.mubr.bf16.mxu0 0
  %1512 = vmatmul.mubr.bf16.gmra.mrb[0].mxu0 %v1355
  %v1513 = vpop.f32.mrb[0].mxu0
  %v1514 = vadd.f32 %v73, %v1513
  %v1515 = vpop.f32.mrb[0].mxu0
  %v1516 = vpop.f32.mrb[0].mxu0
  %v1517 = vadd.f32 %v73, %v1516
  %v1518 = vpop.f32.mrb[0].mxu0
  %1519 = vmatprep.mubr.bf16.mxu0 0
  %1520 = vmatmul.mubr.bf16.gmra.mrb[0].mxu0 %v1358
  %v1521 = vpop.f32.mrb[0].mxu0
  %v1522 = vadd.f32 %v73, %v1521
  %v1523 = vpop.f32.mrb[0].mxu0
  %v1524 = vpop.f32.mrb[0].mxu0
  %v1525 = vadd.f32 %v73, %v1524
  %v1526 = vpop.f32.mrb[0].mxu0
  %1527 = vmatprep.mubr.bf16.mxu0 0
  %1528 = vmatmul.mubr.bf16.gmra.mrb[0].mxu0 %v1361
  %v1529 = vpop.f32.mrb[0].mxu0
  %v1530 = vadd.f32 %v73, %v1529
  %v1531 = vpop.f32.mrb[0].mxu0
  %v1532 = vpop.f32.mrb[0].mxu0
  %v1533 = vadd.f32 %v73, %v1532
  %v1534 = vpop.f32.mrb[0].mxu0
  %1535 = vmatprep.mubr.bf16.mxu0 0
  %1536 = vmatmul.mubr.bf16.gmra.mrb[0].mxu0 %v1364
  %v1537 = vpop.f32.mrb[0].mxu0
  %v1538 = vadd.f32 %v73, %v1537
  %v1539 = vpop.f32.mrb[0].mxu0
  %v1540 = vpop.f32.mrb[0].mxu0
  %v1541 = vadd.f32 %v73, %v1540
  %v1542 = vpop.f32.mrb[0].mxu0
  %1543 = vmatprep.mubr.bf16.mxu0 0
  %1544 = vmatmul.mubr.bf16.gmra.mrb[0].mxu0 %v1367
  %v1545 = vpop.f32.mrb[0].mxu0
  %v1546 = vadd.f32 %v73, %v1545
  %v1547 = vpop.f32.mrb[0].mxu0
  %v1548 = vpop.f32.mrb[0].mxu0
  %v1549 = vadd.f32 %v73, %v1548
  %v1550 = vpop.f32.mrb[0].mxu0
  %1551 = vmatprep.mubr.bf16.mxu0 0
  %1552 = vmatmul.mubr.bf16.gmra.mrb[0].mxu0 %v1370
  %v1553 = vpop.f32.mrb[0].mxu0
  %v1554 = vadd.f32 %v73, %v1553
  %v1555 = vpop.f32.mrb[0].mxu0
  %v1556 = vpop.f32.mrb[0].mxu0
  %v1557 = vadd.f32 %v73, %v1556
  %v1558 = vpop.f32.mrb[0].mxu0
  %1559 = vmatprep.mubr.bf16.mxu0 0
  %1560 = vmatmul.mubr.bf16.gmra.mrb[0].mxu0 %v1373
  %v1561 = vpop.f32.mrb[0].mxu0
  %v1562 = vadd.f32 %v73, %v1561
  %v1563 = vpop.f32.mrb[0].mxu0
  %v1564 = vpop.f32.mrb[0].mxu0
  %v1565 = vadd.f32 %v73, %v1564
  %v1566 = vpop.f32.mrb[0].mxu0
  %1567 = vmatprep.mubr.bf16.mxu0 0
  %1568 = vmatmul.mubr.bf16.gmra.mrb[0].mxu0 %v1376
  %v1569 = vpop.f32.mrb[0].mxu0
  %v1570 = vadd.f32 %v73, %v1569
  %v1571 = vpop.f32.mrb[0].mxu0
  %v1572 = vpop.f32.mrb[0].mxu0
  %v1573 = vadd.f32 %v73, %v1572
  %v1574 = vpop.f32.mrb[0].mxu0
  %1575 = vmatprep.mubr.bf16.mxu0 0
  %1576 = vmatmul.mubr.bf16.gmra.mrb[0].mxu0 %v1379
  %v1577 = vpop.f32.mrb[0].mxu0
  %v1578 = vadd.f32 %v73, %v1577
  %v1579 = vpop.f32.mrb[0].mxu0
  %v1580 = vpop.f32.mrb[0].mxu0
  %v1581 = vadd.f32 %v73, %v1580
  %v1582 = vpop.f32.mrb[0].mxu0
  %1583 = vmatprep.mubr.bf16.mxu0 0
  %1584 = vmatmul.mubr.bf16.gmra.mrb[0].mxu0 %v1382
  %v1585 = vpop.f32.mrb[0].mxu0
  %v1586 = vadd.f32 %v73, %v1585
  %v1587 = vpop.f32.mrb[0].mxu0
  %v1588 = vpop.f32.mrb[0].mxu0
  %v1589 = vadd.f32 %v73, %v1588
  %v1590 = vpop.f32.mrb[0].mxu0
  %1591 = vmatprep.mubr.bf16.mxu0 0
  %1592 = vmatmul.mubr.bf16.gmra.mrb[0].mxu0 %v1385
  %v1593 = vpop.f32.mrb[0].mxu0
  %v1594 = vadd.f32 %v73, %v1593
  %v1595 = vpop.f32.mrb[0].mxu0
  %v1596 = vpop.f32.mrb[0].mxu0
  %v1597 = vadd.f32 %v73, %v1596
  %v1598 = vpop.f32.mrb[0].mxu0
  %1599 = vmatprep.mubr.bf16.mxu0 0
  %1600 = vmatmul.mubr.bf16.gmra.mrb[0].mxu0 %v1388
  %v1601 = vpop.f32.mrb[0].mxu0
  %v1602 = vadd.f32 %v73, %v1601
  %v1603 = vpop.f32.mrb[0].mxu0
  %v1604 = vpop.f32.mrb[0].mxu0
  %v1605 = vadd.f32 %v73, %v1604
  %v1606 = vpop.f32.mrb[0].mxu0
  %1607 = vmatprep.mubr.bf16.mxu0 0
  %1608 = vmatmul.mubr.bf16.gmra.mrb[0].mxu0 %v1391
  %v1609 = vpop.f32.mrb[0].mxu0
  %v1610 = vadd.f32 %v73, %v1609
  %v1611 = vpop.f32.mrb[0].mxu0
  %v1612 = vpop.f32.mrb[0].mxu0
  %v1613 = vadd.f32 %v73, %v1612
  %v1614 = vpop.f32.mrb[0].mxu0
  %1615 = vmatprep.mubr.bf16.mxu0 0
  %1616 = vmatmul.mubr.bf16.gmra.mrb[0].mxu0 %v1394
  %v1617 = vpop.f32.mrb[0].mxu0
  %v1618 = vadd.f32 %v73, %v1617
  %v1619 = vpop.f32.mrb[0].mxu0
  %v1620 = vpop.f32.mrb[0].mxu0
  %v1621 = vadd.f32 %v73, %v1620
  %v1622 = vpop.f32.mrb[0].mxu0
  %1623 = vmatprep.mubr.bf16.mxu0 0
  %1624 = vmatmul.mubr.bf16.gmra.mrb[0].mxu0 %v1397
  %v1625 = vpop.f32.mrb[0].mxu0
  %v1626 = vadd.f32 %v73, %v1625
  %v1627 = vpop.f32.mrb[0].mxu0
  %v1628 = vpop.f32.mrb[0].mxu0
  %v1629 = vpop.f32.mrb[0].mxu0
  %1630 = vdwg.mxu0
  %v1631 = vmax.f32 %v1434, 0.0
  %v1632 = vmax.f32 %v1437, 0.0
  %v1633 = vmax.f32 %v1442, 0.0
  %v1634 = vmax.f32 %v1445, 0.0
  %v1635 = vmax.f32 %v1450, 0.0
  %v1636 = vmax.f32 %v1453, 0.0
  %v1637 = vmax.f32 %v1458, 0.0
  %v1638 = vmax.f32 %v1461, 0.0
  %v1639 = vmax.f32 %v1466, 0.0
  %v1640 = vmax.f32 %v1469, 0.0
  %v1641 = vmax.f32 %v1474, 0.0
  %v1642 = vmax.f32 %v1477, 0.0
  %v1643 = vmax.f32 %v1482, 0.0
  %v1644 = vmax.f32 %v1485, 0.0
  %v1645 = vmax.f32 %v1490, 0.0
  %v1646 = vmax.f32 %v1493, 0.0
  %v1647 = vmax.f32 %v1498, 0.0
  %v1648 = vmax.f32 %v1501, 0.0
  %v1649 = vmax.f32 %v1506, 0.0
  %v1650 = vmax.f32 %v1509, 0.0
  %v1651 = vmax.f32 %v1514, 0.0
  %v1652 = vmax.f32 %v1517, 0.0
  %v1653 = vmax.f32 %v1522, 0.0
  %v1654 = vmax.f32 %v1525, 0.0
  %v1655 = vmax.f32 %v1530, 0.0
  %v1656 = vmax.f32 %v1533, 0.0
  %v1657 = vmax.f32 %v1538, 0.0
  %v1658 = vmax.f32 %v1541, 0.0
  %v1659 = vmax.f32 %v1546, 0.0
  %v1660 = vmax.f32 %v1549, 0.0
  %v1661 = vmax.f32 %v1554, 0.0
  %v1662 = vmax.f32 %v1557, 0.0
  %v1663 = vmax.f32 %v1562, 0.0
  %v1664 = vmax.f32 %v1565, 0.0
  %v1665 = vmax.f32 %v1570, 0.0
  %v1666 = vmax.f32 %v1573, 0.0
  %v1667 = vmax.f32 %v1578, 0.0
  %v1668 = vmax.f32 %v1581, 0.0
  %v1669 = vmax.f32 %v1586, 0.0
  %v1670 = vmax.f32 %v1589, 0.0
  %v1671 = vmax.f32 %v1594, 0.0
  %v1672 = vmax.f32 %v1597, 0.0
  %v1673 = vmax.f32 %v1602, 0.0
  %v1674 = vmax.f32 %v1605, 0.0
  %v1675 = vmax.f32 %v1610, 0.0
  %v1676 = vmax.f32 %v1613, 0.0
  %v1677 = vmax.f32 %v1618, 0.0
  %v1678 = vmax.f32 %v1621, 0.0
  %v1679 = vmax.f32 %v1626, 0.0
  %v1680 = vmax.f32 %v1102, %v1631
  %v1681 = vmax.f32 %v1103, %v1632
  %v1682 = vmax.f32 %v1104, %v1633
  %v1683 = vmax.f32 %v1105, %v1634
  %v1684 = vmax.f32 %v1106, %v1635
  %v1685 = vmax.f32 %v1107, %v1636
  %v1686 = vmax.f32 %v1108, %v1637
  %v1687 = vmax.f32 %v1109, %v1638
  %v1688 = vmax.f32 %v1110, %v1639
  %v1689 = vmax.f32 %v1111, %v1640
  %v1690 = vmax.f32 %v1112, %v1641
  %v1691 = vmax.f32 %v1113, %v1642
  %v1692 = vmax.f32 %v1114, %v1643
  %v1693 = vmax.f32 %v1115, %v1644
  %v1694 = vmax.f32 %v1116, %v1645
  %v1695 = vmax.f32 %v1117, %v1646
  %v1696 = vmax.f32 %v1118, %v1647
  %v1697 = vmax.f32 %v1119, %v1648
  %v1698 = vmax.f32 %v1120, %v1649
  %v1699 = vmax.f32 %v1121, %v1650
  %v1700 = vmax.f32 %v1122, %v1651
  %v1701 = vmax.f32 %v1123, %v1652
  %v1702 = vmax.f32 %v1124, %v1653
  %v1703 = vmax.f32 %v1125, %v1654
  %v1704 = vmax.f32 %v1126, %v1655
  %v1705 = vmax.f32 %v1127, %v1656
  %v1706 = vmax.f32 %v1128, %v1657
  %v1707 = vmax.f32 %v1129, %v1658
  %v1708 = vmax.f32 %v1130, %v1659
  %v1709 = vmax.f32 %v1131, %v1660
  %v1710 = vmax.f32 %v1132, %v1661
  %v1711 = vmax.f32 %v1133, %v1662
  %v1712 = vmax.f32 %v1134, %v1663
  %v1713 = vmax.f32 %v1135, %v1664
  %v1714 = vmax.f32 %v1136, %v1665
  %v1715 = vmax.f32 %v1137, %v1666
  %v1716 = vmax.f32 %v1138, %v1667
  %v1717 = vmax.f32 %v1139, %v1668
  %v1718 = vmax.f32 %v1140, %v1669
  %v1719 = vmax.f32 %v1141, %v1670
  %v1720 = vmax.f32 %v1142, %v1671
  %v1721 = vmax.f32 %v1143, %v1672
  %v1722 = vmax.f32 %v1144, %v1673
  %v1723 = vmax.f32 %v1145, %v1674
  %v1724 = vmax.f32 %v1146, %v1675
  %v1725 = vmax.f32 %v1147, %v1676
  %v1726 = vmax.f32 %v1148, %v1677
  %v1727 = vmax.f32 %v1149, %v1678
  %v1728 = vmax.f32 %v1150, %v1679
  %s1729 = scalar_lea.vmem %s0, 588
  %v1730 = vld [vmem:[%s1729] sm:$0xf]
  %v1731 = vld [vmem:[%s1729 + $0x4] sm:$0xf]
  %v1732 = vld [vmem:[%s1729 + $0x8] sm:$0xf]
  %v1733 = vld [vmem:[%s1729 + $0xc] sm:$0xf]
  %v1734 = vld [vmem:[%s1729 + $0x10] sm:$0xf]
  %v1735 = vld [vmem:[%s1729 + $0x14] sm:$0xf]
  %v1736 = vld [vmem:[%s1729 + $0x18] sm:$0xf]
  %v1737 = vld [vmem:[%s1729 + $0x1c] sm:$0xf]
  %v1738 = vld [vmem:[%s1729 + $0x20] sm:$0xf]
  %v1739 = vld [vmem:[%s1729 + $0x24] sm:$0xf]
  %v1740 = vld [vmem:[%s1729 + $0x28] sm:$0xf]
  %v1741 = vld [vmem:[%s1729 + $0x2c] sm:$0xf]
  %v1742 = vld [vmem:[%s1729 + $0x30] sm:$0xf]
  %v1743 = vld [vmem:[%s1729 + $0x34] sm:$0xf]
  %v1744 = vld [vmem:[%s1729 + $0x38] sm:$0xf]
  %v1745 = vld [vmem:[%s1729 + $0x3c] sm:$0xf]
  %v1746 = vld [vmem:[%s1729 + $0x40] sm:$0xf]
  %v1747 = vld [vmem:[%s1729 + $0x44] sm:$0xf]
  %v1748 = vld [vmem:[%s1729 + $0x48] sm:$0xf]
  %v1749 = vld [vmem:[%s1729 + $0x4c] sm:$0xf]
  %v1750 = vld [vmem:[%s1729 + $0x50] sm:$0xf]
  %v1751 = vld [vmem:[%s1729 + $0x54] sm:$0xf]
  %v1752 = vld [vmem:[%s1729 + $0x58] sm:$0xf]
  %v1753 = vld [vmem:[%s1729 + $0x5c] sm:$0xf]
  %v1754 = vld [vmem:[%s1729 + $0x60] sm:$0xf]
  %v1755 = vld [vmem:[%s1729 + $0x64] sm:$0xf]
  %v1756 = vld [vmem:[%s1729 + $0x68] sm:$0xf]
  %v1757 = vld [vmem:[%s1729 + $0x6c] sm:$0xf]
  %v1758 = vld [vmem:[%s1729 + $0x70] sm:$0xf]
  %v1759 = vld [vmem:[%s1729 + $0x74] sm:$0xf]
  %v1760 = vld [vmem:[%s1729 + $0x78] sm:$0xf]
  %v1761 = vld [vmem:[%s1729 + $0x7c] sm:$0xf]
  %v1762 = vld [vmem:[%s1729 + $0x80] sm:$0xf]
  %v1763 = vld [vmem:[%s1729 + $0x84] sm:$0xf]
  %v1764 = vld [vmem:[%s1729 + $0x88] sm:$0xf]
  %v1765 = vld [vmem:[%s1729 + $0x8c] sm:$0xf]
  %v1766 = vld [vmem:[%s1729 + $0x90] sm:$0xf]
  %v1767 = vld [vmem:[%s1729 + $0x94] sm:$0xf]
  %v1768 = vld [vmem:[%s1729 + $0x98] sm:$0xf]
  %v1769 = vld [vmem:[%s1729 + $0x9c] sm:$0xf]
  %v1770 = vld [vmem:[%s1729 + $0xa0] sm:$0xf]
  %v1771 = vld [vmem:[%s1729 + $0xa4] sm:$0xf]
  %v1772 = vld [vmem:[%s1729 + $0xa8] sm:$0xf]
  %v1773 = vld [vmem:[%s1729 + $0xac] sm:$0xf]
  %v1774 = vld [vmem:[%s1729 + $0xb0] sm:$0xf]
  %v1775 = vld [vmem:[%s1729 + $0xb4] sm:$0xf]
  %v1776 = vld [vmem:[%s1729 + $0xb8] sm:$0xf]
  %v1777 = vld [vmem:[%s1729 + $0xbc] sm:$0xf]
  %v1778 = vld [vmem:[%s1729 + $0xc0] sm:$0xf]
  %v1828 = vunpack.c.l.b16 %v1730
  %v1829 = vunpack.c.l.b16 %v1731
  %v1830 = vunpack.c.l.b16 %v1732
  %v1831 = vunpack.c.l.b16 %v1733
  %v1832 = vunpack.c.l.b16 %v1734
  %v1833 = vunpack.c.l.b16 %v1735
  %v1834 = vunpack.c.l.b16 %v1736
  %v1835 = vunpack.c.l.b16 %v1737
  %v1836 = vunpack.c.l.b16 %v1738
  %v1837 = vunpack.c.l.b16 %v1739
  %v1838 = vunpack.c.l.b16 %v1740
  %v1839 = vunpack.c.l.b16 %v1741
  %v1840 = vunpack.c.l.b16 %v1742
  %v1841 = vunpack.c.l.b16 %v1743
  %v1842 = vunpack.c.l.b16 %v1744
  %v1843 = vunpack.c.l.b16 %v1745
  %v1844 = vunpack.c.l.b16 %v1746
  %v1845 = vunpack.c.l.b16 %v1747
  %v1846 = vunpack.c.l.b16 %v1748
  %v1847 = vunpack.c.l.b16 %v1749
  %v1848 = vunpack.c.l.b16 %v1750
  %v1849 = vunpack.c.l.b16 %v1751
  %v1850 = vunpack.c.l.b16 %v1752
  %v1851 = vunpack.c.l.b16 %v1753
  %v1852 = vunpack.c.l.b16 %v1754
  %v1853 = vunpack.c.l.b16 %v1755
  %v1854 = vunpack.c.l.b16 %v1756
  %v1855 = vunpack.c.l.b16 %v1757
  %v1856 = vunpack.c.l.b16 %v1758
  %v1857 = vunpack.c.l.b16 %v1759
  %v1858 = vunpack.c.l.b16 %v1760
  %v1859 = vunpack.c.l.b16 %v1761
  %v1860 = vunpack.c.l.b16 %v1762
  %v1861 = vunpack.c.l.b16 %v1763
  %v1862 = vunpack.c.l.b16 %v1764
  %v1863 = vunpack.c.l.b16 %v1765
  %v1864 = vunpack.c.l.b16 %v1766
  %v1865 = vunpack.c.l.b16 %v1767
  %v1866 = vunpack.c.l.b16 %v1768
  %v1867 = vunpack.c.l.b16 %v1769
  %v1868 = vunpack.c.l.b16 %v1770
  %v1869 = vunpack.c.l.b16 %v1771
  %v1870 = vunpack.c.l.b16 %v1772
  %v1871 = vunpack.c.l.b16 %v1773
  %v1872 = vunpack.c.l.b16 %v1774
  %v1873 = vunpack.c.l.b16 %v1775
  %v1874 = vunpack.c.l.b16 %v1776
  %v1875 = vunpack.c.l.b16 %v1777
  %v1876 = vunpack.c.l.b16 %v1778
  %v1877 = vpack.c.b16 %v1829, %v1828
  %v1878 = vpack.c.b16 %v1831, %v1830
  %v1879 = vpack.c.b16 %v1833, %v1832
  %v1880 = vpack.c.b16 %v1835, %v1834
  %v1881 = vpack.c.b16 %v1837, %v1836
  %v1882 = vpack.c.b16 %v1839, %v1838
  %v1883 = vpack.c.b16 %v1841, %v1840
  %v1884 = vpack.c.b16 %v1843, %v1842
  %v1885 = vpack.c.b16 %v1845, %v1844
  %v1886 = vpack.c.b16 %v1847, %v1846
  %v1887 = vpack.c.b16 %v1849, %v1848
  %v1888 = vpack.c.b16 %v1851, %v1850
  %v1889 = vpack.c.b16 %v1853, %v1852
  %v1890 = vpack.c.b16 %v1855, %v1854
  %v1891 = vpack.c.b16 %v1857, %v1856
  %v1892 = vpack.c.b16 %v1859, %v1858
  %v1893 = vpack.c.b16 %v1861, %v1860
  %v1894 = vpack.c.b16 %v1863, %v1862
  %v1895 = vpack.c.b16 %v1865, %v1864
  %v1896 = vpack.c.b16 %v1867, %v1866
  %v1897 = vpack.c.b16 %v1869, %v1868
  %v1898 = vpack.c.b16 %v1871, %v1870
  %v1899 = vpack.c.b16 %v1873, %v1872
  %v1900 = vpack.c.b16 %v1875, %v1874
  %v1901 = vpack.c.b16 %v1876, %v1876
  %v1903 = vsel %vm209, %v1877, 0
  %v1906 = vsel %vm209, %v1878, 0
  %v1909 = vsel %vm209, %v1879, 0
  %v1912 = vsel %vm209, %v1880, 0
  %v1915 = vsel %vm209, %v1881, 0
  %v1918 = vsel %vm209, %v1882, 0
  %v1921 = vsel %vm209, %v1883, 0
  %v1924 = vsel %vm209, %v1884, 0
  %v1927 = vsel %vm209, %v1885, 0
  %v1930 = vsel %vm209, %v1886, 0
  %v1933 = vsel %vm209, %v1887, 0
  %v1936 = vsel %vm209, %v1888, 0
  %v1939 = vsel %vm209, %v1889, 0
  %v1942 = vsel %vm209, %v1890, 0
  %v1945 = vsel %vm209, %v1891, 0
  %v1948 = vsel %vm209, %v1892, 0
  %v1951 = vsel %vm209, %v1893, 0
  %v1954 = vsel %vm209, %v1894, 0
  %v1957 = vsel %vm209, %v1895, 0
  %v1960 = vsel %vm209, %v1896, 0
  %v1963 = vsel %vm209, %v1897, 0
  %v1966 = vsel %vm209, %v1898, 0
  %v1969 = vsel %vm209, %v1899, 0
  %v1972 = vsel %vm209, %v1900, 0
  %v1975 = vsel %vm209, %v1901, 0
  %1977 = vmatprep.subr.bf16.mxu0 0
  %1978 = vmatpush1.bf16.msra.mxu0 %v206
  %1979 = vmatprep.subr.bf16.mxu0 0
  %1980 = vmatpush1.bf16.msra.mxu0 %v290
  %1981 = vmatprep.subr.bf16.mxu0 0
  %1982 = vmatpush1.bf16.msra.mxu0 0
  %1983 = vmatprep.subr.bf16.mxu0 0
  %1984 = vmatpush1.bf16.msra.mxu0 0
  %1985 = vmatprep.subr.bf16.mxu0 0
  %1986 = vmatpush1.bf16.msra.mxu0 0
  %1987 = vmatprep.subr.bf16.mxu0 0
  %1988 = vmatpush1.bf16.msra.mxu0 0
  %1989 = vmatprep.subr.bf16.mxu0 0
  %1990 = vmatpush1.bf16.msra.mxu0 0
  %1991 = vmatprep.subr.bf16.mxu0 0
  %1992 = vmatpush1.bf16.msra.mxu0 0
  %1993 = vmatprep.subr.bf16.mxu0 0
  %1994 = vmatpush1.bf16.msra.mxu0 0
  %1995 = vmatprep.subr.bf16.mxu0 0
  %1996 = vmatpush1.bf16.msra.mxu0 0
  %1997 = vmatprep.subr.bf16.mxu0 0
  %1998 = vmatpush1.bf16.msra.mxu0 0
  %1999 = vmatprep.subr.bf16.mxu0 0
  %2000 = vmatpush1.bf16.msra.mxu0 0
  %2001 = vmatprep.subr.bf16.mxu0 0
  %2002 = vmatpush1.bf16.msra.mxu0 0
  %2003 = vmatprep.subr.bf16.mxu0 0
  %2004 = vmatpush1.bf16.msra.mxu0 0
  %2005 = vmatprep.subr.bf16.mxu0 0
  %2006 = vmatpush1.bf16.msra.mxu0 0
  %2007 = vmatprep.subr.bf16.mxu0 0
  %2008 = vmatpush1.bf16.msra.mxu0 0
  %2009 = vmatprep.mubr.bf16.mxu0 0
  %2010 = vmatmul.mubr.bf16.gmra.mrb[0].mxu0 %v1903
  %v2011 = vpop.f32.mrb[0].mxu0
  %v2012 = vadd.f32 %v73, %v2011
  %v2013 = vpop.f32.mrb[0].mxu0
  %v2014 = vpop.f32.mrb[0].mxu0
  %v2015 = vadd.f32 %v73, %v2014
  %v2016 = vpop.f32.mrb[0].mxu0
  %2017 = vmatprep.mubr.bf16.mxu0 0
  %2018 = vmatmul.mubr.bf16.gmra.mrb[0].mxu0 %v1906
  %v2019 = vpop.f32.mrb[0].mxu0
  %v2020 = vadd.f32 %v73, %v2019
  %v2021 = vpop.f32.mrb[0].mxu0
  %v2022 = vpop.f32.mrb[0].mxu0
  %v2023 = vadd.f32 %v73, %v2022
  %v2024 = vpop.f32.mrb[0].mxu0
  %2025 = vmatprep.mubr.bf16.mxu0 0
  %2026 = vmatmul.mubr.bf16.gmra.mrb[0].mxu0 %v1909
  %v2027 = vpop.f32.mrb[0].mxu0
  %v2028 = vadd.f32 %v73, %v2027
  %v2029 = vpop.f32.mrb[0].mxu0
  %v2030 = vpop.f32.mrb[0].mxu0
  %v2031 = vadd.f32 %v73, %v2030
  %v2032 = vpop.f32.mrb[0].mxu0
  %2033 = vmatprep.mubr.bf16.mxu0 0
  %2034 = vmatmul.mubr.bf16.gmra.mrb[0].mxu0 %v1912
  %v2035 = vpop.f32.mrb[0].mxu0
  %v2036 = vadd.f32 %v73, %v2035
  %v2037 = vpop.f32.mrb[0].mxu0
  %v2038 = vpop.f32.mrb[0].mxu0
  %v2039 = vadd.f32 %v73, %v2038
  %v2040 = vpop.f32.mrb[0].mxu0
  %2041 = vmatprep.mubr.bf16.mxu0 0
  %2042 = vmatmul.mubr.bf16.gmra.mrb[0].mxu0 %v1915
  %v2043 = vpop.f32.mrb[0].mxu0
  %v2044 = vadd.f32 %v73, %v2043
  %v2045 = vpop.f32.mrb[0].mxu0
  %v2046 = vpop.f32.mrb[0].mxu0
  %v2047 = vadd.f32 %v73, %v2046
  %v2048 = vpop.f32.mrb[0].mxu0
  %2049 = vmatprep.mubr.bf16.mxu0 0
  %2050 = vmatmul.mubr.bf16.gmra.mrb[0].mxu0 %v1918
  %v2051 = vpop.f32.mrb[0].mxu0
  %v2052 = vadd.f32 %v73, %v2051
  %v2053 = vpop.f32.mrb[0].mxu0
  %v2054 = vpop.f32.mrb[0].mxu0
  %v2055 = vadd.f32 %v73, %v2054
  %v2056 = vpop.f32.mrb[0].mxu0
  %2057 = vmatprep.mubr.bf16.mxu0 0
  %2058 = vmatmul.mubr.bf16.gmra.mrb[0].mxu0 %v1921
  %v2059 = vpop.f32.mrb[0].mxu0
  %v2060 = vadd.f32 %v73, %v2059
  %v2061 = vpop.f32.mrb[0].mxu0
  %v2062 = vpop.f32.mrb[0].mxu0
  %v2063 = vadd.f32 %v73, %v2062
  %v2064 = vpop.f32.mrb[0].mxu0
  %2065 = vmatprep.mubr.bf16.mxu0 0
  %2066 = vmatmul.mubr.bf16.gmra.mrb[0].mxu0 %v1924
  %v2067 = vpop.f32.mrb[0].mxu0
  %v2068 = vadd.f32 %v73, %v2067
  %v2069 = vpop.f32.mrb[0].mxu0
  %v2070 = vpop.f32.mrb[0].mxu0
  %v2071 = vadd.f32 %v73, %v2070
  %v2072 = vpop.f32.mrb[0].mxu0
  %2073 = vmatprep.mubr.bf16.mxu0 0
  %2074 = vmatmul.mubr.bf16.gmra.mrb[0].mxu0 %v1927
  %v2075 = vpop.f32.mrb[0].mxu0
  %v2076 = vadd.f32 %v73, %v2075
  %v2077 = vpop.f32.mrb[0].mxu0
  %v2078 = vpop.f32.mrb[0].mxu0
  %v2079 = vadd.f32 %v73, %v2078
  %v2080 = vpop.f32.mrb[0].mxu0
  %2081 = vmatprep.mubr.bf16.mxu0 0
  %2082 = vmatmul.mubr.bf16.gmra.mrb[0].mxu0 %v1930
  %v2083 = vpop.f32.mrb[0].mxu0
  %v2084 = vadd.f32 %v73, %v2083
  %v2085 = vpop.f32.mrb[0].mxu0
  %v2086 = vpop.f32.mrb[0].mxu0
  %v2087 = vadd.f32 %v73, %v2086
  %v2088 = vpop.f32.mrb[0].mxu0
  %2089 = vmatprep.mubr.bf16.mxu0 0
  %2090 = vmatmul.mubr.bf16.gmra.mrb[0].mxu0 %v1933
  %v2091 = vpop.f32.mrb[0].mxu0
  %v2092 = vadd.f32 %v73, %v2091
  %v2093 = vpop.f32.mrb[0].mxu0
  %v2094 = vpop.f32.mrb[0].mxu0
  %v2095 = vadd.f32 %v73, %v2094
  %v2096 = vpop.f32.mrb[0].mxu0
  %2097 = vmatprep.mubr.bf16.mxu0 0
  %2098 = vmatmul.mubr.bf16.gmra.mrb[0].mxu0 %v1936
  %v2099 = vpop.f32.mrb[0].mxu0
  %v2100 = vadd.f32 %v73, %v2099
  %v2101 = vpop.f32.mrb[0].mxu0
  %v2102 = vpop.f32.mrb[0].mxu0
  %v2103 = vadd.f32 %v73, %v2102
  %v2104 = vpop.f32.mrb[0].mxu0
  %2105 = vmatprep.mubr.bf16.mxu0 0
  %2106 = vmatmul.mubr.bf16.gmra.mrb[0].mxu0 %v1939
  %v2107 = vpop.f32.mrb[0].mxu0
  %v2108 = vadd.f32 %v73, %v2107
  %v2109 = vpop.f32.mrb[0].mxu0
  %v2110 = vpop.f32.mrb[0].mxu0
  %v2111 = vadd.f32 %v73, %v2110
  %v2112 = vpop.f32.mrb[0].mxu0
  %2113 = vmatprep.mubr.bf16.mxu0 0
  %2114 = vmatmul.mubr.bf16.gmra.mrb[0].mxu0 %v1942
  %v2115 = vpop.f32.mrb[0].mxu0
  %v2116 = vadd.f32 %v73, %v2115
  %v2117 = vpop.f32.mrb[0].mxu0
  %v2118 = vpop.f32.mrb[0].mxu0
  %v2119 = vadd.f32 %v73, %v2118
  %v2120 = vpop.f32.mrb[0].mxu0
  %2121 = vmatprep.mubr.bf16.mxu0 0
  %2122 = vmatmul.mubr.bf16.gmra.mrb[0].mxu0 %v1945
  %v2123 = vpop.f32.mrb[0].mxu0
  %v2124 = vadd.f32 %v73, %v2123
  %v2125 = vpop.f32.mrb[0].mxu0
  %v2126 = vpop.f32.mrb[0].mxu0
  %v2127 = vadd.f32 %v73, %v2126
  %v2128 = vpop.f32.mrb[0].mxu0
  %2129 = vmatprep.mubr.bf16.mxu0 0
  %2130 = vmatmul.mubr.bf16.gmra.mrb[0].mxu0 %v1948
  %v2131 = vpop.f32.mrb[0].mxu0
  %v2132 = vadd.f32 %v73, %v2131
  %v2133 = vpop.f32.mrb[0].mxu0
  %v2134 = vpop.f32.mrb[0].mxu0
  %v2135 = vadd.f32 %v73, %v2134
  %v2136 = vpop.f32.mrb[0].mxu0
  %2137 = vmatprep.mubr.bf16.mxu0 0
  %2138 = vmatmul.mubr.bf16.gmra.mrb[0].mxu0 %v1951
  %v2139 = vpop.f32.mrb[0].mxu0
  %v2140 = vadd.f32 %v73, %v2139
  %v2141 = vpop.f32.mrb[0].mxu0
  %v2142 = vpop.f32.mrb[0].mxu0
  %v2143 = vadd.f32 %v73, %v2142
  %v2144 = vpop.f32.mrb[0].mxu0
  %2145 = vmatprep.mubr.bf16.mxu0 0
  %2146 = vmatmul.mubr.bf16.gmra.mrb[0].mxu0 %v1954
  %v2147 = vpop.f32.mrb[0].mxu0
  %v2148 = vadd.f32 %v73, %v2147
  %v2149 = vpop.f32.mrb[0].mxu0
  %v2150 = vpop.f32.mrb[0].mxu0
  %v2151 = vadd.f32 %v73, %v2150
  %v2152 = vpop.f32.mrb[0].mxu0
  %2153 = vmatprep.mubr.bf16.mxu0 0
  %2154 = vmatmul.mubr.bf16.gmra.mrb[0].mxu0 %v1957
  %v2155 = vpop.f32.mrb[0].mxu0
  %v2156 = vadd.f32 %v73, %v2155
  %v2157 = vpop.f32.mrb[0].mxu0
  %v2158 = vpop.f32.mrb[0].mxu0
  %v2159 = vadd.f32 %v73, %v2158
  %v2160 = vpop.f32.mrb[0].mxu0
  %2161 = vmatprep.mubr.bf16.mxu0 0
  %2162 = vmatmul.mubr.bf16.gmra.mrb[0].mxu0 %v1960
  %v2163 = vpop.f32.mrb[0].mxu0
  %v2164 = vadd.f32 %v73, %v2163
  %v2165 = vpop.f32.mrb[0].mxu0
  %v2166 = vpop.f32.mrb[0].mxu0
  %v2167 = vadd.f32 %v73, %v2166
  %v2168 = vpop.f32.mrb[0].mxu0
  %2169 = vmatprep.mubr.bf16.mxu0 0
  %2170 = vmatmul.mubr.bf16.gmra.mrb[0].mxu0 %v1963
  %v2171 = vpop.f32.mrb[0].mxu0
  %v2172 = vadd.f32 %v73, %v2171
  %v2173 = vpop.f32.mrb[0].mxu0
  %v2174 = vpop.f32.mrb[0].mxu0
  %v2175 = vadd.f32 %v73, %v2174
  %v2176 = vpop.f32.mrb[0].mxu0
  %2177 = vmatprep.mubr.bf16.mxu0 0
  %2178 = vmatmul.mubr.bf16.gmra.mrb[0].mxu0 %v1966
  %v2179 = vpop.f32.mrb[0].mxu0
  %v2180 = vadd.f32 %v73, %v2179
  %v2181 = vpop.f32.mrb[0].mxu0
  %v2182 = vpop.f32.mrb[0].mxu0
  %v2183 = vadd.f32 %v73, %v2182
  %v2184 = vpop.f32.mrb[0].mxu0
  %2185 = vmatprep.mubr.bf16.mxu0 0
  %2186 = vmatmul.mubr.bf16.gmra.mrb[0].mxu0 %v1969
  %v2187 = vpop.f32.mrb[0].mxu0
  %v2188 = vadd.f32 %v73, %v2187
  %v2189 = vpop.f32.mrb[0].mxu0
  %v2190 = vpop.f32.mrb[0].mxu0
  %v2191 = vadd.f32 %v73, %v2190
  %v2192 = vpop.f32.mrb[0].mxu0
  %2193 = vmatprep.mubr.bf16.mxu0 0
  %2194 = vmatmul.mubr.bf16.gmra.mrb[0].mxu0 %v1972
  %v2195 = vpop.f32.mrb[0].mxu0
  %v2196 = vadd.f32 %v73, %v2195
  %v2197 = vpop.f32.mrb[0].mxu0
  %v2198 = vpop.f32.mrb[0].mxu0
  %v2199 = vadd.f32 %v73, %v2198
  %v2200 = vpop.f32.mrb[0].mxu0
  %2201 = vmatprep.mubr.bf16.mxu0 0
  %2202 = vmatmul.mubr.bf16.gmra.mrb[0].mxu0 %v1975
  %v2203 = vpop.f32.mrb[0].mxu0
  %v2204 = vadd.f32 %v73, %v2203
  %v2205 = vpop.f32.mrb[0].mxu0
  %v2206 = vpop.f32.mrb[0].mxu0
  %v2207 = vpop.f32.mrb[0].mxu0
  %2208 = vdwg.mxu0
  %v2209 = vmax.f32 %v2012, 0.0
  %v2210 = vmax.f32 %v2015, 0.0
  %v2211 = vmax.f32 %v2020, 0.0
  %v2212 = vmax.f32 %v2023, 0.0
  %v2213 = vmax.f32 %v2028, 0.0
  %v2214 = vmax.f32 %v2031, 0.0
  %v2215 = vmax.f32 %v2036, 0.0
  %v2216 = vmax.f32 %v2039, 0.0
  %v2217 = vmax.f32 %v2044, 0.0
  %v2218 = vmax.f32 %v2047, 0.0
  %v2219 = vmax.f32 %v2052, 0.0
  %v2220 = vmax.f32 %v2055, 0.0
  %v2221 = vmax.f32 %v2060, 0.0
  %v2222 = vmax.f32 %v2063, 0.0
  %v2223 = vmax.f32 %v2068, 0.0
  %v2224 = vmax.f32 %v2071, 0.0
  %v2225 = vmax.f32 %v2076, 0.0
  %v2226 = vmax.f32 %v2079, 0.0
  %v2227 = vmax.f32 %v2084, 0.0
  %v2228 = vmax.f32 %v2087, 0.0
  %v2229 = vmax.f32 %v2092, 0.0
  %v2230 = vmax.f32 %v2095, 0.0
  %v2231 = vmax.f32 %v2100, 0.0
  %v2232 = vmax.f32 %v2103, 0.0
  %v2233 = vmax.f32 %v2108, 0.0
  %v2234 = vmax.f32 %v2111, 0.0
  %v2235 = vmax.f32 %v2116, 0.0
  %v2236 = vmax.f32 %v2119, 0.0
  %v2237 = vmax.f32 %v2124, 0.0
  %v2238 = vmax.f32 %v2127, 0.0
  %v2239 = vmax.f32 %v2132, 0.0
  %v2240 = vmax.f32 %v2135, 0.0
  %v2241 = vmax.f32 %v2140, 0.0
  %v2242 = vmax.f32 %v2143, 0.0
  %v2243 = vmax.f32 %v2148, 0.0
  %v2244 = vmax.f32 %v2151, 0.0
  %v2245 = vmax.f32 %v2156, 0.0
  %v2246 = vmax.f32 %v2159, 0.0
  %v2247 = vmax.f32 %v2164, 0.0
  %v2248 = vmax.f32 %v2167, 0.0
  %v2249 = vmax.f32 %v2172, 0.0
  %v2250 = vmax.f32 %v2175, 0.0
  %v2251 = vmax.f32 %v2180, 0.0
  %v2252 = vmax.f32 %v2183, 0.0
  %v2253 = vmax.f32 %v2188, 0.0
  %v2254 = vmax.f32 %v2191, 0.0
  %v2255 = vmax.f32 %v2196, 0.0
  %v2256 = vmax.f32 %v2199, 0.0
  %v2257 = vmax.f32 %v2204, 0.0
  %v2258 = vmax.f32 %v1680, %v2209
  %v2259 = vmax.f32 %v1681, %v2210
  %v2260 = vmax.f32 %v1682, %v2211
  %v2261 = vmax.f32 %v1683, %v2212
  %v2262 = vmax.f32 %v1684, %v2213
  %v2263 = vmax.f32 %v1685, %v2214
  %v2264 = vmax.f32 %v1686, %v2215
  %v2265 = vmax.f32 %v1687, %v2216
  %v2266 = vmax.f32 %v1688, %v2217
  %v2267 = vmax.f32 %v1689, %v2218
  %v2268 = vmax.f32 %v1690, %v2219
  %v2269 = vmax.f32 %v1691, %v2220
  %v2270 = vmax.f32 %v1692, %v2221
  %v2271 = vmax.f32 %v1693, %v2222
  %v2272 = vmax.f32 %v1694, %v2223
  %v2273 = vmax.f32 %v1695, %v2224
  %v2274 = vmax.f32 %v1696, %v2225
  %v2275 = vmax.f32 %v1697, %v2226
  %v2276 = vmax.f32 %v1698, %v2227
  %v2277 = vmax.f32 %v1699, %v2228
  %v2278 = vmax.f32 %v1700, %v2229
  %v2279 = vmax.f32 %v1701, %v2230
  %v2280 = vmax.f32 %v1702, %v2231
  %v2281 = vmax.f32 %v1703, %v2232
  %v2282 = vmax.f32 %v1704, %v2233
  %v2283 = vmax.f32 %v1705, %v2234
  %v2284 = vmax.f32 %v1706, %v2235
  %v2285 = vmax.f32 %v1707, %v2236
  %v2286 = vmax.f32 %v1708, %v2237
  %v2287 = vmax.f32 %v1709, %v2238
  %v2288 = vmax.f32 %v1710, %v2239
  %v2289 = vmax.f32 %v1711, %v2240
  %v2290 = vmax.f32 %v1712, %v2241
  %v2291 = vmax.f32 %v1713, %v2242
  %v2292 = vmax.f32 %v1714, %v2243
  %v2293 = vmax.f32 %v1715, %v2244
  %v2294 = vmax.f32 %v1716, %v2245
  %v2295 = vmax.f32 %v1717, %v2246
  %v2296 = vmax.f32 %v1718, %v2247
  %v2297 = vmax.f32 %v1719, %v2248
  %v2298 = vmax.f32 %v1720, %v2249
  %v2299 = vmax.f32 %v1721, %v2250
  %v2300 = vmax.f32 %v1722, %v2251
  %v2301 = vmax.f32 %v1723, %v2252
  %v2302 = vmax.f32 %v1724, %v2253
  %v2303 = vmax.f32 %v1725, %v2254
  %v2304 = vmax.f32 %v1726, %v2255
  %v2305 = vmax.f32 %v1727, %v2256
  %v2306 = vmax.f32 %v1728, %v2257
  %v2307 = vpack.c.bf16 %v2259, %v2258
  %v2308 = vpack.c.bf16 %v2261, %v2260
  %v2309 = vpack.c.bf16 %v2263, %v2262
  %v2310 = vpack.c.bf16 %v2265, %v2264
  %v2311 = vpack.c.bf16 %v2267, %v2266
  %v2312 = vpack.c.bf16 %v2269, %v2268
  %v2313 = vpack.c.bf16 %v2271, %v2270
  %v2314 = vpack.c.bf16 %v2273, %v2272
  %v2315 = vpack.c.bf16 %v2275, %v2274
  %v2316 = vpack.c.bf16 %v2277, %v2276
  %v2317 = vpack.c.bf16 %v2279, %v2278
  %v2318 = vpack.c.bf16 %v2281, %v2280
  %v2319 = vpack.c.bf16 %v2283, %v2282
  %v2320 = vpack.c.bf16 %v2285, %v2284
  %v2321 = vpack.c.bf16 %v2287, %v2286
  %v2322 = vpack.c.bf16 %v2289, %v2288
  %v2323 = vpack.c.bf16 %v2291, %v2290
  %v2324 = vpack.c.bf16 %v2293, %v2292
  %v2325 = vpack.c.bf16 %v2295, %v2294
  %v2326 = vpack.c.bf16 %v2297, %v2296
  %v2327 = vpack.c.bf16 %v2299, %v2298
  %v2328 = vpack.c.bf16 %v2301, %v2300
  %v2329 = vpack.c.bf16 %v2303, %v2302
  %v2330 = vpack.c.bf16 %v2305, %v2304
  %v2331 = vpack.c.bf16 %v2306, %v2306
  %v2357 = vunpack.c.l.b16 %v2307
  %v2358 = vunpack.c.h.b16 %v2307
  %v2359 = vunpack.c.l.b16 %v2308
  %v2360 = vunpack.c.h.b16 %v2308
  %v2361 = vunpack.c.l.b16 %v2309
  %v2362 = vunpack.c.h.b16 %v2309
  %v2363 = vunpack.c.l.b16 %v2310
  %v2364 = vunpack.c.h.b16 %v2310
  %v2365 = vunpack.c.l.b16 %v2311
  %v2366 = vunpack.c.h.b16 %v2311
  %v2367 = vunpack.c.l.b16 %v2312
  %v2368 = vunpack.c.h.b16 %v2312
  %v2369 = vunpack.c.l.b16 %v2313
  %v2370 = vunpack.c.h.b16 %v2313
  %v2371 = vunpack.c.l.b16 %v2314
  %v2372 = vunpack.c.h.b16 %v2314
  %v2373 = vunpack.c.l.b16 %v2315
  %v2374 = vunpack.c.h.b16 %v2315
  %v2375 = vunpack.c.l.b16 %v2316
  %v2376 = vunpack.c.h.b16 %v2316
  %v2377 = vunpack.c.l.b16 %v2317
  %v2378 = vunpack.c.h.b16 %v2317
  %v2379 = vunpack.c.l.b16 %v2318
  %v2380 = vunpack.c.h.b16 %v2318
  %v2381 = vunpack.c.l.b16 %v2319
  %v2382 = vunpack.c.h.b16 %v2319
  %v2383 = vunpack.c.l.b16 %v2320
  %v2384 = vunpack.c.h.b16 %v2320
  %v2385 = vunpack.c.l.b16 %v2321
  %v2386 = vunpack.c.h.b16 %v2321
  %v2387 = vunpack.c.l.b16 %v2322
  %v2388 = vunpack.c.h.b16 %v2322
  %v2389 = vunpack.c.l.b16 %v2323
  %v2390 = vunpack.c.h.b16 %v2323
  %v2391 = vunpack.c.l.b16 %v2324
  %v2392 = vunpack.c.h.b16 %v2324
  %v2393 = vunpack.c.l.b16 %v2325
  %v2394 = vunpack.c.h.b16 %v2325
  %v2395 = vunpack.c.l.b16 %v2326
  %v2396 = vunpack.c.h.b16 %v2326
  %v2397 = vunpack.c.l.b16 %v2327
  %v2398 = vunpack.c.h.b16 %v2327
  %v2399 = vunpack.c.l.b16 %v2328
  %v2400 = vunpack.c.h.b16 %v2328
  %v2401 = vunpack.c.l.b16 %v2329
  %v2402 = vunpack.c.h.b16 %v2329
  %v2403 = vunpack.c.l.b16 %v2330
  %v2404 = vunpack.c.h.b16 %v2330
  %v2405 = vunpack.c.l.b16 %v2331
  %v2406 = vpack.c.b16 %v2357, %v2357
  %v2407 = vpack.c.b16 %v2358, %v2358
  %v2408 = vpack.c.b16 %v2359, %v2359
  %v2409 = vpack.c.b16 %v2360, %v2360
  %v2410 = vpack.c.b16 %v2361, %v2361
  %v2411 = vpack.c.b16 %v2362, %v2362
  %v2412 = vpack.c.b16 %v2363, %v2363
  %v2413 = vpack.c.b16 %v2364, %v2364
  %v2414 = vpack.c.b16 %v2365, %v2365
  %v2415 = vpack.c.b16 %v2366, %v2366
  %v2416 = vpack.c.b16 %v2367, %v2367
  %v2417 = vpack.c.b16 %v2368, %v2368
  %v2418 = vpack.c.b16 %v2369, %v2369
  %v2419 = vpack.c.b16 %v2370, %v2370
  %v2420 = vpack.c.b16 %v2371, %v2371
  %v2421 = vpack.c.b16 %v2372, %v2372
  %v2422 = vpack.c.b16 %v2373, %v2373
  %v2423 = vpack.c.b16 %v2374, %v2374
  %v2424 = vpack.c.b16 %v2375, %v2375
  %v2425 = vpack.c.b16 %v2376, %v2376
  %v2426 = vpack.c.b16 %v2377, %v2377
  %v2427 = vpack.c.b16 %v2378, %v2378
  %v2428 = vpack.c.b16 %v2379, %v2379
  %v2429 = vpack.c.b16 %v2380, %v2380
  %v2430 = vpack.c.b16 %v2381, %v2381
  %v2431 = vpack.c.b16 %v2382, %v2382
  %v2432 = vpack.c.b16 %v2383, %v2383
  %v2433 = vpack.c.b16 %v2384, %v2384
  %v2434 = vpack.c.b16 %v2385, %v2385
  %v2435 = vpack.c.b16 %v2386, %v2386
  %v2436 = vpack.c.b16 %v2387, %v2387
  %v2437 = vpack.c.b16 %v2388, %v2388
  %v2438 = vpack.c.b16 %v2389, %v2389
  %v2439 = vpack.c.b16 %v2390, %v2390
  %v2440 = vpack.c.b16 %v2391, %v2391
  %v2441 = vpack.c.b16 %v2392, %v2392
  %v2442 = vpack.c.b16 %v2393, %v2393
  %v2443 = vpack.c.b16 %v2394, %v2394
  %v2444 = vpack.c.b16 %v2395, %v2395
  %v2445 = vpack.c.b16 %v2396, %v2396
  %v2446 = vpack.c.b16 %v2397, %v2397
  %v2447 = vpack.c.b16 %v2398, %v2398
  %v2448 = vpack.c.b16 %v2399, %v2399
  %v2449 = vpack.c.b16 %v2400, %v2400
  %v2450 = vpack.c.b16 %v2401, %v2401
  %v2451 = vpack.c.b16 %v2402, %v2402
  %v2452 = vpack.c.b16 %v2403, %v2403
  %v2453 = vpack.c.b16 %v2404, %v2404
  %v2454 = vpack.c.b16 %v2405, %v2405
  %vm2504 = vcmask 44032
  %2505 = vst.msk [vmem:[%s3] sm:$0xf] %vm2504, %v2406
  %2506 = vst.msk [vmem:[%s3 + $0x4] sm:$0xf] %vm2504, %v2407
  %2507 = vst.msk [vmem:[%s3 + $0x8] sm:$0xf] %vm2504, %v2408
  %2508 = vst.msk [vmem:[%s3 + $0xc] sm:$0xf] %vm2504, %v2409
  %2509 = vst.msk [vmem:[%s3 + $0x10] sm:$0xf] %vm2504, %v2410
  %2510 = vst.msk [vmem:[%s3 + $0x14] sm:$0xf] %vm2504, %v2411
  %2511 = vst.msk [vmem:[%s3 + $0x18] sm:$0xf] %vm2504, %v2412
  %2512 = vst.msk [vmem:[%s3 + $0x1c] sm:$0xf] %vm2504, %v2413
  %2513 = vst.msk [vmem:[%s3 + $0x20] sm:$0xf] %vm2504, %v2414
  %2514 = vst.msk [vmem:[%s3 + $0x24] sm:$0xf] %vm2504, %v2415
  %2515 = vst.msk [vmem:[%s3 + $0x28] sm:$0xf] %vm2504, %v2416
  %2516 = vst.msk [vmem:[%s3 + $0x2c] sm:$0xf] %vm2504, %v2417
  %2517 = vst.msk [vmem:[%s3 + $0x30] sm:$0xf] %vm2504, %v2418
  %2518 = vst.msk [vmem:[%s3 + $0x34] sm:$0xf] %vm2504, %v2419
  %2519 = vst.msk [vmem:[%s3 + $0x38] sm:$0xf] %vm2504, %v2420
  %2520 = vst.msk [vmem:[%s3 + $0x3c] sm:$0xf] %vm2504, %v2421
  %2521 = vst.msk [vmem:[%s3 + $0x40] sm:$0xf] %vm2504, %v2422
  %2522 = vst.msk [vmem:[%s3 + $0x44] sm:$0xf] %vm2504, %v2423
  %2523 = vst.msk [vmem:[%s3 + $0x48] sm:$0xf] %vm2504, %v2424
  %2524 = vst.msk [vmem:[%s3 + $0x4c] sm:$0xf] %vm2504, %v2425
  %2525 = vst.msk [vmem:[%s3 + $0x50] sm:$0xf] %vm2504, %v2426
  %2526 = vst.msk [vmem:[%s3 + $0x54] sm:$0xf] %vm2504, %v2427
  %2527 = vst.msk [vmem:[%s3 + $0x58] sm:$0xf] %vm2504, %v2428
  %2528 = vst.msk [vmem:[%s3 + $0x5c] sm:$0xf] %vm2504, %v2429
  %2529 = vst.msk [vmem:[%s3 + $0x60] sm:$0xf] %vm2504, %v2430
  %2530 = vst.msk [vmem:[%s3 + $0x64] sm:$0xf] %vm2504, %v2431
  %2531 = vst.msk [vmem:[%s3 + $0x68] sm:$0xf] %vm2504, %v2432
  %2532 = vst.msk [vmem:[%s3 + $0x6c] sm:$0xf] %vm2504, %v2433
  %2533 = vst.msk [vmem:[%s3 + $0x70] sm:$0xf] %vm2504, %v2434
  %2534 = vst.msk [vmem:[%s3 + $0x74] sm:$0xf] %vm2504, %v2435
  %2535 = vst.msk [vmem:[%s3 + $0x78] sm:$0xf] %vm2504, %v2436
  %2536 = vst.msk [vmem:[%s3 + $0x7c] sm:$0xf] %vm2504, %v2437
  %2537 = vst.msk [vmem:[%s3 + $0x80] sm:$0xf] %vm2504, %v2438
  %2538 = vst.msk [vmem:[%s3 + $0x84] sm:$0xf] %vm2504, %v2439
  %2539 = vst.msk [vmem:[%s3 + $0x88] sm:$0xf] %vm2504, %v2440
  %2540 = vst.msk [vmem:[%s3 + $0x8c] sm:$0xf] %vm2504, %v2441
  %2541 = vst.msk [vmem:[%s3 + $0x90] sm:$0xf] %vm2504, %v2442
  %2542 = vst.msk [vmem:[%s3 + $0x94] sm:$0xf] %vm2504, %v2443
  %2543 = vst.msk [vmem:[%s3 + $0x98] sm:$0xf] %vm2504, %v2444
  %2544 = vst.msk [vmem:[%s3 + $0x9c] sm:$0xf] %vm2504, %v2445
  %2545 = vst.msk [vmem:[%s3 + $0xa0] sm:$0xf] %vm2504, %v2446
  %2546 = vst.msk [vmem:[%s3 + $0xa4] sm:$0xf] %vm2504, %v2447
  %2547 = vst.msk [vmem:[%s3 + $0xa8] sm:$0xf] %vm2504, %v2448
  %2548 = vst.msk [vmem:[%s3 + $0xac] sm:$0xf] %vm2504, %v2449
  %2549 = vst.msk [vmem:[%s3 + $0xb0] sm:$0xf] %vm2504, %v2450
  %2550 = vst.msk [vmem:[%s3 + $0xb4] sm:$0xf] %vm2504, %v2451
  %2551 = vst.msk [vmem:[%s3 + $0xb8] sm:$0xf] %vm2504, %v2452
  %2552 = vst.msk [vmem:[%s3 + $0xbc] sm:$0xf] %vm2504, %v2453
  %2553 = vst.msk [vmem:[%s3 + $0xc0] sm:$0xf] %vm2504, %v2454
  // Predicated region
  $region14: #{network_forward.3} parent=0 // pred_check
    _
  $region15: #{network_forward.3} parent=0 // pred_check_branch
    %2555 = sbr.rel (0) target = $region17
  $region16: #{network_forward.3} parent=0 // pred_region
    _
  $region17: #{network_forward.3} parent=0 // pred_fallthru
    _
  // Predicated region
  $region18: #{network_forward.3} parent=0 // pred_check
    _
  $region19: #{network_forward.3} parent=0 // pred_check_branch
    %2557 = sbr.rel (0) target = $region21
  $region20: #{network_forward.3} parent=0 // pred_region
    _
  $region21: #{network_forward.3} parent=0 // pred_fallthru
    _

// kernel: network_forward.4
$region0: #{network_forward.4}
  #allocation0 [shape = 'u32[]', space=smem, size = 0x4, offset = 0x4, fixed_abs, tag = 'smem constant byte address 0x4 - core index']
  #allocation1 [shape = 'u32[144,128]{1,0:T(1,128)}', space=vmem, size = 0x12000, scoped, tag = 'internal scratch']
  %s0 = inlined_call_operand.vmem [shape: bf16[4,56,150], index: 0, kind: input, shape index: {}]
  %s1 = inlined_call_operand.vmem [shape: bf16[150,16], index: 1, kind: input, shape index: {}]
  %s2 = inlined_call_operand.vmem [shape: f32[1,16], index: 2, kind: input, shape index: {}]
  %s3 = inlined_call_operand.vmem [shape: bf16[56,16], index: 3, kind: output, shape index: {}]
  %s4 = sld [smem:[#allocation0]]
  $region22: #{network_forward.4} parent=0
    _
  %s6 = ssub.s32 1, %s4
  %s7 = scalar_select 0, %s6, %s4
  // Predicated region
  $region2: #{network_forward.4} parent=0 // pred_check
    _
  $region3: #{network_forward.4} parent=0 // pred_check_branch
    %9 = sbr.rel (0) target = $region5
  $region4: #{network_forward.4} parent=0 // pred_region
    _
  $region5: #{network_forward.4} parent=0 // pred_fallthru
    _
  // Predicated region
  $region6: #{network_forward.4} parent=0 // pred_check
    _
  $region7: #{network_forward.4} parent=0 // pred_check_branch
    %11 = sbr.rel (0) target = $region9
  $region8: #{network_forward.4} parent=0 // pred_region
    _
  $region9: #{network_forward.4} parent=0 // pred_fallthru
    _
  // Predicated region
  $region10: #{network_forward.4} parent=0 // pred_check
    _
  $region11: #{network_forward.4} parent=0 // pred_check_branch
    %13 = sbr.rel (0) target = $region13
  $region12: #{network_forward.4} parent=0 // pred_region
    _
  $region13: #{network_forward.4} parent=0 // pred_fallthru
    _
  %v15 = vld [vmem:[%s1] sm:$0xf]
  %v16 = vld [vmem:[%s1 + $0x4] sm:$0xf]
  %v17 = vld [vmem:[%s1 + $0x8] sm:$0xf]
  %v18 = vld [vmem:[%s1 + $0xc] sm:$0xf]
  %v19 = vld [vmem:[%s1 + $0x10] sm:$0xf]
  %v20 = vld [vmem:[%s1 + $0x14] sm:$0xf]
  %v21 = vld [vmem:[%s1 + $0x18] sm:$0xf]
  %v22 = vld [vmem:[%s1 + $0x1c] sm:$0xf]
  %v23 = vld [vmem:[%s1 + $0x20] sm:$0xf]
  %v24 = vld [vmem:[%s1 + $0x24] sm:$0xf]
  %v25 = vld [vmem:[%s1 + $0x28] sm:$0xf]
  %v26 = vld [vmem:[%s1 + $0x2c] sm:$0xf]
  %v27 = vld [vmem:[%s1 + $0x30] sm:$0xf]
  %v28 = vld [vmem:[%s1 + $0x34] sm:$0xf]
  %v29 = vld [vmem:[%s1 + $0x38] sm:$0xf]
  %v30 = vld [vmem:[%s1 + $0x3c] sm:$0xf]
  %v31 = vld [vmem:[%s1 + $0x40] sm:$0xf]
  %v32 = vld [vmem:[%s1 + $0x44] sm:$0xf]
  %v33 = vld [vmem:[%s1 + $0x48] sm:$0x7]
  %v34 = vld [vmem:[%s2] sm:$0x1]
  %v35 = vld [vmem:[%s0] sm:$0xff]
  %v36 = vld [vmem:[%s0 + $0x8] sm:$0xff]
  %v37 = vld [vmem:[%s0 + $0x10] sm:$0xff]
  %v38 = vld [vmem:[%s0 + $0x18] sm:$0xff]
  %v39 = vld [vmem:[%s0 + $0x20] sm:$0xff]
  %v40 = vld [vmem:[%s0 + $0x28] sm:$0xff]
  %v41 = vld [vmem:[%s0 + $0x30] sm:$0xff]
  %v43 = vlaneseq
  %v44 = vshrl.u32 %v43, 7
  %v45 = vsub.s32 0, %v44
  %v46 = vrot.slane %v34, %v45
  %v55 = vunpack.c.l.b16 %v35
  %v56 = vunpack.c.h.b16 %v35
  %v57 = vunpack.c.l.b16 %v36
  %v58 = vunpack.c.h.b16 %v36
  %v59 = vunpack.c.l.b16 %v37
  %v60 = vunpack.c.h.b16 %v37
  %v61 = vunpack.c.l.b16 %v38
  %v62 = vunpack.c.h.b16 %v38
  %v63 = vunpack.c.l.b16 %v39
  %v64 = vunpack.c.h.b16 %v39
  %v65 = vunpack.c.l.b16 %v40
  %v66 = vunpack.c.h.b16 %v40
  %v67 = vunpack.c.l.b16 %v41
  %v68 = vunpack.c.h.b16 %v41
  %v69 = vpack.c.b16 %v57, %v55
  %v70 = vpack.c.b16 %v58, %v56
  %v71 = vpack.c.b16 %v61, %v59
  %v72 = vpack.c.b16 %v62, %v60
  %v73 = vpack.c.b16 %v65, %v63
  %v74 = vpack.c.b16 %v66, %v64
  %v75 = vpack.c.b16 %v67, %v67
  %v76 = vpack.c.b16 %v68, %v68
  %v100 = vunpack.c.l.b16 %v15
  %v101 = vunpack.c.l.b16 %v16
  %v102 = vunpack.c.l.b16 %v17
  %v103 = vunpack.c.l.b16 %v18
  %v104 = vunpack.c.l.b16 %v19
  %v105 = vunpack.c.l.b16 %v20
  %v106 = vunpack.c.l.b16 %v21
  %v107 = vunpack.c.l.b16 %v22
  %v108 = vunpack.c.l.b16 %v23
  %v109 = vunpack.c.l.b16 %v24
  %v110 = vunpack.c.l.b16 %v25
  %v111 = vunpack.c.l.b16 %v26
  %v112 = vunpack.c.l.b16 %v27
  %v113 = vunpack.c.l.b16 %v28
  %v114 = vunpack.c.l.b16 %v29
  %v115 = vunpack.c.l.b16 %v30
  %v116 = vunpack.c.l.b16 %v31
  %v117 = vunpack.c.l.b16 %v32
  %v118 = vunpack.c.l.b16 %v33
  %v119 = vpack.c.b16 %v101, %v100
  %v120 = vpack.c.b16 %v103, %v102
  %v121 = vpack.c.b16 %v105, %v104
  %v122 = vpack.c.b16 %v107, %v106
  %v123 = vpack.c.b16 %v109, %v108
  %v124 = vpack.c.b16 %v111, %v110
  %v125 = vpack.c.b16 %v113, %v112
  %v126 = vpack.c.b16 %v115, %v114
  %v127 = vpack.c.b16 %v117, %v116
  %v128 = vpack.c.b16 %v118, %v118
  %vm138 = vcmask 179200
  %v140 = vsel %vm138, %v70, 0
  %v143 = vsel %vm138, %v72, 0
  %v146 = vsel %vm138, %v74, 0
  %v149 = vsel %vm138, %v76, 0
  %vm151 = vcmask 1042432
  %v153 = vsel %vm151, %v128, 0
  %155 = vmatprep.subr.bf16.mxu0 0
  %156 = vmatpush1.bf16.msra.mxu0 %v119
  %157 = vmatprep.subr.bf16.mxu0 0
  %158 = vmatpush1.bf16.msra.mxu0 %v120
  %159 = vmatprep.subr.bf16.mxu0 0
  %160 = vmatpush1.bf16.msra.mxu0 %v121
  %161 = vmatprep.subr.bf16.mxu0 0
  %162 = vmatpush1.bf16.msra.mxu0 %v122
  %163 = vmatprep.subr.bf16.mxu0 0
  %164 = vmatpush1.bf16.msra.mxu0 %v123
  %165 = vmatprep.subr.bf16.mxu0 0
  %166 = vmatpush1.bf16.msra.mxu0 %v124
  %167 = vmatprep.subr.bf16.mxu0 0
  %168 = vmatpush1.bf16.msra.mxu0 %v125
  %169 = vmatprep.subr.bf16.mxu0 0
  %170 = vmatpush1.bf16.msra.mxu0 %v126
  %171 = vmatprep.subr.bf16.mxu0 0
  %172 = vmatpush1.bf16.msra.mxu0 %v127
  %173 = vmatprep.subr.bf16.mxu0 0
  %174 = vmatpush1.bf16.msra.mxu0 %v153
  %175 = vmatprep.subr.bf16.mxu0 0
  %176 = vmatpush1.bf16.msra.mxu0 0
  %177 = vmatprep.subr.bf16.mxu0 0
  %178 = vmatpush1.bf16.msra.mxu0 0
  %179 = vmatprep.subr.bf16.mxu0 0
  %180 = vmatpush1.bf16.msra.mxu0 0
  %181 = vmatprep.subr.bf16.mxu0 0
  %182 = vmatpush1.bf16.msra.mxu0 0
  %183 = vmatprep.subr.bf16.mxu0 0
  %184 = vmatpush1.bf16.msra.mxu0 0
  %185 = vmatprep.subr.bf16.mxu0 0
  %186 = vmatpush1.bf16.msra.mxu0 0
  %187 = vmatprep.mubr.bf16.mxu0 %v140
  %188 = vmatmul.mubr.bf16.gmra.mrb[0].mxu0 %v69
  %v189 = vpop.f32.mrb[0].mxu0
  %v190 = vadd.f32 %v46, %v189
  %v191 = vpop.f32.mrb[0].mxu0
  %v192 = vpop.f32.mrb[0].mxu0
  %v193 = vadd.f32 %v46, %v192
  %v194 = vpop.f32.mrb[0].mxu0
  %195 = vmatprep.mubr.bf16.mxu0 %v143
  %196 = vmatmul.mubr.bf16.gmra.mrb[0].mxu0 %v71
  %v197 = vpop.f32.mrb[0].mxu0
  %v198 = vadd.f32 %v46, %v197
  %v199 = vpop.f32.mrb[0].mxu0
  %v200 = vpop.f32.mrb[0].mxu0
  %v201 = vadd.f32 %v46, %v200
  %v202 = vpop.f32.mrb[0].mxu0
  %203 = vmatprep.mubr.bf16.mxu0 %v146
  %204 = vmatmul.mubr.bf16.gmra.mrb[0].mxu0 %v73
  %v205 = vpop.f32.mrb[0].mxu0
  %v206 = vadd.f32 %v46, %v205
  %v207 = vpop.f32.mrb[0].mxu0
  %v208 = vpop.f32.mrb[0].mxu0
  %v209 = vadd.f32 %v46, %v208
  %v210 = vpop.f32.mrb[0].mxu0
  %211 = vmatprep.mubr.bf16.mxu0 %v149
  %212 = vmatmul.mubr.bf16.gmra.mrb[0].mxu0 %v75
  %v213 = vpop.f32.mrb[0].mxu0
  %v214 = vadd.f32 %v46, %v213
  %v215 = vpop.f32.mrb[0].mxu0
  %v216 = vpop.f32.mrb[0].mxu0
  %v217 = vpop.f32.mrb[0].mxu0
  %218 = vdwg.mxu0
  %v219 = vmax.f32 %v190, 0.0
  %v220 = vmax.f32 %v193, 0.0
  %v221 = vmax.f32 %v198, 0.0
  %v222 = vmax.f32 %v201, 0.0
  %v223 = vmax.f32 %v206, 0.0
  %v224 = vmax.f32 %v209, 0.0
  %v225 = vmax.f32 %v214, 0.0
  %s226 = scalar_lea.vmem %s0, 56
  %v227 = vld [vmem:[%s226] sm:$0xff]
  %v228 = vld [vmem:[%s226 + $0x8] sm:$0xff]
  %v229 = vld [vmem:[%s226 + $0x10] sm:$0xff]
  %v230 = vld [vmem:[%s226 + $0x18] sm:$0xff]
  %v231 = vld [vmem:[%s226 + $0x20] sm:$0xff]
  %v232 = vld [vmem:[%s226 + $0x28] sm:$0xff]
  %v233 = vld [vmem:[%s226 + $0x30] sm:$0xff]
  %v241 = vunpack.c.l.b16 %v227
  %v242 = vunpack.c.h.b16 %v227
  %v243 = vunpack.c.l.b16 %v228
  %v244 = vunpack.c.h.b16 %v228
  %v245 = vunpack.c.l.b16 %v229
  %v246 = vunpack.c.h.b16 %v229
  %v247 = vunpack.c.l.b16 %v230
  %v248 = vunpack.c.h.b16 %v230
  %v249 = vunpack.c.l.b16 %v231
  %v250 = vunpack.c.h.b16 %v231
  %v251 = vunpack.c.l.b16 %v232
  %v252 = vunpack.c.h.b16 %v232
  %v253 = vunpack.c.l.b16 %v233
  %v254 = vunpack.c.h.b16 %v233
  %v255 = vpack.c.b16 %v243, %v241
  %v256 = vpack.c.b16 %v244, %v242
  %v257 = vpack.c.b16 %v247, %v245
  %v258 = vpack.c.b16 %v248, %v246
  %v259 = vpack.c.b16 %v251, %v249
  %v260 = vpack.c.b16 %v252, %v250
  %v261 = vpack.c.b16 %v253, %v253
  %v262 = vpack.c.b16 %v254, %v254
  %v268 = vsel %vm138, %v256, 0
  %v271 = vsel %vm138, %v258, 0
  %v274 = vsel %vm138, %v260, 0
  %v277 = vsel %vm138, %v262, 0
  %279 = vmatprep.subr.bf16.mxu0 0
  %280 = vmatpush1.bf16.msra.mxu0 %v119
  %281 = vmatprep.subr.bf16.mxu0 0
  %282 = vmatpush1.bf16.msra.mxu0 %v120
  %283 = vmatprep.subr.bf16.mxu0 0
  %284 = vmatpush1.bf16.msra.mxu0 %v121
  %285 = vmatprep.subr.bf16.mxu0 0
  %286 = vmatpush1.bf16.msra.mxu0 %v122
  %287 = vmatprep.subr.bf16.mxu0 0
  %288 = vmatpush1.bf16.msra.mxu0 %v123
  %289 = vmatprep.subr.bf16.mxu0 0
  %290 = vmatpush1.bf16.msra.mxu0 %v124
  %291 = vmatprep.subr.bf16.mxu0 0
  %292 = vmatpush1.bf16.msra.mxu0 %v125
  %293 = vmatprep.subr.bf16.mxu0 0
  %294 = vmatpush1.bf16.msra.mxu0 %v126
  %295 = vmatprep.subr.bf16.mxu0 0
  %296 = vmatpush1.bf16.msra.mxu0 %v127
  %297 = vmatprep.subr.bf16.mxu0 0
  %298 = vmatpush1.bf16.msra.mxu0 %v153
  %299 = vmatprep.subr.bf16.mxu0 0
  %300 = vmatpush1.bf16.msra.mxu0 0
  %301 = vmatprep.subr.bf16.mxu0 0
  %302 = vmatpush1.bf16.msra.mxu0 0
  %303 = vmatprep.subr.bf16.mxu0 0
  %304 = vmatpush1.bf16.msra.mxu0 0
  %305 = vmatprep.subr.bf16.mxu0 0
  %306 = vmatpush1.bf16.msra.mxu0 0
  %307 = vmatprep.subr.bf16.mxu0 0
  %308 = vmatpush1.bf16.msra.mxu0 0
  %309 = vmatprep.subr.bf16.mxu0 0
  %310 = vmatpush1.bf16.msra.mxu0 0
  %311 = vmatprep.mubr.bf16.mxu0 %v268
  %312 = vmatmul.mubr.bf16.gmra.mrb[0].mxu0 %v255
  %v313 = vpop.f32.mrb[0].mxu0
  %v314 = vadd.f32 %v46, %v313
  %v315 = vpop.f32.mrb[0].mxu0
  %v316 = vpop.f32.mrb[0].mxu0
  %v317 = vadd.f32 %v46, %v316
  %v318 = vpop.f32.mrb[0].mxu0
  %319 = vmatprep.mubr.bf16.mxu0 %v271
  %320 = vmatmul.mubr.bf16.gmra.mrb[0].mxu0 %v257
  %v321 = vpop.f32.mrb[0].mxu0
  %v322 = vadd.f32 %v46, %v321
  %v323 = vpop.f32.mrb[0].mxu0
  %v324 = vpop.f32.mrb[0].mxu0
  %v325 = vadd.f32 %v46, %v324
  %v326 = vpop.f32.mrb[0].mxu0
  %327 = vmatprep.mubr.bf16.mxu0 %v274
  %328 = vmatmul.mubr.bf16.gmra.mrb[0].mxu0 %v259
  %v329 = vpop.f32.mrb[0].mxu0
  %v330 = vadd.f32 %v46, %v329
  %v331 = vpop.f32.mrb[0].mxu0
  %v332 = vpop.f32.mrb[0].mxu0
  %v333 = vadd.f32 %v46, %v332
  %v334 = vpop.f32.mrb[0].mxu0
  %335 = vmatprep.mubr.bf16.mxu0 %v277
  %336 = vmatmul.mubr.bf16.gmra.mrb[0].mxu0 %v261
  %v337 = vpop.f32.mrb[0].mxu0
  %v338 = vadd.f32 %v46, %v337
  %v339 = vpop.f32.mrb[0].mxu0
  %v340 = vpop.f32.mrb[0].mxu0
  %v341 = vpop.f32.mrb[0].mxu0
  %342 = vdwg.mxu0
  %v343 = vmax.f32 %v314, 0.0
  %v344 = vmax.f32 %v317, 0.0
  %v345 = vmax.f32 %v322, 0.0
  %v346 = vmax.f32 %v325, 0.0
  %v347 = vmax.f32 %v330, 0.0
  %v348 = vmax.f32 %v333, 0.0
  %v349 = vmax.f32 %v338, 0.0
  %v350 = vmax.f32 %v219, %v343
  %v351 = vmax.f32 %v220, %v344
  %v352 = vmax.f32 %v221, %v345
  %v353 = vmax.f32 %v222, %v346
  %v354 = vmax.f32 %v223, %v347
  %v355 = vmax.f32 %v224, %v348
  %v356 = vmax.f32 %v225, %v349
  %s357 = scalar_lea.vmem %s0, 112
  %v358 = vld [vmem:[%s357] sm:$0xff]
  %v359 = vld [vmem:[%s357 + $0x8] sm:$0xff]
  %v360 = vld [vmem:[%s357 + $0x10] sm:$0xff]
  %v361 = vld [vmem:[%s357 + $0x18] sm:$0xff]
  %v362 = vld [vmem:[%s357 + $0x20] sm:$0xff]
  %v363 = vld [vmem:[%s357 + $0x28] sm:$0xff]
  %v364 = vld [vmem:[%s357 + $0x30] sm:$0xff]
  %v372 = vunpack.c.l.b16 %v358
  %v373 = vunpack.c.h.b16 %v358
  %v374 = vunpack.c.l.b16 %v359
  %v375 = vunpack.c.h.b16 %v359
  %v376 = vunpack.c.l.b16 %v360
  %v377 = vunpack.c.h.b16 %v360
  %v378 = vunpack.c.l.b16 %v361
  %v379 = vunpack.c.h.b16 %v361
  %v380 = vunpack.c.l.b16 %v362
  %v381 = vunpack.c.h.b16 %v362
  %v382 = vunpack.c.l.b16 %v363
  %v383 = vunpack.c.h.b16 %v363
  %v384 = vunpack.c.l.b16 %v364
  %v385 = vunpack.c.h.b16 %v364
  %v386 = vpack.c.b16 %v374, %v372
  %v387 = vpack.c.b16 %v375, %v373
  %v388 = vpack.c.b16 %v378, %v376
  %v389 = vpack.c.b16 %v379, %v377
  %v390 = vpack.c.b16 %v382, %v380
  %v391 = vpack.c.b16 %v383, %v381
  %v392 = vpack.c.b16 %v384, %v384
  %v393 = vpack.c.b16 %v385, %v385
  %v399 = vsel %vm138, %v387, 0
  %v402 = vsel %vm138, %v389, 0
  %v405 = vsel %vm138, %v391, 0
  %v408 = vsel %vm138, %v393, 0
  %410 = vmatprep.subr.bf16.mxu0 0
  %411 = vmatpush1.bf16.msra.mxu0 %v119
  %412 = vmatprep.subr.bf16.mxu0 0
  %413 = vmatpush1.bf16.msra.mxu0 %v120
  %414 = vmatprep.subr.bf16.mxu0 0
  %415 = vmatpush1.bf16.msra.mxu0 %v121
  %416 = vmatprep.subr.bf16.mxu0 0
  %417 = vmatpush1.bf16.msra.mxu0 %v122
  %418 = vmatprep.subr.bf16.mxu0 0
  %419 = vmatpush1.bf16.msra.mxu0 %v123
  %420 = vmatprep.subr.bf16.mxu0 0
  %421 = vmatpush1.bf16.msra.mxu0 %v124
  %422 = vmatprep.subr.bf16.mxu0 0
  %423 = vmatpush1.bf16.msra.mxu0 %v125
  %424 = vmatprep.subr.bf16.mxu0 0
  %425 = vmatpush1.bf16.msra.mxu0 %v126
  %426 = vmatprep.subr.bf16.mxu0 0
  %427 = vmatpush1.bf16.msra.mxu0 %v127
  %428 = vmatprep.subr.bf16.mxu0 0
  %429 = vmatpush1.bf16.msra.mxu0 %v153
  %430 = vmatprep.subr.bf16.mxu0 0
  %431 = vmatpush1.bf16.msra.mxu0 0
  %432 = vmatprep.subr.bf16.mxu0 0
  %433 = vmatpush1.bf16.msra.mxu0 0
  %434 = vmatprep.subr.bf16.mxu0 0
  %435 = vmatpush1.bf16.msra.mxu0 0
  %436 = vmatprep.subr.bf16.mxu0 0
  %437 = vmatpush1.bf16.msra.mxu0 0
  %438 = vmatprep.subr.bf16.mxu0 0
  %439 = vmatpush1.bf16.msra.mxu0 0
  %440 = vmatprep.subr.bf16.mxu0 0
  %441 = vmatpush1.bf16.msra.mxu0 0
  %442 = vmatprep.mubr.bf16.mxu0 %v399
  %443 = vmatmul.mubr.bf16.gmra.mrb[0].mxu0 %v386
  %v444 = vpop.f32.mrb[0].mxu0
  %v445 = vadd.f32 %v46, %v444
  %v446 = vpop.f32.mrb[0].mxu0
  %v447 = vpop.f32.mrb[0].mxu0
  %v448 = vadd.f32 %v46, %v447
  %v449 = vpop.f32.mrb[0].mxu0
  %450 = vmatprep.mubr.bf16.mxu0 %v402
  %451 = vmatmul.mubr.bf16.gmra.mrb[0].mxu0 %v388
  %v452 = vpop.f32.mrb[0].mxu0
  %v453 = vadd.f32 %v46, %v452
  %v454 = vpop.f32.mrb[0].mxu0
  %v455 = vpop.f32.mrb[0].mxu0
  %v456 = vadd.f32 %v46, %v455
  %v457 = vpop.f32.mrb[0].mxu0
  %458 = vmatprep.mubr.bf16.mxu0 %v405
  %459 = vmatmul.mubr.bf16.gmra.mrb[0].mxu0 %v390
  %v460 = vpop.f32.mrb[0].mxu0
  %v461 = vadd.f32 %v46, %v460
  %v462 = vpop.f32.mrb[0].mxu0
  %v463 = vpop.f32.mrb[0].mxu0
  %v464 = vadd.f32 %v46, %v463
  %v465 = vpop.f32.mrb[0].mxu0
  %466 = vmatprep.mubr.bf16.mxu0 %v408
  %467 = vmatmul.mubr.bf16.gmra.mrb[0].mxu0 %v392
  %v468 = vpop.f32.mrb[0].mxu0
  %v469 = vadd.f32 %v46, %v468
  %v470 = vpop.f32.mrb[0].mxu0
  %v471 = vpop.f32.mrb[0].mxu0
  %v472 = vpop.f32.mrb[0].mxu0
  %473 = vdwg.mxu0
  %v474 = vmax.f32 %v445, 0.0
  %v475 = vmax.f32 %v448, 0.0
  %v476 = vmax.f32 %v453, 0.0
  %v477 = vmax.f32 %v456, 0.0
  %v478 = vmax.f32 %v461, 0.0
  %v479 = vmax.f32 %v464, 0.0
  %v480 = vmax.f32 %v469, 0.0
  %v481 = vmax.f32 %v350, %v474
  %v482 = vmax.f32 %v351, %v475
  %v483 = vmax.f32 %v352, %v476
  %v484 = vmax.f32 %v353, %v477
  %v485 = vmax.f32 %v354, %v478
  %v486 = vmax.f32 %v355, %v479
  %v487 = vmax.f32 %v356, %v480
  %s488 = scalar_lea.vmem %s0, 168
  %v489 = vld [vmem:[%s488] sm:$0xff]
  %v490 = vld [vmem:[%s488 + $0x8] sm:$0xff]
  %v491 = vld [vmem:[%s488 + $0x10] sm:$0xff]
  %v492 = vld [vmem:[%s488 + $0x18] sm:$0xff]
  %v493 = vld [vmem:[%s488 + $0x20] sm:$0xff]
  %v494 = vld [vmem:[%s488 + $0x28] sm:$0xff]
  %v495 = vld [vmem:[%s488 + $0x30] sm:$0xff]
  %v503 = vunpack.c.l.b16 %v489
  %v504 = vunpack.c.h.b16 %v489
  %v505 = vunpack.c.l.b16 %v490
  %v506 = vunpack.c.h.b16 %v490
  %v507 = vunpack.c.l.b16 %v491
  %v508 = vunpack.c.h.b16 %v491
  %v509 = vunpack.c.l.b16 %v492
  %v510 = vunpack.c.h.b16 %v492
  %v511 = vunpack.c.l.b16 %v493
  %v512 = vunpack.c.h.b16 %v493
  %v513 = vunpack.c.l.b16 %v494
  %v514 = vunpack.c.h.b16 %v494
  %v515 = vunpack.c.l.b16 %v495
  %v516 = vunpack.c.h.b16 %v495
  %v517 = vpack.c.b16 %v505, %v503
  %v518 = vpack.c.b16 %v506, %v504
  %v519 = vpack.c.b16 %v509, %v507
  %v520 = vpack.c.b16 %v510, %v508
  %v521 = vpack.c.b16 %v513, %v511
  %v522 = vpack.c.b16 %v514, %v512
  %v523 = vpack.c.b16 %v515, %v515
  %v524 = vpack.c.b16 %v516, %v516
  %v530 = vsel %vm138, %v518, 0
  %v533 = vsel %vm138, %v520, 0
  %v536 = vsel %vm138, %v522, 0
  %v539 = vsel %vm138, %v524, 0
  %541 = vmatprep.subr.bf16.mxu0 0
  %542 = vmatpush1.bf16.msra.mxu0 %v119
  %543 = vmatprep.subr.bf16.mxu0 0
  %544 = vmatpush1.bf16.msra.mxu0 %v120
  %545 = vmatprep.subr.bf16.mxu0 0
  %546 = vmatpush1.bf16.msra.mxu0 %v121
  %547 = vmatprep.subr.bf16.mxu0 0
  %548 = vmatpush1.bf16.msra.mxu0 %v122
  %549 = vmatprep.subr.bf16.mxu0 0
  %550 = vmatpush1.bf16.msra.mxu0 %v123
  %551 = vmatprep.subr.bf16.mxu0 0
  %552 = vmatpush1.bf16.msra.mxu0 %v124
  %553 = vmatprep.subr.bf16.mxu0 0
  %554 = vmatpush1.bf16.msra.mxu0 %v125
  %555 = vmatprep.subr.bf16.mxu0 0
  %556 = vmatpush1.bf16.msra.mxu0 %v126
  %557 = vmatprep.subr.bf16.mxu0 0
  %558 = vmatpush1.bf16.msra.mxu0 %v127
  %559 = vmatprep.subr.bf16.mxu0 0
  %560 = vmatpush1.bf16.msra.mxu0 %v153
  %561 = vmatprep.subr.bf16.mxu0 0
  %562 = vmatpush1.bf16.msra.mxu0 0
  %563 = vmatprep.subr.bf16.mxu0 0
  %564 = vmatpush1.bf16.msra.mxu0 0
  %565 = vmatprep.subr.bf16.mxu0 0
  %566 = vmatpush1.bf16.msra.mxu0 0
  %567 = vmatprep.subr.bf16.mxu0 0
  %568 = vmatpush1.bf16.msra.mxu0 0
  %569 = vmatprep.subr.bf16.mxu0 0
  %570 = vmatpush1.bf16.msra.mxu0 0
  %571 = vmatprep.subr.bf16.mxu0 0
  %572 = vmatpush1.bf16.msra.mxu0 0
  %573 = vmatprep.mubr.bf16.mxu0 %v530
  %574 = vmatmul.mubr.bf16.gmra.mrb[0].mxu0 %v517
  %v575 = vpop.f32.mrb[0].mxu0
  %v576 = vadd.f32 %v46, %v575
  %v577 = vpop.f32.mrb[0].mxu0
  %v578 = vpop.f32.mrb[0].mxu0
  %v579 = vadd.f32 %v46, %v578
  %v580 = vpop.f32.mrb[0].mxu0
  %581 = vmatprep.mubr.bf16.mxu0 %v533
  %582 = vmatmul.mubr.bf16.gmra.mrb[0].mxu0 %v519
  %v583 = vpop.f32.mrb[0].mxu0
  %v584 = vadd.f32 %v46, %v583
  %v585 = vpop.f32.mrb[0].mxu0
  %v586 = vpop.f32.mrb[0].mxu0
  %v587 = vadd.f32 %v46, %v586
  %v588 = vpop.f32.mrb[0].mxu0
  %589 = vmatprep.mubr.bf16.mxu0 %v536
  %590 = vmatmul.mubr.bf16.gmra.mrb[0].mxu0 %v521
  %v591 = vpop.f32.mrb[0].mxu0
  %v592 = vadd.f32 %v46, %v591
  %v593 = vpop.f32.mrb[0].mxu0
  %v594 = vpop.f32.mrb[0].mxu0
  %v595 = vadd.f32 %v46, %v594
  %v596 = vpop.f32.mrb[0].mxu0
  %597 = vmatprep.mubr.bf16.mxu0 %v539
  %598 = vmatmul.mubr.bf16.gmra.mrb[0].mxu0 %v523
  %v599 = vpop.f32.mrb[0].mxu0
  %v600 = vadd.f32 %v46, %v599
  %v601 = vpop.f32.mrb[0].mxu0
  %v602 = vpop.f32.mrb[0].mxu0
  %v603 = vpop.f32.mrb[0].mxu0
  %604 = vdwg.mxu0
  %v605 = vmax.f32 %v576, 0.0
  %v606 = vmax.f32 %v579, 0.0
  %v607 = vmax.f32 %v584, 0.0
  %v608 = vmax.f32 %v587, 0.0
  %v609 = vmax.f32 %v592, 0.0
  %v610 = vmax.f32 %v595, 0.0
  %v611 = vmax.f32 %v600, 0.0
  %v612 = vmax.f32 %v481, %v605
  %v613 = vmax.f32 %v482, %v606
  %v614 = vmax.f32 %v483, %v607
  %v615 = vmax.f32 %v484, %v608
  %v616 = vmax.f32 %v485, %v609
  %v617 = vmax.f32 %v486, %v610
  %v618 = vmax.f32 %v487, %v611
  %v619 = vpack.c.bf16 %v613, %v612
  %v620 = vpack.c.bf16 %v615, %v614
  %v621 = vpack.c.bf16 %v617, %v616
  %v622 = vpack.c.bf16 %v618, %v618
  %v627 = vunpack.c.l.b16 %v619
  %v628 = vunpack.c.h.b16 %v619
  %v629 = vunpack.c.l.b16 %v620
  %v630 = vunpack.c.h.b16 %v620
  %v631 = vunpack.c.l.b16 %v621
  %v632 = vunpack.c.h.b16 %v621
  %v633 = vunpack.c.l.b16 %v622
  %v634 = vpack.c.b16 %v627, %v627
  %v635 = vpack.c.b16 %v628, %v628
  %v636 = vpack.c.b16 %v629, %v629
  %v637 = vpack.c.b16 %v630, %v630
  %v638 = vpack.c.b16 %v631, %v631
  %v639 = vpack.c.b16 %v632, %v632
  %v640 = vpack.c.b16 %v633, %v633
  %vm648 = vcmask 125952
  %649 = vst.msk [vmem:[%s3] sm:$0xf] %vm648, %v634
  %650 = vst.msk [vmem:[%s3 + $0x4] sm:$0xf] %vm648, %v635
  %651 = vst.msk [vmem:[%s3 + $0x8] sm:$0xf] %vm648, %v636
  %652 = vst.msk [vmem:[%s3 + $0xc] sm:$0xf] %vm648, %v637
  %653 = vst.msk [vmem:[%s3 + $0x10] sm:$0xf] %vm648, %v638
  %654 = vst.msk [vmem:[%s3 + $0x14] sm:$0xf] %vm648, %v639
  %655 = vst.msk [vmem:[%s3 + $0x18] sm:$0xf] %vm648, %v640
  // Predicated region
  $region14: #{network_forward.4} parent=0 // pred_check
    _
  $region15: #{network_forward.4} parent=0 // pred_check_branch
    %657 = sbr.rel (0) target = $region17
  $region16: #{network_forward.4} parent=0 // pred_region
    _
  $region17: #{network_forward.4} parent=0 // pred_fallthru
    _
  // Predicated region
  $region18: #{network_forward.4} parent=0 // pred_check
    _
  $region19: #{network_forward.4} parent=0 // pred_check_branch
    %659 = sbr.rel (0) target = $region21
  $region20: #{network_forward.4} parent=0 // pred_region
    _
  $region21: #{network_forward.4} parent=0 // pred_fallthru
    _

// kernel: network_forward.5
$region0: #{network_forward.5}
  #allocation0 [shape = 'u32[]', space=smem, size = 0x4, offset = 0x4, fixed_abs, tag = 'smem constant byte address 0x4 - core index']
  #allocation1 [shape = 'u32[144,128]{1,0:T(1,128)}', space=vmem, size = 0x12000, scoped, tag = 'internal scratch']
  %s0 = inlined_call_operand.vmem [shape: bf16[8,400], index: 0, kind: input, shape index: {}]
  %s1 = inlined_call_operand.vmem [shape: bf16[400,120], index: 1, kind: input, shape index: {}]
  %s2 = inlined_call_operand.vmem [shape: f32[1,120], index: 2, kind: input, shape index: {}]
  %s3 = inlined_call_operand.vmem [shape: bf16[120,84], index: 3, kind: input, shape index: {}]
  %s4 = inlined_call_operand.vmem [shape: f32[1,84], index: 4, kind: input, shape index: {}]
  %s5 = inlined_call_operand.vmem [shape: bf16[84,10], index: 5, kind: input, shape index: {}]
  %s6 = inlined_call_operand.vmem [shape: f32[1,10], index: 6, kind: input, shape index: {}]
  %s7 = inlined_call_operand.vmem [shape: f32[8,10], index: 7, kind: output, shape index: {}]
  %s8 = sld [smem:[#allocation0]]
  $region38: #{network_forward.5} parent=0
    _
  %s10 = ssub.s32 1, %s8
  %s11 = scalar_select 0, %s10, %s8
  // Predicated region
  $region2: #{network_forward.5} parent=0 // pred_check
    _
  $region3: #{network_forward.5} parent=0 // pred_check_branch
    %13 = sbr.rel (0) target = $region5
  $region4: #{network_forward.5} parent=0 // pred_region
    _
  $region5: #{network_forward.5} parent=0 // pred_fallthru
    _
  // Predicated region
  $region6: #{network_forward.5} parent=0 // pred_check
    _
  $region7: #{network_forward.5} parent=0 // pred_check_branch
    %15 = sbr.rel (0) target = $region9
  $region8: #{network_forward.5} parent=0 // pred_region
    _
  $region9: #{network_forward.5} parent=0 // pred_fallthru
    _
  // Predicated region
  $region10: #{network_forward.5} parent=0 // pred_check
    _
  $region11: #{network_forward.5} parent=0 // pred_check_branch
    %17 = sbr.rel (0) target = $region13
  $region12: #{network_forward.5} parent=0 // pred_region
    _
  $region13: #{network_forward.5} parent=0 // pred_fallthru
    _
  // Predicated region
  $region14: #{network_forward.5} parent=0 // pred_check
    _
  $region15: #{network_forward.5} parent=0 // pred_check_branch
    %19 = sbr.rel (0) target = $region17
  $region16: #{network_forward.5} parent=0 // pred_region
    _
  $region17: #{network_forward.5} parent=0 // pred_fallthru
    _
  // Predicated region
  $region18: #{network_forward.5} parent=0 // pred_check
    _
  $region19: #{network_forward.5} parent=0 // pred_check_branch
    %21 = sbr.rel (0) target = $region21
  $region20: #{network_forward.5} parent=0 // pred_region
    _
  $region21: #{network_forward.5} parent=0 // pred_fallthru
    _
  // Predicated region
  $region22: #{network_forward.5} parent=0 // pred_check
    _
  $region23: #{network_forward.5} parent=0 // pred_check_branch
    %23 = sbr.rel (0) target = $region25
  $region24: #{network_forward.5} parent=0 // pred_region
    _
  $region25: #{network_forward.5} parent=0 // pred_fallthru
    _
  // Predicated region
  $region26: #{network_forward.5} parent=0 // pred_check
    _
  $region27: #{network_forward.5} parent=0 // pred_check_branch
    %25 = sbr.rel (0) target = $region29
  $region28: #{network_forward.5} parent=0 // pred_region
    _
  $region29: #{network_forward.5} parent=0 // pred_fallthru
    _
  %v27 = vld [vmem:[%s0] sm:$0xff]
  %v28 = vld [vmem:[%s0 + $0x8] sm:$0xff]
  %v29 = vld [vmem:[%s1] sm:$0xf]
  %v30 = vld [vmem:[%s1 + $0x4] sm:$0xf]
  %v31 = vld [vmem:[%s1 + $0x8] sm:$0xf]
  %v32 = vld [vmem:[%s1 + $0xc] sm:$0xf]
  %v33 = vld [vmem:[%s1 + $0x10] sm:$0xf]
  %v34 = vld [vmem:[%s1 + $0x14] sm:$0xf]
  %v35 = vld [vmem:[%s1 + $0x18] sm:$0xf]
  %v36 = vld [vmem:[%s1 + $0x1c] sm:$0xf]
  %v37 = vld [vmem:[%s1 + $0x20] sm:$0xf]
  %v38 = vld [vmem:[%s1 + $0x24] sm:$0xf]
  %v39 = vld [vmem:[%s1 + $0x28] sm:$0xf]
  %v40 = vld [vmem:[%s1 + $0x2c] sm:$0xf]
  %v41 = vld [vmem:[%s1 + $0x30] sm:$0xf]
  %v42 = vld [vmem:[%s1 + $0x34] sm:$0xf]
  %v43 = vld [vmem:[%s1 + $0x38] sm:$0xf]
  %v44 = vld [vmem:[%s1 + $0x3c] sm:$0xf]
  %v45 = vld [vmem:[%s1 + $0x40] sm:$0xf]
  %v46 = vld [vmem:[%s1 + $0x44] sm:$0xf]
  %v47 = vld [vmem:[%s1 + $0x48] sm:$0xf]
  %v48 = vld [vmem:[%s1 + $0x4c] sm:$0xf]
  %v49 = vld [vmem:[%s1 + $0x50] sm:$0xf]
  %v50 = vld [vmem:[%s1 + $0x54] sm:$0xf]
  %v51 = vld [vmem:[%s1 + $0x58] sm:$0xf]
  %v52 = vld [vmem:[%s1 + $0x5c] sm:$0xf]
  %v53 = vld [vmem:[%s1 + $0x60] sm:$0xf]
  %v54 = vld [vmem:[%s1 + $0x64] sm:$0xf]
  %v55 = vld [vmem:[%s1 + $0x68] sm:$0xf]
  %v56 = vld [vmem:[%s1 + $0x6c] sm:$0xf]
  %v57 = vld [vmem:[%s1 + $0x70] sm:$0xf]
  %v58 = vld [vmem:[%s1 + $0x74] sm:$0xf]
  %v59 = vld [vmem:[%s1 + $0x78] sm:$0xf]
  %v60 = vld [vmem:[%s1 + $0x7c] sm:$0xf]
  %v61 = vld [vmem:[%s1 + $0x80] sm:$0xf]
  %v62 = vld [vmem:[%s1 + $0x84] sm:$0xf]
  %v63 = vld [vmem:[%s1 + $0x88] sm:$0xf]
  %v64 = vld [vmem:[%s1 + $0x8c] sm:$0xf]
  %v65 = vld [vmem:[%s1 + $0x90] sm:$0xf]
  %v66 = vld [vmem:[%s1 + $0x94] sm:$0xf]
  %v67 = vld [vmem:[%s1 + $0x98] sm:$0xf]
  %v68 = vld [vmem:[%s1 + $0x9c] sm:$0xf]
  %v69 = vld [vmem:[%s1 + $0xa0] sm:$0xf]
  %v70 = vld [vmem:[%s1 + $0xa4] sm:$0xf]
  %v71 = vld [vmem:[%s1 + $0xa8] sm:$0xf]
  %v72 = vld [vmem:[%s1 + $0xac] sm:$0xf]
  %v73 = vld [vmem:[%s1 + $0xb0] sm:$0xf]
  %v74 = vld [vmem:[%s1 + $0xb4] sm:$0xf]
  %v75 = vld [vmem:[%s1 + $0xb8] sm:$0xf]
  %v76 = vld [vmem:[%s1 + $0xbc] sm:$0xf]
  %v77 = vld [vmem:[%s1 + $0xc0] sm:$0xf]
  %v78 = vld [vmem:[%s1 + $0xc4] sm:$0xf]
  %v79 = vld [vmem:[%s2] sm:$0x1]
  %v81 = vlaneseq
  %v82 = vshrl.u32 %v81, 7
  %v83 = vsub.s32 0, %v82
  %v84 = vrot.slane %v79, %v83
  %v88 = vunpack.c.l.b16 %v27
  %v89 = vunpack.c.h.b16 %v27
  %v90 = vunpack.c.l.b16 %v28
  %v91 = vunpack.c.h.b16 %v28
  %v92 = vpack.c.b16 %v88, %v88
  %v93 = vpack.c.b16 %v89, %v89
  %v94 = vpack.c.b16 %v90, %v90
  %v95 = vpack.c.b16 %v91, %v91
  %v149 = vunpack.c.l.b16 %v29
  %v150 = vunpack.c.l.b16 %v30
  %v151 = vunpack.c.l.b16 %v31
  %v152 = vunpack.c.l.b16 %v32
  %v153 = vunpack.c.l.b16 %v33
  %v154 = vunpack.c.l.b16 %v34
  %v155 = vunpack.c.l.b16 %v35
  %v156 = vunpack.c.l.b16 %v36
  %v157 = vunpack.c.l.b16 %v37
  %v158 = vunpack.c.l.b16 %v38
  %v159 = vunpack.c.l.b16 %v39
  %v160 = vunpack.c.l.b16 %v40
  %v161 = vunpack.c.l.b16 %v41
  %v162 = vunpack.c.l.b16 %v42
  %v163 = vunpack.c.l.b16 %v43
  %v164 = vunpack.c.l.b16 %v44
  %v165 = vunpack.c.l.b16 %v45
  %v166 = vunpack.c.l.b16 %v46
  %v167 = vunpack.c.l.b16 %v47
  %v168 = vunpack.c.l.b16 %v48
  %v169 = vunpack.c.l.b16 %v49
  %v170 = vunpack.c.l.b16 %v50
  %v171 = vunpack.c.l.b16 %v51
  %v172 = vunpack.c.l.b16 %v52
  %v173 = vunpack.c.l.b16 %v53
  %v174 = vunpack.c.l.b16 %v54
  %v175 = vunpack.c.l.b16 %v55
  %v176 = vunpack.c.l.b16 %v56
  %v177 = vunpack.c.l.b16 %v57
  %v178 = vunpack.c.l.b16 %v58
  %v179 = vunpack.c.l.b16 %v59
  %v180 = vunpack.c.l.b16 %v60
  %v181 = vunpack.c.l.b16 %v61
  %v182 = vunpack.c.l.b16 %v62
  %v183 = vunpack.c.l.b16 %v63
  %v184 = vunpack.c.l.b16 %v64
  %v185 = vunpack.c.l.b16 %v65
  %v186 = vunpack.c.l.b16 %v66
  %v187 = vunpack.c.l.b16 %v67
  %v188 = vunpack.c.l.b16 %v68
  %v189 = vunpack.c.l.b16 %v69
  %v190 = vunpack.c.l.b16 %v70
  %v191 = vunpack.c.l.b16 %v71
  %v192 = vunpack.c.l.b16 %v72
  %v193 = vunpack.c.l.b16 %v73
  %v194 = vunpack.c.l.b16 %v74
  %v195 = vunpack.c.l.b16 %v75
  %v196 = vunpack.c.l.b16 %v76
  %v197 = vunpack.c.l.b16 %v77
  %v198 = vunpack.c.l.b16 %v78
  %v199 = vpack.c.b16 %v150, %v149
  %v200 = vpack.c.b16 %v152, %v151
  %v201 = vpack.c.b16 %v154, %v153
  %v202 = vpack.c.b16 %v156, %v155
  %v203 = vpack.c.b16 %v158, %v157
  %v204 = vpack.c.b16 %v160, %v159
  %v205 = vpack.c.b16 %v162, %v161
  %v206 = vpack.c.b16 %v164, %v163
  %v207 = vpack.c.b16 %v166, %v165
  %v208 = vpack.c.b16 %v168, %v167
  %v209 = vpack.c.b16 %v170, %v169
  %v210 = vpack.c.b16 %v172, %v171
  %v211 = vpack.c.b16 %v174, %v173
  %v212 = vpack.c.b16 %v176, %v175
  %v213 = vpack.c.b16 %v178, %v177
  %v214 = vpack.c.b16 %v180, %v179
  %v215 = vpack.c.b16 %v182, %v181
  %v216 = vpack.c.b16 %v184, %v183
  %v217 = vpack.c.b16 %v186, %v185
  %v218 = vpack.c.b16 %v188, %v187
  %v219 = vpack.c.b16 %v190, %v189
  %v220 = vpack.c.b16 %v192, %v191
  %v221 = vpack.c.b16 %v194, %v193
  %v222 = vpack.c.b16 %v196, %v195
  %v223 = vpack.c.b16 %v198, %v197
  %vm249 = vcmask 130048
  %v251 = vsel %vm249, %v95, 0
  %253 = vmatprep.subr.bf16.mxu0 0
  %254 = vmatpush1.bf16.msra.mxu0 %v199
  %255 = vmatprep.subr.bf16.mxu0 0
  %256 = vmatpush1.bf16.msra.mxu0 %v200
  %257 = vmatprep.subr.bf16.mxu0 0
  %258 = vmatpush1.bf16.msra.mxu0 %v201
  %259 = vmatprep.subr.bf16.mxu0 0
  %260 = vmatpush1.bf16.msra.mxu0 %v202
  %261 = vmatprep.subr.bf16.mxu0 0
  %262 = vmatpush1.bf16.msra.mxu0 %v203
  %263 = vmatprep.subr.bf16.mxu0 0
  %264 = vmatpush1.bf16.msra.mxu0 %v204
  %265 = vmatprep.subr.bf16.mxu0 0
  %266 = vmatpush1.bf16.msra.mxu0 %v205
  %267 = vmatprep.subr.bf16.mxu0 0
  %268 = vmatpush1.bf16.msra.mxu0 %v206
  %269 = vmatprep.subr.bf16.mxu0 0
  %270 = vmatpush1.bf16.msra.mxu0 %v207
  %271 = vmatprep.subr.bf16.mxu0 0
  %272 = vmatpush1.bf16.msra.mxu0 %v208
  %273 = vmatprep.subr.bf16.mxu0 0
  %274 = vmatpush1.bf16.msra.mxu0 %v209
  %275 = vmatprep.subr.bf16.mxu0 0
  %276 = vmatpush1.bf16.msra.mxu0 %v210
  %277 = vmatprep.subr.bf16.mxu0 0
  %278 = vmatpush1.bf16.msra.mxu0 %v211
  %279 = vmatprep.subr.bf16.mxu0 0
  %280 = vmatpush1.bf16.msra.mxu0 %v212
  %281 = vmatprep.subr.bf16.mxu0 0
  %282 = vmatpush1.bf16.msra.mxu0 %v213
  %283 = vmatprep.subr.bf16.mxu0 0
  %284 = vmatpush1.bf16.msra.mxu0 %v214
  %285 = vmatprep.mubr.bf16.mxu0 %v93
  %286 = vmatmul.mubr.bf16.gmra.mrb[0].mxu0 %v92
  %v287 = vpop.f32.mrb[0].mxu0
  %v288 = vadd.f32 %v84, %v287
  %v289 = vpop.f32.mrb[0].mxu0
  %v290 = vpop.f32.mrb[0].mxu0
  %v291 = vpop.f32.mrb[0].mxu0
  %292 = vdwg.mxu0
  %293 = vmatprep.subr.bf16.mxu0 0
  %294 = vmatpush1.bf16.msra.mxu0 %v215
  %295 = vmatprep.subr.bf16.mxu0 0
  %296 = vmatpush1.bf16.msra.mxu0 %v216
  %297 = vmatprep.subr.bf16.mxu0 0
  %298 = vmatpush1.bf16.msra.mxu0 %v217
  %299 = vmatprep.subr.bf16.mxu0 0
  %300 = vmatpush1.bf16.msra.mxu0 %v218
  %301 = vmatprep.subr.bf16.mxu0 0
  %302 = vmatpush1.bf16.msra.mxu0 %v219
  %303 = vmatprep.subr.bf16.mxu0 0
  %304 = vmatpush1.bf16.msra.mxu0 %v220
  %305 = vmatprep.subr.bf16.mxu0 0
  %306 = vmatpush1.bf16.msra.mxu0 %v221
  %307 = vmatprep.subr.bf16.mxu0 0
  %308 = vmatpush1.bf16.msra.mxu0 %v222
  %309 = vmatprep.subr.bf16.mxu0 0
  %310 = vmatpush1.bf16.msra.mxu0 %v223
  %311 = vmatprep.subr.bf16.mxu0 0
  %312 = vmatpush1.bf16.msra.mxu0 0
  %313 = vmatprep.subr.bf16.mxu0 0
  %314 = vmatpush1.bf16.msra.mxu0 0
  %315 = vmatprep.subr.bf16.mxu0 0
  %316 = vmatpush1.bf16.msra.mxu0 0
  %317 = vmatprep.subr.bf16.mxu0 0
  %318 = vmatpush1.bf16.msra.mxu0 0
  %319 = vmatprep.subr.bf16.mxu0 0
  %320 = vmatpush1.bf16.msra.mxu0 0
  %321 = vmatprep.subr.bf16.mxu0 0
  %322 = vmatpush1.bf16.msra.mxu0 0
  %323 = vmatprep.subr.bf16.mxu0 0
  %324 = vmatpush1.bf16.msra.mxu0 0
  %325 = vmatprep.mubr.bf16.mxu0 %v251
  %326 = vmatmul.mubr.bf16.gmra.mrb[0].mxu0 %v94
  %v327 = vpop.f32.mrb[0].mxu0
  %v328 = vadd.f32 %v288, %v327
  %v329 = vpop.f32.mrb[0].mxu0
  %v330 = vpop.f32.mrb[0].mxu0
  %v331 = vpop.f32.mrb[0].mxu0
  %332 = vdwg.mxu0
  %v333 = vmax.f32 %v328, 0.0
  %v334 = vpack.c.bf16 %v333, %v333
  %v335 = vld [vmem:[%s3] sm:$0xf]
  %v336 = vld [vmem:[%s3 + $0x4] sm:$0xf]
  %v337 = vld [vmem:[%s3 + $0x8] sm:$0xf]
  %v338 = vld [vmem:[%s3 + $0xc] sm:$0xf]
  %v339 = vld [vmem:[%s3 + $0x10] sm:$0xf]
  %v340 = vld [vmem:[%s3 + $0x14] sm:$0xf]
  %v341 = vld [vmem:[%s3 + $0x18] sm:$0xf]
  %v342 = vld [vmem:[%s3 + $0x1c] sm:$0xf]
  %v343 = vld [vmem:[%s3 + $0x20] sm:$0xf]
  %v344 = vld [vmem:[%s3 + $0x24] sm:$0xf]
  %v345 = vld [vmem:[%s3 + $0x28] sm:$0xf]
  %v346 = vld [vmem:[%s3 + $0x2c] sm:$0xf]
  %v347 = vld [vmem:[%s3 + $0x30] sm:$0xf]
  %v348 = vld [vmem:[%s3 + $0x34] sm:$0xf]
  %v349 = vld [vmem:[%s3 + $0x38] sm:$0xf]
  %v350 = vld [vmem:[%s4] sm:$0x1]
  %v352 = vlaneseq
  %v353 = vshrl.u32 %v352, 7
  %v354 = vsub.s32 0, %v353
  %v355 = vrot.slane %v350, %v354
  %v372 = vunpack.c.l.b16 %v335
  %v373 = vunpack.c.l.b16 %v336
  %v374 = vunpack.c.l.b16 %v337
  %v375 = vunpack.c.l.b16 %v338
  %v376 = vunpack.c.l.b16 %v339
  %v377 = vunpack.c.l.b16 %v340
  %v378 = vunpack.c.l.b16 %v341
  %v379 = vunpack.c.l.b16 %v342
  %v380 = vunpack.c.l.b16 %v343
  %v381 = vunpack.c.l.b16 %v344
  %v382 = vunpack.c.l.b16 %v345
  %v383 = vunpack.c.l.b16 %v346
  %v384 = vunpack.c.l.b16 %v347
  %v385 = vunpack.c.l.b16 %v348
  %v386 = vunpack.c.l.b16 %v349
  %v387 = vpack.c.b16 %v373, %v372
  %v388 = vpack.c.b16 %v375, %v374
  %v389 = vpack.c.b16 %v377, %v376
  %v390 = vpack.c.b16 %v379, %v378
  %v391 = vpack.c.b16 %v381, %v380
  %v392 = vpack.c.b16 %v383, %v382
  %v393 = vpack.c.b16 %v385, %v384
  %v394 = vpack.c.b16 %v386, %v386
  %vm402 = vcmask 982016
  %v404 = vsel %vm402, %v334, 0
  %vm406 = vcmask 1043456
  %v408 = vsel %vm406, %v394, 0
  %410 = vmatprep.subr.bf16.mxu0 0
  %411 = vmatpush1.bf16.msra.mxu0 %v387
  %412 = vmatprep.subr.bf16.mxu0 0
  %413 = vmatpush1.bf16.msra.mxu0 %v388
  %414 = vmatprep.subr.bf16.mxu0 0
  %415 = vmatpush1.bf16.msra.mxu0 %v389
  %416 = vmatprep.subr.bf16.mxu0 0
  %417 = vmatpush1.bf16.msra.mxu0 %v390
  %418 = vmatprep.subr.bf16.mxu0 0
  %419 = vmatpush1.bf16.msra.mxu0 %v391
  %420 = vmatprep.subr.bf16.mxu0 0
  %421 = vmatpush1.bf16.msra.mxu0 %v392
  %422 = vmatprep.subr.bf16.mxu0 0
  %423 = vmatpush1.bf16.msra.mxu0 %v393
  %424 = vmatprep.subr.bf16.mxu0 0
  %425 = vmatpush1.bf16.msra.mxu0 %v408
  %426 = vmatprep.subr.bf16.mxu0 0
  %427 = vmatpush1.bf16.msra.mxu0 0
  %428 = vmatprep.subr.bf16.mxu0 0
  %429 = vmatpush1.bf16.msra.mxu0 0
  %430 = vmatprep.subr.bf16.mxu0 0
  %431 = vmatpush1.bf16.msra.mxu0 0
  %432 = vmatprep.subr.bf16.mxu0 0
  %433 = vmatpush1.bf16.msra.mxu0 0
  %434 = vmatprep.subr.bf16.mxu0 0
  %435 = vmatpush1.bf16.msra.mxu0 0
  %436 = vmatprep.subr.bf16.mxu0 0
  %437 = vmatpush1.bf16.msra.mxu0 0
  %438 = vmatprep.subr.bf16.mxu0 0
  %439 = vmatpush1.bf16.msra.mxu0 0
  %440 = vmatprep.subr.bf16.mxu0 0
  %441 = vmatpush1.bf16.msra.mxu0 0
  %442 = vmatprep.mubr.bf16.mxu0 0
  %443 = vmatmul.mubr.bf16.gmra.mrb[0].mxu0 %v404
  %v444 = vpop.f32.mrb[0].mxu0
  %v445 = vadd.f32 %v355, %v444
  %v446 = vpop.f32.mrb[0].mxu0
  %v447 = vpop.f32.mrb[0].mxu0
  %v448 = vpop.f32.mrb[0].mxu0
  %449 = vdwg.mxu0
  %v450 = vmax.f32 %v445, 0.0
  %v451 = vpack.c.bf16 %v450, %v450
  %v452 = vld [vmem:[%s5] sm:$0xf]
  %v453 = vld [vmem:[%s5 + $0x4] sm:$0xf]
  %v454 = vld [vmem:[%s5 + $0x8] sm:$0xf]
  %v455 = vld [vmem:[%s5 + $0xc] sm:$0xf]
  %v456 = vld [vmem:[%s5 + $0x10] sm:$0xf]
  %v457 = vld [vmem:[%s5 + $0x14] sm:$0xf]
  %v458 = vld [vmem:[%s5 + $0x18] sm:$0xf]
  %v459 = vld [vmem:[%s5 + $0x1c] sm:$0xf]
  %v460 = vld [vmem:[%s5 + $0x20] sm:$0xf]
  %v461 = vld [vmem:[%s5 + $0x24] sm:$0xf]
  %v462 = vld [vmem:[%s5 + $0x28] sm:$0x3]
  %v463 = vld [vmem:[%s6] sm:$0x1]
  %v465 = vlaneseq
  %v466 = vshrl.u32 %v465, 7
  %v467 = vsub.s32 0, %v466
  %v468 = vrot.slane %v463, %v467
  %v481 = vunpack.c.l.b16 %v452
  %v482 = vunpack.c.l.b16 %v453
  %v483 = vunpack.c.l.b16 %v454
  %v484 = vunpack.c.l.b16 %v455
  %v485 = vunpack.c.l.b16 %v456
  %v486 = vunpack.c.l.b16 %v457
  %v487 = vunpack.c.l.b16 %v458
  %v488 = vunpack.c.l.b16 %v459
  %v489 = vunpack.c.l.b16 %v460
  %v490 = vunpack.c.l.b16 %v461
  %v491 = vunpack.c.l.b16 %v462
  %v492 = vpack.c.b16 %v482, %v481
  %v493 = vpack.c.b16 %v484, %v483
  %v494 = vpack.c.b16 %v486, %v485
  %v495 = vpack.c.b16 %v488, %v487
  %v496 = vpack.c.b16 %v490, %v489
  %v497 = vpack.c.b16 %v491, %v491
  %vm503 = vcmask 687104
  %v505 = vsel %vm503, %v451, 0
  %vm507 = vcmask 1041408
  %v509 = vsel %vm507, %v497, 0
  %511 = vmatprep.subr.bf16.mxu0 0
  %512 = vmatpush1.bf16.msra.mxu0 %v492
  %513 = vmatprep.subr.bf16.mxu0 0
  %514 = vmatpush1.bf16.msra.mxu0 %v493
  %515 = vmatprep.subr.bf16.mxu0 0
  %516 = vmatpush1.bf16.msra.mxu0 %v494
  %517 = vmatprep.subr.bf16.mxu0 0
  %518 = vmatpush1.bf16.msra.mxu0 %v495
  %519 = vmatprep.subr.bf16.mxu0 0
  %520 = vmatpush1.bf16.msra.mxu0 %v496
  %521 = vmatprep.subr.bf16.mxu0 0
  %522 = vmatpush1.bf16.msra.mxu0 %v509
  %523 = vmatprep.subr.bf16.mxu0 0
  %524 = vmatpush1.bf16.msra.mxu0 0
  %525 = vmatprep.subr.bf16.mxu0 0
  %526 = vmatpush1.bf16.msra.mxu0 0
  %527 = vmatprep.subr.bf16.mxu0 0
  %528 = vmatpush1.bf16.msra.mxu0 0
  %529 = vmatprep.subr.bf16.mxu0 0
  %530 = vmatpush1.bf16.msra.mxu0 0
  %531 = vmatprep.subr.bf16.mxu0 0
  %532 = vmatpush1.bf16.msra.mxu0 0
  %533 = vmatprep.subr.bf16.mxu0 0
  %534 = vmatpush1.bf16.msra.mxu0 0
  %535 = vmatprep.subr.bf16.mxu0 0
  %536 = vmatpush1.bf16.msra.mxu0 0
  %537 = vmatprep.subr.bf16.mxu0 0
  %538 = vmatpush1.bf16.msra.mxu0 0
  %539 = vmatprep.subr.bf16.mxu0 0
  %540 = vmatpush1.bf16.msra.mxu0 0
  %541 = vmatprep.subr.bf16.mxu0 0
  %542 = vmatpush1.bf16.msra.mxu0 0
  %543 = vmatprep.mubr.bf16.mxu0 0
  %544 = vmatmul.mubr.bf16.gmra.mrb[0].mxu0 %v505
  %v545 = vpop.f32.mrb[0].mxu0
  %v546 = vadd.f32 %v468, %v545
  %v547 = vpop.f32.mrb[0].mxu0
  %v548 = vpop.f32.mrb[0].mxu0
  %v549 = vpop.f32.mrb[0].mxu0
  %550 = vdwg.mxu0
  %vm551 = vcmask 80896
  %552 = vst.msk [vmem:[%s7] sm:$0xff] %vm551, %v546
  // Predicated region
  $region30: #{network_forward.5} parent=0 // pred_check
    _
  $region31: #{network_forward.5} parent=0 // pred_check_branch
    %554 = sbr.rel (0) target = $region33
  $region32: #{network_forward.5} parent=0 // pred_region
    _
  $region33: #{network_forward.5} parent=0 // pred_fallthru
    _
  // Predicated region
  $region34: #{network_forward.5} parent=0 // pred_check
    _
  $region35: #{network_forward.5} parent=0 // pred_check_branch
    %556 = sbr.rel (0) target = $region37
  $region36: #{network_forward.5} parent=0 // pred_region
    _
  $region37: #{network_forward.5} parent=0 // pred_fallthru
    _

</llo_original>
